<compile_context>
chip_gen: v7x
topology: tpu7x:2x2x1
jax: 0.10.0
libtpu: 0.0.40
codegen_flags: <defaults>
</compile_context>

<pallas_src>
import functools

import jax
import jax.numpy as jnp
from jax import lax
from jax.experimental import pallas as pl
from jax.experimental.pallas import tpu as pltpu

NEG_SLOPE = 0.01                    # nn.LeakyReLU default
BN_EPS = 1e-5                       # nn.BatchNorm2d default
_VMEM_BUDGET = 40 * 1024 * 1024     # per-grid-step working-set guard (v7x safe)


# ----------------------------- in-kernel helpers -----------------------------

def _leaky(x):
    return jnp.where(x > 0, x, NEG_SLOPE * x)


def _conv3x3_same(x, w9, b):
    """'same' 3x3 conv (stride 1) as a single im2col matmul.

    x : (R, W, C)   bf16, unpadded
    w9: (9*C, Co)   bf16, rows ordered (dh, dw, cin)  (== HWIO reshape)
    b : (1, Co)     f32
    returns (R, W, Co) f32
    """
    r, wdim, c = x.shape
    co = w9.shape[-1]
    zr = jnp.zeros((1, wdim, c), x.dtype)
    xp = jnp.concatenate([zr, x, zr], axis=0)            # (R+2, W, C)
    zc = jnp.zeros((r + 2, 1, c), x.dtype)
    xp = jnp.concatenate([zc, xp, zc], axis=1)           # (R+2, W+2, C)
    # TODO(synk): for small C (< 128 lanes) the 9-slice lane concat costs
    #             shuffles comparable to the matmul; restructure (3 slabs or
    #             roll-based W taps) only if the Mosaic dump shows it dominant.
    cols = [xp[dh:dh + r, dw:dw + wdim, :].reshape(r * wdim, c)
            for dh in range(3) for dw in range(3)]
    patches = jnp.concatenate(cols, axis=-1)             # (R*W, 9C) bf16
    y = jnp.dot(patches, w9, preferred_element_type=jnp.float32) + b
    return y.reshape(r, wdim, co)


# ------------------------------- main kernel ---------------------------------

def _down_block_kernel(
        x_ref,                               # (1, H, W, Cin) bf16 VMEM block
        w1_ref, b1_ref,                      # (9*Cin, Co) bf16, (1, Co) f32
        w21x_ref, w21x1_ref, b21_ref,        # split 1x1 conv21
        w22_ref, b22_ref,                    # (9*Co, Co), (1, Co)
        w31x_ref, w31x1_ref, w31x22_ref, b31_ref,   # split 1x1 conv31
        w32_ref, b32_ref,                    # (9*Co, Co), (1, Co)
        out_ref,                             # (1, H, W*Co) f32   (lane dense)
        stats_ref,                           # (1, 2, Co)   f32   (sum, sumsq)
        *, hp, wp, cin, co):
    hw = hp * wp
    x = x_ref[0]                                          # (H, W, Cin) bf16

    # ---- x1 = LeakyReLU(conv1(x)) -------------------------------------------
    x1 = _leaky(_conv3x3_same(x, w1_ref[...], b1_ref[...]))      # (H, W, Co) f32
    x1b = x1.astype(jnp.bfloat16)

    # ---- conv21(cat(x, x1)) = x@W21x + x1@W21x1 + b21   (concat-free 1x1) ---
    xf = x.reshape(hw, cin)
    x1f = x1b.reshape(hw, co)
    t2 = (jnp.dot(xf, w21x_ref[...], preferred_element_type=jnp.float32)
          + jnp.dot(x1f, w21x1_ref[...], preferred_element_type=jnp.float32)
          + b21_ref[...]).reshape(hp, wp, co)

    # ---- x22 = LeakyReLU(conv22(t2)) ----------------------------------------
    x22 = _leaky(_conv3x3_same(t2.astype(jnp.bfloat16),
                               w22_ref[...], b22_ref[...]))
    x22b = x22.astype(jnp.bfloat16)

    # ---- conv31(cat(x, x1, x22)) = three partial 1x1 matmuls ----------------
    t3 = (jnp.dot(xf, w31x_ref[...], preferred_element_type=jnp.float32)
          + jnp.dot(x1f, w31x1_ref[...], preferred_element_type=jnp.float32)
          + jnp.dot(x22b.reshape(hw, co), w31x22_ref[...],
                    preferred_element_type=jnp.float32)
          + b31_ref[...]).reshape(hp, wp, co)

    # ---- out = LeakyReLU(conv32(t3)) ----------------------------------------
    out = _leaky(_conv3x3_same(t3.astype(jnp.bfloat16),
                               w32_ref[...], b32_ref[...]))       # (H, W, Co) f32

    # lane-dense store of the pre-BN activation.
    out_ref[0] = out.reshape(hp, wp * co)

    # per-batch BatchNorm partials (training-mode batch statistics).
    of = out.reshape(hw, co)
    stats_ref[0, 0:1, :] = jnp.sum(of, axis=0, keepdims=True)
    stats_ref[0, 1:2, :] = jnp.sum(of * of, axis=0, keepdims=True)


# ---------------------------------- wrapper ----------------------------------

def _vmem_step_bytes(hp, wp, cin, co):
    """Rough per-grid-step VMEM footprint (double-buffered I/O + live temps)."""
    hw = hp * wp
    io = 2 * hw * cin * 2 + 2 * hw * co * 4              # in/out blocks, x2 buffers
    weights = 2 * (9 * cin * co + 2 * cin * co
                   + 2 * 9 * co * co + 3 * co * co) * 2 + 10 * co * 4
    temps = hw * (9 * max(cin, co) * 2                   # im2col patches (bf16)
                  + 4 * co * 4 + 3 * co * 2)             # x1/t2/x22/t3/out live set
    return io + weights + 2 * temps                      # 2x fudge for compiler temps


def _const_spec(shape):
    return pl.BlockSpec(shape, lambda b: (0,) * len(shape))


@functools.partial(jax.jit, static_argnames=("down_size",))
def dense_down_block(x_nchw, params, down_size):
    """Forward of DenseNet2D_down_block (dropout=False, BN training mode)."""
    n, cin, h, w = x_nchw.shape
    co = params["w1"].shape[-1]

    # AvgPool2d(kernel=stride=down_size), floor behaviour like PyTorch.
    if down_size is not None:
        k = down_size
        hp, wp = h // k, w // k
        x = x_nchw[:, :, :hp * k, :wp * k].reshape(
            n, cin, hp, k, wp, k).mean(axis=(3, 5))
    else:
        hp, wp = h, w
        x = x_nchw

    if _vmem_step_bytes(hp, wp, cin, co) > _VMEM_BUDGET:
        # TODO(synk): row-tiled halo path for very large feature maps.
        raise NotImplementedError("feature map too large for a full-height tile")

    # NHWC, bf16 matmul operands (pool + transpose + cast fuse in XLA; no
    # separate HBM padding pass — zero conv borders are built in the kernel).
    x = jnp.transpose(x, (0, 2, 3, 1)).astype(jnp.bfloat16)      # (n, hp, wp, cin)

    # Weight preprocessing: im2col reshape for 3x3 convs, split the 1x1 convs.
    bf = jnp.bfloat16
    w1_9 = params["w1"].reshape(9 * cin, co).astype(bf)
    w22_9 = params["w22"].reshape(9 * co, co).astype(bf)
    w32_9 = params["w32"].reshape(9 * co, co).astype(bf)
    w21 = params["w21"]
    w21x, w21x1 = w21[:cin].astype(bf), w21[cin:].astype(bf)
    w31 = params["w31"]
    w31x = w31[:cin].astype(bf)
    w31x1 = w31[cin:cin + co].astype(bf)
    w31x22 = w31[cin + co:].astype(bf)
    b1, b21, b22, b31, b32 = (params[key].astype(jnp.float32)
                              for key in ("b1", "b21", "b22", "b31", "b32"))

    kernel = functools.partial(_down_block_kernel, hp=hp, wp=wp, cin=cin, co=co)
    out_pre, stats = pl.pallas_call(
        kernel,
        grid=(n,),
        in_specs=[
            pl.BlockSpec((1, hp, wp, cin), lambda b: (b, 0, 0, 0)),
            _const_spec((9 * cin, co)), _const_spec((1, co)),
            _const_spec((cin, co)), _const_spec((co, co)), _const_spec((1, co)),
            _const_spec((9 * co, co)), _const_spec((1, co)),
            _const_spec((cin, co)), _const_spec((co, co)), _const_spec((co, co)),
            _const_spec((1, co)),
            _const_spec((9 * co, co)), _const_spec((1, co)),
        ],
        out_specs=[
            pl.BlockSpec((1, hp, wp * co), lambda b: (b, 0, 0)),
            pl.BlockSpec((1, 2, co), lambda b: (b, 0, 0)),
        ],
        out_shape=[
            jax.ShapeDtypeStruct((n, hp, wp * co), jnp.float32),
            jax.ShapeDtypeStruct((n, 2, co), jnp.float32),
        ],
        compiler_params=pltpu.CompilerParams(
            dimension_semantics=("parallel",),          # megacore over batches
            vmem_limit_bytes=48 * 1024 * 1024,          # <= v7x 64 MiB/TC budget
        ),
    )(x, w1_9, b1, w21x, w21x1, b21, w22_9, b22,
      w31x, w31x1, w31x22, b31, w32_9, b32)

    # BatchNorm (training-mode batch statistics) + NHWC -> NCHW, left to XLA:
    # a trivial per-channel affine plus a layout change (keeps the kernel's
    # output store lane-dense).
    # TODO(synk): single-pass E[x^2]-E[x]^2 variance can cancel for
    #             large-mean activations; switch to Welford if needed.
    count = jnp.float32(n * hp * wp)
    mean = jnp.sum(stats[:, 0, :], axis=0) / count
    var = jnp.maximum(jnp.sum(stats[:, 1, :], axis=0) / count - mean * mean, 0.0)
    scale = params["gamma"].reshape(-1) * lax.rsqrt(var + BN_EPS)
    shift = params["beta"].reshape(-1) - mean * scale
    y = out_pre.reshape(n, hp, wp, co) * scale + shift
    return jnp.transpose(y, (0, 3, 1, 2))


# ---------------------------- deterministic init ------------------------------

def init_params(key, input_channels, output_channels):
    """Deterministic init mirroring nn.Conv2d / nn.BatchNorm2d shapes.

    3x3 conv weights HWIO (3, 3, Cin, Cout); 1x1 convs as (Cin, Cout);
    biases / BN params as (1, C)."""
    def conv_w(k, kh, kw, ci, c_out):
        bound = 1.0 / jnp.sqrt(float(ci * kh * kw))
        return jax.random.uniform(k, (kh, kw, ci, c_out), jnp.float32, -bound, bound)

    def conv_b(k, kh, kw, ci, c_out):
        bound = 1.0 / jnp.sqrt(float(ci * kh * kw))
        return jax.random.uniform(k, (1, c_out), jnp.float32, -bound, bound)

    ci, co = input_channels, output_channels
    ks = jax.random.split(key, 10)
    return {
        "w1":  conv_w(ks[0], 3, 3, ci, co),
        "b1":  conv_b(ks[1], 3, 3, ci, co),
        "w21": conv_w(ks[2], 1, 1, ci + co, co)[0, 0],           # (Ci+Co, Co)
        "b21": conv_b(ks[3], 1, 1, ci + co, co),
        "w22": conv_w(ks[4], 3, 3, co, co),
        "b22": conv_b(ks[5], 3, 3, co, co),
        "w31": conv_w(ks[6], 1, 1, ci + 2 * co, co)[0, 0],       # (Ci+2Co, Co)
        "b31": conv_b(ks[7], 1, 1, ci + 2 * co, co),
        "w32": conv_w(ks[8], 3, 3, co, co),
        "b32": conv_b(ks[9], 3, 3, co, co),
        "gamma": jnp.ones((1, co), jnp.float32),                 # BN weight
        "beta":  jnp.zeros((1, co), jnp.float32),                # BN bias
    }


# ------------------------- pure-JAX reference (check) -------------------------

def _ref_forward(x_nchw, params, down_size):
    x = x_nchw
    if down_size is not None:
        k = down_size
        nb, c, h, w = x.shape
        hp, wp = h // k, w // k
        x = x[:, :, :hp * k, :wp * k].reshape(nb, c, hp, k, wp, k).mean(axis=(3, 5))

    def conv(inp, w_hwio, b, pad):
        y = lax.conv_general_dilated(
            inp, w_hwio, (1, 1), pad,
            dimension_numbers=("NCHW", "HWIO", "NCHW"),
            precision=lax.Precision.HIGHEST)
        return y + b.reshape(1, -1, 1, 1)

    lrelu = lambda t: jnp.where(t > 0, t, NEG_SLOPE * t)
    p = params
    pad1 = ((1, 1), (1, 1))
    pad0 = ((0, 0), (0, 0))
    x1 = lrelu(conv(x, p["w1"], p["b1"], pad1))
    x21 = jnp.concatenate([x, x1], axis=1)
    t = conv(x21, p["w21"][None, None], p["b21"], pad0)
    x22 = lrelu(conv(t, p["w22"], p["b22"], pad1))
    x31 = jnp.concatenate([x21, x22], axis=1)
    t = conv(x31, p["w31"][None, None], p["b31"], pad0)
    out = lrelu(conv(t, p["w32"], p["b32"], pad1))
    mean = out.mean(axis=(0, 2, 3), keepdims=True)
    var = ((out - mean) ** 2).mean(axis=(0, 2, 3), keepdims=True)
    g = p["gamma"].reshape(1, -1, 1, 1)
    bta = p["beta"].reshape(1, -1, 1, 1)
    return (out - mean) * lax.rsqrt(var + BN_EPS) * g + bta


def _check(out, ref, tag):
    max_err = float(jnp.max(jnp.abs(out - ref)))
    mean_err = float(jnp.mean(jnp.abs(out - ref)))
    assert max_err < 0.2 and mean_err < 0.02, (
        f"{tag}: kernel deviates from reference "
        f"(max|diff|={max_err:.4f}, mean|diff|={mean_err:.4f})")


# ----------------------------------- main -------------------------------------

if __name__ == "__main__":
    key = jax.random.PRNGKey(0)
    k1, k2, k3, k4 = jax.random.split(key, 4)

    # Case 1: small channels + AvgPool(2), matching the module's typical use.
    x = jax.random.normal(k1, (2, 4, 32, 32), jnp.float32)
    params = init_params(k2, 4, 8)
    out = jax.block_until_ready(dense_down_block(x, params, down_size=2))
    assert out.shape == (2, 8, 16, 16)
    assert bool(jnp.all(jnp.isfinite(out)))
    _check(out, _ref_forward(x, params, 2), "case1")

    # Case 2: wider channels, no pooling (exercises wider lane / matmul paths).
    x2 = jax.random.normal(k3, (1, 32, 16, 24), jnp.float32)
    params2 = init_params(k4, 32, 32)
    out2 = jax.block_until_ready(dense_down_block(x2, params2, down_size=None))
    assert out2.shape == (1, 32, 16, 24)
    assert bool(jnp.all(jnp.isfinite(out2)))
    _check(out2, _ref_forward(x2, params2, None), "case2")

    print("KERNEL_OK")
</pallas_src>

<mosaic_0001>
module attributes {stable_mosaic.version = 11 : i64} {
  func.func @_down_block_kernel(%arg0: i32, %arg1: memref<1x16x16x4xbf16, #tpu.memory_space<vmem>>, %arg2: memref<36x8xbf16, #tpu.memory_space<vmem>>, %arg3: memref<1x8xf32, #tpu.memory_space<vmem>>, %arg4: memref<4x8xbf16, #tpu.memory_space<vmem>>, %arg5: memref<8x8xbf16, #tpu.memory_space<vmem>>, %arg6: memref<1x8xf32, #tpu.memory_space<vmem>>, %arg7: memref<72x8xbf16, #tpu.memory_space<vmem>>, %arg8: memref<1x8xf32, #tpu.memory_space<vmem>>, %arg9: memref<4x8xbf16, #tpu.memory_space<vmem>>, %arg10: memref<8x8xbf16, #tpu.memory_space<vmem>>, %arg11: memref<8x8xbf16, #tpu.memory_space<vmem>>, %arg12: memref<1x8xf32, #tpu.memory_space<vmem>>, %arg13: memref<72x8xbf16, #tpu.memory_space<vmem>>, %arg14: memref<1x8xf32, #tpu.memory_space<vmem>>, %arg15: memref<1x16x128xf32, #tpu.memory_space<vmem>>, %arg16: memref<1x2x8xf32, #tpu.memory_space<vmem>>) attributes {dimension_semantics = [#tpu.dimension_semantics<parallel>], iteration_bounds = array<i64: 2>, scalar_prefetch = 0 : i64, scratch_operands = 0 : i64, tpu.core_type = #tpu.core_type<tc>, window_params = [{transform_indices = @transform_0, window_bounds = array<i64: 1, 16, 16, 4>}, {pipeline_mode = #tpu.pipeline_mode<synchronous>, transform_indices = @transform_1, window_bounds = array<i64: 36, 8>}, {pipeline_mode = #tpu.pipeline_mode<synchronous>, transform_indices = @transform_2, window_bounds = array<i64: 1, 8>}, {pipeline_mode = #tpu.pipeline_mode<synchronous>, transform_indices = @transform_3, window_bounds = array<i64: 4, 8>}, {pipeline_mode = #tpu.pipeline_mode<synchronous>, transform_indices = @transform_4, window_bounds = array<i64: 8, 8>}, {pipeline_mode = #tpu.pipeline_mode<synchronous>, transform_indices = @transform_5, window_bounds = array<i64: 1, 8>}, {pipeline_mode = #tpu.pipeline_mode<synchronous>, transform_indices = @transform_6, window_bounds = array<i64: 72, 8>}, {pipeline_mode = #tpu.pipeline_mode<synchronous>, transform_indices = @transform_7, window_bounds = array<i64: 1, 8>}, {pipeline_mode = #tpu.pipeline_mode<synchronous>, transform_indices = @transform_8, window_bounds = array<i64: 4, 8>}, {pipeline_mode = #tpu.pipeline_mode<synchronous>, transform_indices = @transform_9, window_bounds = array<i64: 8, 8>}, {pipeline_mode = #tpu.pipeline_mode<synchronous>, transform_indices = @transform_10, window_bounds = array<i64: 8, 8>}, {pipeline_mode = #tpu.pipeline_mode<synchronous>, transform_indices = @transform_11, window_bounds = array<i64: 1, 8>}, {pipeline_mode = #tpu.pipeline_mode<synchronous>, transform_indices = @transform_12, window_bounds = array<i64: 72, 8>}, {pipeline_mode = #tpu.pipeline_mode<synchronous>, transform_indices = @transform_13, window_bounds = array<i64: 1, 8>}, {transform_indices = @transform_14, window_bounds = array<i64: 1, 16, 128>}, {transform_indices = @transform_15, window_bounds = array<i64: 1, 2, 8>}]} {
    %c0 = arith.constant 0 : index
    %c0_0 = arith.constant 0 : index
    %c0_1 = arith.constant 0 : index
    %c0_2 = arith.constant 0 : index
    %0 = vector.load %arg1[%c0, %c0_0, %c0_1, %c0_2] : memref<1x16x16x4xbf16, #tpu.memory_space<vmem>>, vector<1x16x16x4xbf16>
    %1 = vector.shape_cast %0 : vector<1x16x16x4xbf16> to vector<16x16x4xbf16>
    %c0_3 = arith.constant 0 : index
    %c0_4 = arith.constant 0 : index
    %2 = vector.load %arg2[%c0_3, %c0_4] : memref<36x8xbf16, #tpu.memory_space<vmem>>, vector<36x8xbf16>
    %c0_5 = arith.constant 0 : index
    %c0_6 = arith.constant 0 : index
    %3 = vector.load %arg3[%c0_5, %c0_6] : memref<1x8xf32, #tpu.memory_space<vmem>>, vector<1x8xf32>
    %cst = arith.constant 0.000000e+00 : bf16
    %4 = vector.broadcast %cst : bf16 to vector<1x16x4xbf16>
    %5 = tpu.concatenate %4, %1, %4 in 0 : vector<1x16x4xbf16>, vector<16x16x4xbf16>, vector<1x16x4xbf16> -> vector<18x16x4xbf16>
    %cst_7 = arith.constant 0.000000e+00 : bf16
    %6 = vector.broadcast %cst_7 : bf16 to vector<18x1x4xbf16>
    %7 = tpu.concatenate %6, %5, %6 in 1 : vector<18x1x4xbf16>, vector<18x16x4xbf16>, vector<18x1x4xbf16> -> vector<18x18x4xbf16>
    %8 = vector.extract_strided_slice %7 {offsets = [0, 0, 0], sizes = [16, 16, 4], strides = [1, 1, 1]} : vector<18x18x4xbf16> to vector<16x16x4xbf16>
    %9 = vector.shape_cast %8 : vector<16x16x4xbf16> to vector<256x4xbf16>
    %10 = vector.extract_strided_slice %7 {offsets = [0, 1, 0], sizes = [16, 16, 4], strides = [1, 1, 1]} : vector<18x18x4xbf16> to vector<16x16x4xbf16>
    %11 = vector.shape_cast %10 : vector<16x16x4xbf16> to vector<256x4xbf16>
    %12 = vector.extract_strided_slice %7 {offsets = [0, 2, 0], sizes = [16, 16, 4], strides = [1, 1, 1]} : vector<18x18x4xbf16> to vector<16x16x4xbf16>
    %13 = vector.shape_cast %12 : vector<16x16x4xbf16> to vector<256x4xbf16>
    %14 = vector.extract_strided_slice %7 {offsets = [1, 0, 0], sizes = [16, 16, 4], strides = [1, 1, 1]} : vector<18x18x4xbf16> to vector<16x16x4xbf16>
    %15 = vector.shape_cast %14 : vector<16x16x4xbf16> to vector<256x4xbf16>
    %16 = vector.extract_strided_slice %7 {offsets = [1, 1, 0], sizes = [16, 16, 4], strides = [1, 1, 1]} : vector<18x18x4xbf16> to vector<16x16x4xbf16>
    %17 = vector.shape_cast %16 : vector<16x16x4xbf16> to vector<256x4xbf16>
    %18 = vector.extract_strided_slice %7 {offsets = [1, 2, 0], sizes = [16, 16, 4], strides = [1, 1, 1]} : vector<18x18x4xbf16> to vector<16x16x4xbf16>
    %19 = vector.shape_cast %18 : vector<16x16x4xbf16> to vector<256x4xbf16>
    %20 = vector.extract_strided_slice %7 {offsets = [2, 0, 0], sizes = [16, 16, 4], strides = [1, 1, 1]} : vector<18x18x4xbf16> to vector<16x16x4xbf16>
    %21 = vector.shape_cast %20 : vector<16x16x4xbf16> to vector<256x4xbf16>
    %22 = vector.extract_strided_slice %7 {offsets = [2, 1, 0], sizes = [16, 16, 4], strides = [1, 1, 1]} : vector<18x18x4xbf16> to vector<16x16x4xbf16>
    %23 = vector.shape_cast %22 : vector<16x16x4xbf16> to vector<256x4xbf16>
    %24 = vector.extract_strided_slice %7 {offsets = [2, 2, 0], sizes = [16, 16, 4], strides = [1, 1, 1]} : vector<18x18x4xbf16> to vector<16x16x4xbf16>
    %25 = vector.shape_cast %24 : vector<16x16x4xbf16> to vector<256x4xbf16>
    %26 = tpu.concatenate %9, %11, %13, %15, %17, %19, %21, %23, %25 in 1 : vector<256x4xbf16>, vector<256x4xbf16>, vector<256x4xbf16>, vector<256x4xbf16>, vector<256x4xbf16>, vector<256x4xbf16>, vector<256x4xbf16>, vector<256x4xbf16>, vector<256x4xbf16> -> vector<256x36xbf16>
    %cst_8 = arith.constant dense<0.000000e+00> : vector<256x8xf32>
    %27 = tpu.matmul %26, %2, %cst_8 {dimension_numbers = #tpu.dot_dimension_numbers<[1], [0], [0], [1], [0, 0, 1, 1], [], []>} : vector<256x36xbf16>, vector<36x8xbf16>, vector<256x8xf32> -> vector<256x8xf32>
    %28 = vector.broadcast %3 : vector<1x8xf32> to vector<256x8xf32>
    %29 = arith.addf %27, %28 : vector<256x8xf32>
    %30 = vector.shape_cast %29 : vector<256x8xf32> to vector<16x16x8xf32>
    %cst_9 = arith.constant 0.000000e+00 : f32
    %31 = vector.broadcast %cst_9 : f32 to vector<16x16x8xf32>
    %32 = arith.cmpf ogt, %30, %31 : vector<16x16x8xf32>
    %cst_10 = arith.constant 0.00999999977 : f32
    %33 = vector.broadcast %cst_10 : f32 to vector<16x16x8xf32>
    %34 = arith.mulf %33, %30 : vector<16x16x8xf32>
    %35 = arith.select %32, %30, %34 : vector<16x16x8xi1>, vector<16x16x8xf32>
    %36 = arith.truncf %35 : vector<16x16x8xf32> to vector<16x16x8xbf16>
    %37 = vector.shape_cast %1 : vector<16x16x4xbf16> to vector<256x4xbf16>
    %38 = vector.shape_cast %36 : vector<16x16x8xbf16> to vector<256x8xbf16>
    %c0_11 = arith.constant 0 : index
    %c0_12 = arith.constant 0 : index
    %39 = vector.load %arg4[%c0_11, %c0_12] : memref<4x8xbf16, #tpu.memory_space<vmem>>, vector<4x8xbf16>
    %cst_13 = arith.constant dense<0.000000e+00> : vector<256x8xf32>
    %40 = tpu.matmul %37, %39, %cst_13 {dimension_numbers = #tpu.dot_dimension_numbers<[1], [0], [0], [1], [0, 0, 1, 1], [], []>} : vector<256x4xbf16>, vector<4x8xbf16>, vector<256x8xf32> -> vector<256x8xf32>
    %c0_14 = arith.constant 0 : index
    %c0_15 = arith.constant 0 : index
    %41 = vector.load %arg5[%c0_14, %c0_15] : memref<8x8xbf16, #tpu.memory_space<vmem>>, vector<8x8xbf16>
    %cst_16 = arith.constant dense<0.000000e+00> : vector<256x8xf32>
    %42 = tpu.matmul %38, %41, %cst_16 {dimension_numbers = #tpu.dot_dimension_numbers<[1], [0], [0], [1], [0, 0, 1, 1], [], []>} : vector<256x8xbf16>, vector<8x8xbf16>, vector<256x8xf32> -> vector<256x8xf32>
    %43 = arith.addf %40, %42 : vector<256x8xf32>
    %c0_17 = arith.constant 0 : index
    %c0_18 = arith.constant 0 : index
    %44 = vector.load %arg6[%c0_17, %c0_18] : memref<1x8xf32, #tpu.memory_space<vmem>>, vector<1x8xf32>
    %45 = vector.broadcast %44 : vector<1x8xf32> to vector<256x8xf32>
    %46 = arith.addf %43, %45 : vector<256x8xf32>
    %47 = vector.shape_cast %46 : vector<256x8xf32> to vector<16x16x8xf32>
    %48 = arith.truncf %47 : vector<16x16x8xf32> to vector<16x16x8xbf16>
    %c0_19 = arith.constant 0 : index
    %c0_20 = arith.constant 0 : index
    %49 = vector.load %arg7[%c0_19, %c0_20] : memref<72x8xbf16, #tpu.memory_space<vmem>>, vector<72x8xbf16>
    %c0_21 = arith.constant 0 : index
    %c0_22 = arith.constant 0 : index
    %50 = vector.load %arg8[%c0_21, %c0_22] : memref<1x8xf32, #tpu.memory_space<vmem>>, vector<1x8xf32>
    %cst_23 = arith.constant 0.000000e+00 : bf16
    %51 = vector.broadcast %cst_23 : bf16 to vector<1x16x8xbf16>
    %52 = tpu.concatenate %51, %48, %51 in 0 : vector<1x16x8xbf16>, vector<16x16x8xbf16>, vector<1x16x8xbf16> -> vector<18x16x8xbf16>
    %cst_24 = arith.constant 0.000000e+00 : bf16
    %53 = vector.broadcast %cst_24 : bf16 to vector<18x1x8xbf16>
    %54 = tpu.concatenate %53, %52, %53 in 1 : vector<18x1x8xbf16>, vector<18x16x8xbf16>, vector<18x1x8xbf16> -> vector<18x18x8xbf16>
    %55 = vector.extract_strided_slice %54 {offsets = [0, 0, 0], sizes = [16, 16, 8], strides = [1, 1, 1]} : vector<18x18x8xbf16> to vector<16x16x8xbf16>
    %56 = vector.shape_cast %55 : vector<16x16x8xbf16> to vector<256x8xbf16>
    %57 = vector.extract_strided_slice %54 {offsets = [0, 1, 0], sizes = [16, 16, 8], strides = [1, 1, 1]} : vector<18x18x8xbf16> to vector<16x16x8xbf16>
    %58 = vector.shape_cast %57 : vector<16x16x8xbf16> to vector<256x8xbf16>
    %59 = vector.extract_strided_slice %54 {offsets = [0, 2, 0], sizes = [16, 16, 8], strides = [1, 1, 1]} : vector<18x18x8xbf16> to vector<16x16x8xbf16>
    %60 = vector.shape_cast %59 : vector<16x16x8xbf16> to vector<256x8xbf16>
    %61 = vector.extract_strided_slice %54 {offsets = [1, 0, 0], sizes = [16, 16, 8], strides = [1, 1, 1]} : vector<18x18x8xbf16> to vector<16x16x8xbf16>
    %62 = vector.shape_cast %61 : vector<16x16x8xbf16> to vector<256x8xbf16>
    %63 = vector.extract_strided_slice %54 {offsets = [1, 1, 0], sizes = [16, 16, 8], strides = [1, 1, 1]} : vector<18x18x8xbf16> to vector<16x16x8xbf16>
    %64 = vector.shape_cast %63 : vector<16x16x8xbf16> to vector<256x8xbf16>
    %65 = vector.extract_strided_slice %54 {offsets = [1, 2, 0], sizes = [16, 16, 8], strides = [1, 1, 1]} : vector<18x18x8xbf16> to vector<16x16x8xbf16>
    %66 = vector.shape_cast %65 : vector<16x16x8xbf16> to vector<256x8xbf16>
    %67 = vector.extract_strided_slice %54 {offsets = [2, 0, 0], sizes = [16, 16, 8], strides = [1, 1, 1]} : vector<18x18x8xbf16> to vector<16x16x8xbf16>
    %68 = vector.shape_cast %67 : vector<16x16x8xbf16> to vector<256x8xbf16>
    %69 = vector.extract_strided_slice %54 {offsets = [2, 1, 0], sizes = [16, 16, 8], strides = [1, 1, 1]} : vector<18x18x8xbf16> to vector<16x16x8xbf16>
    %70 = vector.shape_cast %69 : vector<16x16x8xbf16> to vector<256x8xbf16>
    %71 = vector.extract_strided_slice %54 {offsets = [2, 2, 0], sizes = [16, 16, 8], strides = [1, 1, 1]} : vector<18x18x8xbf16> to vector<16x16x8xbf16>
    %72 = vector.shape_cast %71 : vector<16x16x8xbf16> to vector<256x8xbf16>
    %73 = tpu.concatenate %56, %58, %60, %62, %64, %66, %68, %70, %72 in 1 : vector<256x8xbf16>, vector<256x8xbf16>, vector<256x8xbf16>, vector<256x8xbf16>, vector<256x8xbf16>, vector<256x8xbf16>, vector<256x8xbf16>, vector<256x8xbf16>, vector<256x8xbf16> -> vector<256x72xbf16>
    %cst_25 = arith.constant dense<0.000000e+00> : vector<256x8xf32>
    %74 = tpu.matmul %73, %49, %cst_25 {dimension_numbers = #tpu.dot_dimension_numbers<[1], [0], [0], [1], [0, 0, 1, 1], [], []>} : vector<256x72xbf16>, vector<72x8xbf16>, vector<256x8xf32> -> vector<256x8xf32>
    %75 = vector.broadcast %50 : vector<1x8xf32> to vector<256x8xf32>
    %76 = arith.addf %74, %75 : vector<256x8xf32>
    %77 = vector.shape_cast %76 : vector<256x8xf32> to vector<16x16x8xf32>
    %cst_26 = arith.constant 0.000000e+00 : f32
    %78 = vector.broadcast %cst_26 : f32 to vector<16x16x8xf32>
    %79 = arith.cmpf ogt, %77, %78 : vector<16x16x8xf32>
    %cst_27 = arith.constant 0.00999999977 : f32
    %80 = vector.broadcast %cst_27 : f32 to vector<16x16x8xf32>
    %81 = arith.mulf %80, %77 : vector<16x16x8xf32>
    %82 = arith.select %79, %77, %81 : vector<16x16x8xi1>, vector<16x16x8xf32>
    %83 = arith.truncf %82 : vector<16x16x8xf32> to vector<16x16x8xbf16>
    %c0_28 = arith.constant 0 : index
    %c0_29 = arith.constant 0 : index
    %84 = vector.load %arg9[%c0_28, %c0_29] : memref<4x8xbf16, #tpu.memory_space<vmem>>, vector<4x8xbf16>
    %cst_30 = arith.constant dense<0.000000e+00> : vector<256x8xf32>
    %85 = tpu.matmul %37, %84, %cst_30 {dimension_numbers = #tpu.dot_dimension_numbers<[1], [0], [0], [1], [0, 0, 1, 1], [], []>} : vector<256x4xbf16>, vector<4x8xbf16>, vector<256x8xf32> -> vector<256x8xf32>
    %c0_31 = arith.constant 0 : index
    %c0_32 = arith.constant 0 : index
    %86 = vector.load %arg10[%c0_31, %c0_32] : memref<8x8xbf16, #tpu.memory_space<vmem>>, vector<8x8xbf16>
    %cst_33 = arith.constant dense<0.000000e+00> : vector<256x8xf32>
    %87 = tpu.matmul %38, %86, %cst_33 {dimension_numbers = #tpu.dot_dimension_numbers<[1], [0], [0], [1], [0, 0, 1, 1], [], []>} : vector<256x8xbf16>, vector<8x8xbf16>, vector<256x8xf32> -> vector<256x8xf32>
    %88 = arith.addf %85, %87 : vector<256x8xf32>
    %89 = vector.shape_cast %83 : vector<16x16x8xbf16> to vector<256x8xbf16>
    %c0_34 = arith.constant 0 : index
    %c0_35 = arith.constant 0 : index
    %90 = vector.load %arg11[%c0_34, %c0_35] : memref<8x8xbf16, #tpu.memory_space<vmem>>, vector<8x8xbf16>
    %cst_36 = arith.constant dense<0.000000e+00> : vector<256x8xf32>
    %91 = tpu.matmul %89, %90, %cst_36 {dimension_numbers = #tpu.dot_dimension_numbers<[1], [0], [0], [1], [0, 0, 1, 1], [], []>} : vector<256x8xbf16>, vector<8x8xbf16>, vector<256x8xf32> -> vector<256x8xf32>
    %92 = arith.addf %88, %91 : vector<256x8xf32>
    %c0_37 = arith.constant 0 : index
    %c0_38 = arith.constant 0 : index
    %93 = vector.load %arg12[%c0_37, %c0_38] : memref<1x8xf32, #tpu.memory_space<vmem>>, vector<1x8xf32>
    %94 = vector.broadcast %93 : vector<1x8xf32> to vector<256x8xf32>
    %95 = arith.addf %92, %94 : vector<256x8xf32>
    %96 = vector.shape_cast %95 : vector<256x8xf32> to vector<16x16x8xf32>
    %97 = arith.truncf %96 : vector<16x16x8xf32> to vector<16x16x8xbf16>
    %c0_39 = arith.constant 0 : index
    %c0_40 = arith.constant 0 : index
    %98 = vector.load %arg13[%c0_39, %c0_40] : memref<72x8xbf16, #tpu.memory_space<vmem>>, vector<72x8xbf16>
    %c0_41 = arith.constant 0 : index
    %c0_42 = arith.constant 0 : index
    %99 = vector.load %arg14[%c0_41, %c0_42] : memref<1x8xf32, #tpu.memory_space<vmem>>, vector<1x8xf32>
    %cst_43 = arith.constant 0.000000e+00 : bf16
    %100 = vector.broadcast %cst_43 : bf16 to vector<1x16x8xbf16>
    %101 = tpu.concatenate %100, %97, %100 in 0 : vector<1x16x8xbf16>, vector<16x16x8xbf16>, vector<1x16x8xbf16> -> vector<18x16x8xbf16>
    %cst_44 = arith.constant 0.000000e+00 : bf16
    %102 = vector.broadcast %cst_44 : bf16 to vector<18x1x8xbf16>
    %103 = tpu.concatenate %102, %101, %102 in 1 : vector<18x1x8xbf16>, vector<18x16x8xbf16>, vector<18x1x8xbf16> -> vector<18x18x8xbf16>
    %104 = vector.extract_strided_slice %103 {offsets = [0, 0, 0], sizes = [16, 16, 8], strides = [1, 1, 1]} : vector<18x18x8xbf16> to vector<16x16x8xbf16>
    %105 = vector.shape_cast %104 : vector<16x16x8xbf16> to vector<256x8xbf16>
    %106 = vector.extract_strided_slice %103 {offsets = [0, 1, 0], sizes = [16, 16, 8], strides = [1, 1, 1]} : vector<18x18x8xbf16> to vector<16x16x8xbf16>
    %107 = vector.shape_cast %106 : vector<16x16x8xbf16> to vector<256x8xbf16>
    %108 = vector.extract_strided_slice %103 {offsets = [0, 2, 0], sizes = [16, 16, 8], strides = [1, 1, 1]} : vector<18x18x8xbf16> to vector<16x16x8xbf16>
    %109 = vector.shape_cast %108 : vector<16x16x8xbf16> to vector<256x8xbf16>
    %110 = vector.extract_strided_slice %103 {offsets = [1, 0, 0], sizes = [16, 16, 8], strides = [1, 1, 1]} : vector<18x18x8xbf16> to vector<16x16x8xbf16>
    %111 = vector.shape_cast %110 : vector<16x16x8xbf16> to vector<256x8xbf16>
    %112 = vector.extract_strided_slice %103 {offsets = [1, 1, 0], sizes = [16, 16, 8], strides = [1, 1, 1]} : vector<18x18x8xbf16> to vector<16x16x8xbf16>
    %113 = vector.shape_cast %112 : vector<16x16x8xbf16> to vector<256x8xbf16>
    %114 = vector.extract_strided_slice %103 {offsets = [1, 2, 0], sizes = [16, 16, 8], strides = [1, 1, 1]} : vector<18x18x8xbf16> to vector<16x16x8xbf16>
    %115 = vector.shape_cast %114 : vector<16x16x8xbf16> to vector<256x8xbf16>
    %116 = vector.extract_strided_slice %103 {offsets = [2, 0, 0], sizes = [16, 16, 8], strides = [1, 1, 1]} : vector<18x18x8xbf16> to vector<16x16x8xbf16>
    %117 = vector.shape_cast %116 : vector<16x16x8xbf16> to vector<256x8xbf16>
    %118 = vector.extract_strided_slice %103 {offsets = [2, 1, 0], sizes = [16, 16, 8], strides = [1, 1, 1]} : vector<18x18x8xbf16> to vector<16x16x8xbf16>
    %119 = vector.shape_cast %118 : vector<16x16x8xbf16> to vector<256x8xbf16>
    %120 = vector.extract_strided_slice %103 {offsets = [2, 2, 0], sizes = [16, 16, 8], strides = [1, 1, 1]} : vector<18x18x8xbf16> to vector<16x16x8xbf16>
    %121 = vector.shape_cast %120 : vector<16x16x8xbf16> to vector<256x8xbf16>
    %122 = tpu.concatenate %105, %107, %109, %111, %113, %115, %117, %119, %121 in 1 : vector<256x8xbf16>, vector<256x8xbf16>, vector<256x8xbf16>, vector<256x8xbf16>, vector<256x8xbf16>, vector<256x8xbf16>, vector<256x8xbf16>, vector<256x8xbf16>, vector<256x8xbf16> -> vector<256x72xbf16>
    %cst_45 = arith.constant dense<0.000000e+00> : vector<256x8xf32>
    %123 = tpu.matmul %122, %98, %cst_45 {dimension_numbers = #tpu.dot_dimension_numbers<[1], [0], [0], [1], [0, 0, 1, 1], [], []>} : vector<256x72xbf16>, vector<72x8xbf16>, vector<256x8xf32> -> vector<256x8xf32>
    %124 = vector.broadcast %99 : vector<1x8xf32> to vector<256x8xf32>
    %125 = arith.addf %123, %124 : vector<256x8xf32>
    %126 = vector.shape_cast %125 : vector<256x8xf32> to vector<16x16x8xf32>
    %cst_46 = arith.constant 0.000000e+00 : f32
    %127 = vector.broadcast %cst_46 : f32 to vector<16x16x8xf32>
    %128 = arith.cmpf ogt, %126, %127 : vector<16x16x8xf32>
    %cst_47 = arith.constant 0.00999999977 : f32
    %129 = vector.broadcast %cst_47 : f32 to vector<16x16x8xf32>
    %130 = arith.mulf %129, %126 : vector<16x16x8xf32>
    %131 = arith.select %128, %126, %130 : vector<16x16x8xi1>, vector<16x16x8xf32>
    %132 = vector.shape_cast %131 : vector<16x16x8xf32> to vector<16x128xf32>
    %c0_48 = arith.constant 0 : index
    %c0_49 = arith.constant 0 : index
    %c0_50 = arith.constant 0 : index
    %133 = vector.load %arg15[%c0_48, %c0_49, %c0_50] : memref<1x16x128xf32, #tpu.memory_space<vmem>>, vector<1x16x128xf32>
    %134 = vector.shape_cast %133 : vector<1x16x128xf32> to vector<16x128xf32>
    %135 = vector.shape_cast %132 : vector<16x128xf32> to vector<1x16x128xf32>
    tpu.vector_store %arg15[%c0_48, %c0_49, %c0_50], %135 {strides = array<i32>} : memref<1x16x128xf32, #tpu.memory_space<vmem>>, vector<1x16x128xf32>,
    %136 = vector.shape_cast %131 : vector<16x16x8xf32> to vector<256x8xf32>
    %cst_51 = arith.constant dense<0.000000e+00> : vector<8xf32>
    %137 = vector.multi_reduction <add>, %136, %cst_51 [0] : vector<256x8xf32> to vector<8xf32>
    %138 = vector.shape_cast %137 : vector<8xf32> to vector<1x8xf32>
    %c0_52 = arith.constant 0 : index
    %c0_53 = arith.constant 0 : index
    %c0_54 = arith.constant 0 : index
    %139 = vector.load %arg16[%c0_52, %c0_53, %c0_54] : memref<1x2x8xf32, #tpu.memory_space<vmem>>, vector<1x1x8xf32>
    %140 = vector.shape_cast %139 : vector<1x1x8xf32> to vector<1x8xf32>
    %141 = vector.shape_cast %138 : vector<1x8xf32> to vector<1x1x8xf32>
    tpu.vector_store %arg16[%c0_52, %c0_53, %c0_54], %141 {strides = array<i32>} : memref<1x2x8xf32, #tpu.memory_space<vmem>>, vector<1x1x8xf32>,
    %142 = arith.mulf %136, %136 : vector<256x8xf32>
    %cst_55 = arith.constant dense<0.000000e+00> : vector<8xf32>
    %143 = vector.multi_reduction <add>, %142, %cst_55 [0] : vector<256x8xf32> to vector<8xf32>
    %144 = vector.shape_cast %143 : vector<8xf32> to vector<1x8xf32>
    %c0_56 = arith.constant 0 : index
    %c1 = arith.constant 1 : index
    %c0_57 = arith.constant 0 : index
    %145 = vector.load %arg16[%c0_56, %c1, %c0_57] : memref<1x2x8xf32, #tpu.memory_space<vmem>>, vector<1x1x8xf32>
    %146 = vector.shape_cast %145 : vector<1x1x8xf32> to vector<1x8xf32>
    %147 = vector.shape_cast %144 : vector<1x8xf32> to vector<1x1x8xf32>
    tpu.vector_store %arg16[%c0_56, %c1, %c0_57], %147 {strides = array<i32>} : memref<1x2x8xf32, #tpu.memory_space<vmem>>, vector<1x1x8xf32>,
    return
  }
  func.func @transform_0(%arg0: i32) -> (i32, i32, i32, i32) {
    %c0_i32 = arith.constant 0 : i32
    %c0_i32_0 = arith.constant 0 : i32
    %c0_i32_1 = arith.constant 0 : i32
    %c0_i32_2 = arith.constant 0 : i32
    return %arg0, %c0_i32, %c0_i32_0, %c0_i32_1 : i32, i32, i32, i32
  }
  func.func @transform_1(%arg0: i32) -> (i32, i32) {
    %c0_i32 = arith.constant 0 : i32
    %c0_i32_0 = arith.constant 0 : i32
    %c0_i32_1 = arith.constant 0 : i32
    return %c0_i32, %c0_i32_0 : i32, i32
  }
  func.func @transform_2(%arg0: i32) -> (i32, i32) {
    %c0_i32 = arith.constant 0 : i32
    %c0_i32_0 = arith.constant 0 : i32
    %c0_i32_1 = arith.constant 0 : i32
    return %c0_i32, %c0_i32_0 : i32, i32
  }
  func.func @transform_3(%arg0: i32) -> (i32, i32) {
    %c0_i32 = arith.constant 0 : i32
    %c0_i32_0 = arith.constant 0 : i32
    %c0_i32_1 = arith.constant 0 : i32
    return %c0_i32, %c0_i32_0 : i32, i32
  }
  func.func @transform_4(%arg0: i32) -> (i32, i32) {
    %c0_i32 = arith.constant 0 : i32
    %c0_i32_0 = arith.constant 0 : i32
    %c0_i32_1 = arith.constant 0 : i32
    return %c0_i32, %c0_i32_0 : i32, i32
  }
  func.func @transform_5(%arg0: i32) -> (i32, i32) {
    %c0_i32 = arith.constant 0 : i32
    %c0_i32_0 = arith.constant 0 : i32
    %c0_i32_1 = arith.constant 0 : i32
    return %c0_i32, %c0_i32_0 : i32, i32
  }
  func.func @transform_6(%arg0: i32) -> (i32, i32) {
    %c0_i32 = arith.constant 0 : i32
    %c0_i32_0 = arith.constant 0 : i32
    %c0_i32_1 = arith.constant 0 : i32
    return %c0_i32, %c0_i32_0 : i32, i32
  }
  func.func @transform_7(%arg0: i32) -> (i32, i32) {
    %c0_i32 = arith.constant 0 : i32
    %c0_i32_0 = arith.constant 0 : i32
    %c0_i32_1 = arith.constant 0 : i32
    return %c0_i32, %c0_i32_0 : i32, i32
  }
  func.func @transform_8(%arg0: i32) -> (i32, i32) {
    %c0_i32 = arith.constant 0 : i32
    %c0_i32_0 = arith.constant 0 : i32
    %c0_i32_1 = arith.constant 0 : i32
    return %c0_i32, %c0_i32_0 : i32, i32
  }
  func.func @transform_9(%arg0: i32) -> (i32, i32) {
    %c0_i32 = arith.constant 0 : i32
    %c0_i32_0 = arith.constant 0 : i32
    %c0_i32_1 = arith.constant 0 : i32
    return %c0_i32, %c0_i32_0 : i32, i32
  }
  func.func @transform_10(%arg0: i32) -> (i32, i32) {
    %c0_i32 = arith.constant 0 : i32
    %c0_i32_0 = arith.constant 0 : i32
    %c0_i32_1 = arith.constant 0 : i32
    return %c0_i32, %c0_i32_0 : i32, i32
  }
  func.func @transform_11(%arg0: i32) -> (i32, i32) {
    %c0_i32 = arith.constant 0 : i32
    %c0_i32_0 = arith.constant 0 : i32
    %c0_i32_1 = arith.constant 0 : i32
    return %c0_i32, %c0_i32_0 : i32, i32
  }
  func.func @transform_12(%arg0: i32) -> (i32, i32) {
    %c0_i32 = arith.constant 0 : i32
    %c0_i32_0 = arith.constant 0 : i32
    %c0_i32_1 = arith.constant 0 : i32
    return %c0_i32, %c0_i32_0 : i32, i32
  }
  func.func @transform_13(%arg0: i32) -> (i32, i32) {
    %c0_i32 = arith.constant 0 : i32
    %c0_i32_0 = arith.constant 0 : i32
    %c0_i32_1 = arith.constant 0 : i32
    return %c0_i32, %c0_i32_0 : i32, i32
  }
  func.func @transform_14(%arg0: i32) -> (i32, i32, i32) {
    %c0_i32 = arith.constant 0 : i32
    %c0_i32_0 = arith.constant 0 : i32
    %c0_i32_1 = arith.constant 0 : i32
    return %arg0, %c0_i32, %c0_i32_0 : i32, i32, i32
  }
  func.func @transform_15(%arg0: i32) -> (i32, i32, i32) {
    %c0_i32 = arith.constant 0 : i32
    %c0_i32_0 = arith.constant 0 : i32
    %c0_i32_1 = arith.constant 0 : i32
    return %arg0, %c0_i32, %c0_i32_0 : i32, i32, i32
  }
}

</mosaic_0001>

<llo_original>
// kernel: dense_down_block.1
$region0: #{dense_down_block.1}
  #allocation0 [shape = 'u32[]', space=smem, size = 0x4, offset = 0x4, fixed_abs, tag = 'smem constant byte address 0x4 - core index']
  #allocation1 [shape = 'u32[144,128]{1,0:T(1,128)}', space=vmem, size = 0x12000, scoped, tag = 'internal scratch']
  %s0 = inlined_call_operand.vmem [shape: bf16[2,16,16,4], index: 0, kind: input, shape index: {}]
  %s1 = inlined_call_operand.vmem [shape: bf16[36,8], index: 1, kind: input, shape index: {}]
  %s2 = inlined_call_operand.vmem [shape: f32[1,8], index: 2, kind: input, shape index: {}]
  %s3 = inlined_call_operand.vmem [shape: bf16[4,8], index: 3, kind: input, shape index: {}]
  %s4 = inlined_call_operand.vmem [shape: bf16[8,8], index: 4, kind: input, shape index: {}]
  %s5 = inlined_call_operand.vmem [shape: f32[1,8], index: 5, kind: input, shape index: {}]
  %s6 = inlined_call_operand.vmem [shape: bf16[72,8], index: 6, kind: input, shape index: {}]
  %s7 = inlined_call_operand.vmem [shape: f32[1,8], index: 7, kind: input, shape index: {}]
  %s8 = inlined_call_operand.vmem [shape: bf16[4,8], index: 8, kind: input, shape index: {}]
  %s9 = inlined_call_operand.vmem [shape: bf16[8,8], index: 9, kind: input, shape index: {}]
  %s10 = inlined_call_operand.vmem [shape: bf16[8,8], index: 10, kind: input, shape index: {}]
  %s11 = inlined_call_operand.vmem [shape: f32[1,8], index: 11, kind: input, shape index: {}]
  %s12 = inlined_call_operand.vmem [shape: bf16[72,8], index: 12, kind: input, shape index: {}]
  %s13 = inlined_call_operand.vmem [shape: f32[1,8], index: 13, kind: input, shape index: {}]
  %s14 = inlined_call_operand.vmem [shape: f32[2,16,128], index: 14, kind: output, shape index: {0}]
  %s15 = inlined_call_operand.vmem [shape: f32[2,2,8], index: 15, kind: output, shape index: {1}]
  %16 = xla_tuple %s14, %s15
  %s17 = sld [smem:[#allocation0]]
  $region97: #{dense_down_block.1} parent=0
    _
  %s19 = ssub.s32 1, %s17
  %s20 = scalar_select 0, %s19, %s17
  loop: start=0, step=1, limit=4
  $region2: #{dense_down_block.1} parent=0 // loop_pre_header
    _
  $region3: #{dense_down_block.1} parent=0 // loop_header
    %s22 = sphi 0, %s26
    %p23 = scmp.ge.s32.totalorder %s22, 4
    %s32 = sphi 0, %s34
    %s35 = sphi 0, %s32
    %s36 = sphi 0, %s35
    %s52 = sphi 0, %s36
    %s56 = sphi 0, %s56
    %s58 = sphi 0, %s56
    %s59 = sphi 0, %s58
    %s73 = sphi 0, %s59
    %s77 = sphi 0, %s77
    %s79 = sphi 0, %s77
    %s80 = sphi 0, %s79
    %s94 = sphi 0, %s80
    %s98 = sphi 0, %s98
    %s100 = sphi 0, %s98
    %s101 = sphi 0, %s100
    %s115 = sphi 0, %s101
    %s119 = sphi 0, %s119
    %s121 = sphi 0, %s119
    %s122 = sphi 0, %s121
    %s136 = sphi 0, %s122
    %s140 = sphi 0, %s140
    %s142 = sphi 0, %s140
    %s143 = sphi 0, %s142
    %s157 = sphi 0, %s143
    %s161 = sphi 0, %s161
    %s163 = sphi 0, %s161
    %s164 = sphi 0, %s163
    %s178 = sphi 0, %s164
    %s182 = sphi 0, %s182
    %s184 = sphi 0, %s182
    %s185 = sphi 0, %s184
    %s199 = sphi 0, %s185
    %s203 = sphi 0, %s203
    %s205 = sphi 0, %s203
    %s206 = sphi 0, %s205
    %s220 = sphi 0, %s206
    %s224 = sphi 0, %s224
    %s226 = sphi 0, %s224
    %s227 = sphi 0, %s226
    %s241 = sphi 0, %s227
    %s245 = sphi 0, %s245
    %s247 = sphi 0, %s245
    %s248 = sphi 0, %s247
    %s262 = sphi 0, %s248
    %s266 = sphi 0, %s266
    %s268 = sphi 0, %s266
    %s269 = sphi 0, %s268
    %s283 = sphi 0, %s269
    %s287 = sphi 0, %s287
    %s289 = sphi 0, %s287
    %s290 = sphi 0, %s289
    %s304 = sphi 0, %s290
    %s308 = sphi 0, %s308
    %s310 = sphi 0, %s308
    %s311 = sphi 0, %s310
    %s325 = sphi 0, %s311
    %s331 = sphi 0, %s333
    %s334 = sphi 0, %s331
    %s335 = sphi 0, %s334
    %s351 = sphi 0, %s335
    %s357 = sphi 0, %s359
    %s360 = sphi 0, %s357
    %s361 = sphi 0, %s360
    %s377 = sphi 0, %s361
  $region4: #{dense_down_block.1} parent=0 // loop_header_branch
    %25 = sbr.rel (%p23) target = $region8
  $region5: #{dense_down_block.1} parent=0 // loop_body
    %s27 = ssub.s32 %s22, 1
    %s28 = ssub.s32 %s22, 2
    %s29 = sadd.s32 %s22, 1
    %s30 = ssub.s32 %s22, %s29
    %p31 = scmp.eq.s32.totalorder %s30, 0
    %s33 = sadd.s32 %s32, 1
    %s34 = scalar_select %p31, %s32, %s33
    %p37 = pneg %p31
    %p38 = scmp.eq.s32.totalorder %s22, 1
    %p39 = por %p37, %p38
    %p40 = scmp.ne.s32.totalorder %s32, %s35
    %p41 = scmp.eq.s32.totalorder %s22, 0
    %p42 = por %p40, %p41
    %p43 = scmp.ne.s32.totalorder %s32, %s35
    %p44 = scmp.eq.s32.totalorder %s27, 1
    %p45 = por %p43, %p44
    %p46 = scmp.ne.s32.totalorder %s35, %s36
    %p47 = scmp.eq.s32.totalorder %s27, 0
    %p48 = por %p46, %p47
    %p49 = scmp.ne.s32.totalorder %s35, %s36
    %p50 = scmp.eq.s32.totalorder %s28, 1
    %p51 = por %p49, %p50
    %p53 = scmp.ne.s32.totalorder %s36, %s52
    %p54 = scmp.eq.s32.totalorder %s28, 0
    %p55 = por %p53, %p54
    %s57 = sadd.s32 %s56, 1
    %p60 = scmp.eq.s32.totalorder %s22, 1
    %p61 = scmp.ne.s32.totalorder %s56, %s58
    %p62 = scmp.eq.s32.totalorder %s22, 0
    %p63 = por %p61, %p62
    %p64 = scmp.ne.s32.totalorder %s56, %s58
    %p65 = scmp.eq.s32.totalorder %s27, 1
    %p66 = por %p64, %p65
    %p67 = scmp.ne.s32.totalorder %s58, %s59
    %p68 = scmp.eq.s32.totalorder %s27, 0
    %p69 = por %p67, %p68
    %p70 = scmp.ne.s32.totalorder %s58, %s59
    %p71 = scmp.eq.s32.totalorder %s28, 1
    %p72 = por %p70, %p71
    %p74 = scmp.ne.s32.totalorder %s59, %s73
    %p75 = scmp.eq.s32.totalorder %s28, 0
    %p76 = por %p74, %p75
    %s78 = sadd.s32 %s77, 1
    %p81 = scmp.eq.s32.totalorder %s22, 1
    %p82 = scmp.ne.s32.totalorder %s77, %s79
    %p83 = scmp.eq.s32.totalorder %s22, 0
    %p84 = por %p82, %p83
    %p85 = scmp.ne.s32.totalorder %s77, %s79
    %p86 = scmp.eq.s32.totalorder %s27, 1
    %p87 = por %p85, %p86
    %p88 = scmp.ne.s32.totalorder %s79, %s80
    %p89 = scmp.eq.s32.totalorder %s27, 0
    %p90 = por %p88, %p89
    %p91 = scmp.ne.s32.totalorder %s79, %s80
    %p92 = scmp.eq.s32.totalorder %s28, 1
    %p93 = por %p91, %p92
    %p95 = scmp.ne.s32.totalorder %s80, %s94
    %p96 = scmp.eq.s32.totalorder %s28, 0
    %p97 = por %p95, %p96
    %s99 = sadd.s32 %s98, 1
    %p102 = scmp.eq.s32.totalorder %s22, 1
    %p103 = scmp.ne.s32.totalorder %s98, %s100
    %p104 = scmp.eq.s32.totalorder %s22, 0
    %p105 = por %p103, %p104
    %p106 = scmp.ne.s32.totalorder %s98, %s100
    %p107 = scmp.eq.s32.totalorder %s27, 1
    %p108 = por %p106, %p107
    %p109 = scmp.ne.s32.totalorder %s100, %s101
    %p110 = scmp.eq.s32.totalorder %s27, 0
    %p111 = por %p109, %p110
    %p112 = scmp.ne.s32.totalorder %s100, %s101
    %p113 = scmp.eq.s32.totalorder %s28, 1
    %p114 = por %p112, %p113
    %p116 = scmp.ne.s32.totalorder %s101, %s115
    %p117 = scmp.eq.s32.totalorder %s28, 0
    %p118 = por %p116, %p117
    %s120 = sadd.s32 %s119, 1
    %p123 = scmp.eq.s32.totalorder %s22, 1
    %p124 = scmp.ne.s32.totalorder %s119, %s121
    %p125 = scmp.eq.s32.totalorder %s22, 0
    %p126 = por %p124, %p125
    %p127 = scmp.ne.s32.totalorder %s119, %s121
    %p128 = scmp.eq.s32.totalorder %s27, 1
    %p129 = por %p127, %p128
    %p130 = scmp.ne.s32.totalorder %s121, %s122
    %p131 = scmp.eq.s32.totalorder %s27, 0
    %p132 = por %p130, %p131
    %p133 = scmp.ne.s32.totalorder %s121, %s122
    %p134 = scmp.eq.s32.totalorder %s28, 1
    %p135 = por %p133, %p134
    %p137 = scmp.ne.s32.totalorder %s122, %s136
    %p138 = scmp.eq.s32.totalorder %s28, 0
    %p139 = por %p137, %p138
    %s141 = sadd.s32 %s140, 1
    %p144 = scmp.eq.s32.totalorder %s22, 1
    %p145 = scmp.ne.s32.totalorder %s140, %s142
    %p146 = scmp.eq.s32.totalorder %s22, 0
    %p147 = por %p145, %p146
    %p148 = scmp.ne.s32.totalorder %s140, %s142
    %p149 = scmp.eq.s32.totalorder %s27, 1
    %p150 = por %p148, %p149
    %p151 = scmp.ne.s32.totalorder %s142, %s143
    %p152 = scmp.eq.s32.totalorder %s27, 0
    %p153 = por %p151, %p152
    %p154 = scmp.ne.s32.totalorder %s142, %s143
    %p155 = scmp.eq.s32.totalorder %s28, 1
    %p156 = por %p154, %p155
    %p158 = scmp.ne.s32.totalorder %s143, %s157
    %p159 = scmp.eq.s32.totalorder %s28, 0
    %p160 = por %p158, %p159
    %s162 = sadd.s32 %s161, 1
    %p165 = scmp.eq.s32.totalorder %s22, 1
    %p166 = scmp.ne.s32.totalorder %s161, %s163
    %p167 = scmp.eq.s32.totalorder %s22, 0
    %p168 = por %p166, %p167
    %p169 = scmp.ne.s32.totalorder %s161, %s163
    %p170 = scmp.eq.s32.totalorder %s27, 1
    %p171 = por %p169, %p170
    %p172 = scmp.ne.s32.totalorder %s163, %s164
    %p173 = scmp.eq.s32.totalorder %s27, 0
    %p174 = por %p172, %p173
    %p175 = scmp.ne.s32.totalorder %s163, %s164
    %p176 = scmp.eq.s32.totalorder %s28, 1
    %p177 = por %p175, %p176
    %p179 = scmp.ne.s32.totalorder %s164, %s178
    %p180 = scmp.eq.s32.totalorder %s28, 0
    %p181 = por %p179, %p180
    %s183 = sadd.s32 %s182, 1
    %p186 = scmp.eq.s32.totalorder %s22, 1
    %p187 = scmp.ne.s32.totalorder %s182, %s184
    %p188 = scmp.eq.s32.totalorder %s22, 0
    %p189 = por %p187, %p188
    %p190 = scmp.ne.s32.totalorder %s182, %s184
    %p191 = scmp.eq.s32.totalorder %s27, 1
    %p192 = por %p190, %p191
    %p193 = scmp.ne.s32.totalorder %s184, %s185
    %p194 = scmp.eq.s32.totalorder %s27, 0
    %p195 = por %p193, %p194
    %p196 = scmp.ne.s32.totalorder %s184, %s185
    %p197 = scmp.eq.s32.totalorder %s28, 1
    %p198 = por %p196, %p197
    %p200 = scmp.ne.s32.totalorder %s185, %s199
    %p201 = scmp.eq.s32.totalorder %s28, 0
    %p202 = por %p200, %p201
    %s204 = sadd.s32 %s203, 1
    %p207 = scmp.eq.s32.totalorder %s22, 1
    %p208 = scmp.ne.s32.totalorder %s203, %s205
    %p209 = scmp.eq.s32.totalorder %s22, 0
    %p210 = por %p208, %p209
    %p211 = scmp.ne.s32.totalorder %s203, %s205
    %p212 = scmp.eq.s32.totalorder %s27, 1
    %p213 = por %p211, %p212
    %p214 = scmp.ne.s32.totalorder %s205, %s206
    %p215 = scmp.eq.s32.totalorder %s27, 0
    %p216 = por %p214, %p215
    %p217 = scmp.ne.s32.totalorder %s205, %s206
    %p218 = scmp.eq.s32.totalorder %s28, 1
    %p219 = por %p217, %p218
    %p221 = scmp.ne.s32.totalorder %s206, %s220
    %p222 = scmp.eq.s32.totalorder %s28, 0
    %p223 = por %p221, %p222
    %s225 = sadd.s32 %s224, 1
    %p228 = scmp.eq.s32.totalorder %s22, 1
    %p229 = scmp.ne.s32.totalorder %s224, %s226
    %p230 = scmp.eq.s32.totalorder %s22, 0
    %p231 = por %p229, %p230
    %p232 = scmp.ne.s32.totalorder %s224, %s226
    %p233 = scmp.eq.s32.totalorder %s27, 1
    %p234 = por %p232, %p233
    %p235 = scmp.ne.s32.totalorder %s226, %s227
    %p236 = scmp.eq.s32.totalorder %s27, 0
    %p237 = por %p235, %p236
    %p238 = scmp.ne.s32.totalorder %s226, %s227
    %p239 = scmp.eq.s32.totalorder %s28, 1
    %p240 = por %p238, %p239
    %p242 = scmp.ne.s32.totalorder %s227, %s241
    %p243 = scmp.eq.s32.totalorder %s28, 0
    %p244 = por %p242, %p243
    %s246 = sadd.s32 %s245, 1
    %p249 = scmp.eq.s32.totalorder %s22, 1
    %p250 = scmp.ne.s32.totalorder %s245, %s247
    %p251 = scmp.eq.s32.totalorder %s22, 0
    %p252 = por %p250, %p251
    %p253 = scmp.ne.s32.totalorder %s245, %s247
    %p254 = scmp.eq.s32.totalorder %s27, 1
    %p255 = por %p253, %p254
    %p256 = scmp.ne.s32.totalorder %s247, %s248
    %p257 = scmp.eq.s32.totalorder %s27, 0
    %p258 = por %p256, %p257
    %p259 = scmp.ne.s32.totalorder %s247, %s248
    %p260 = scmp.eq.s32.totalorder %s28, 1
    %p261 = por %p259, %p260
    %p263 = scmp.ne.s32.totalorder %s248, %s262
    %p264 = scmp.eq.s32.totalorder %s28, 0
    %p265 = por %p263, %p264
    %s267 = sadd.s32 %s266, 1
    %p270 = scmp.eq.s32.totalorder %s22, 1
    %p271 = scmp.ne.s32.totalorder %s266, %s268
    %p272 = scmp.eq.s32.totalorder %s22, 0
    %p273 = por %p271, %p272
    %p274 = scmp.ne.s32.totalorder %s266, %s268
    %p275 = scmp.eq.s32.totalorder %s27, 1
    %p276 = por %p274, %p275
    %p277 = scmp.ne.s32.totalorder %s268, %s269
    %p278 = scmp.eq.s32.totalorder %s27, 0
    %p279 = por %p277, %p278
    %p280 = scmp.ne.s32.totalorder %s268, %s269
    %p281 = scmp.eq.s32.totalorder %s28, 1
    %p282 = por %p280, %p281
    %p284 = scmp.ne.s32.totalorder %s269, %s283
    %p285 = scmp.eq.s32.totalorder %s28, 0
    %p286 = por %p284, %p285
    %s288 = sadd.s32 %s287, 1
    %p291 = scmp.eq.s32.totalorder %s22, 1
    %p292 = scmp.ne.s32.totalorder %s287, %s289
    %p293 = scmp.eq.s32.totalorder %s22, 0
    %p294 = por %p292, %p293
    %p295 = scmp.ne.s32.totalorder %s287, %s289
    %p296 = scmp.eq.s32.totalorder %s27, 1
    %p297 = por %p295, %p296
    %p298 = scmp.ne.s32.totalorder %s289, %s290
    %p299 = scmp.eq.s32.totalorder %s27, 0
    %p300 = por %p298, %p299
    %p301 = scmp.ne.s32.totalorder %s289, %s290
    %p302 = scmp.eq.s32.totalorder %s28, 1
    %p303 = por %p301, %p302
    %p305 = scmp.ne.s32.totalorder %s290, %s304
    %p306 = scmp.eq.s32.totalorder %s28, 0
    %p307 = por %p305, %p306
    %s309 = sadd.s32 %s308, 1
    %p312 = scmp.eq.s32.totalorder %s22, 1
    %p313 = scmp.ne.s32.totalorder %s308, %s310
    %p314 = scmp.eq.s32.totalorder %s22, 0
    %p315 = por %p313, %p314
    %p316 = scmp.ne.s32.totalorder %s308, %s310
    %p317 = scmp.eq.s32.totalorder %s27, 1
    %p318 = por %p316, %p317
    %p319 = scmp.ne.s32.totalorder %s310, %s311
    %p320 = scmp.eq.s32.totalorder %s27, 0
    %p321 = por %p319, %p320
    %p322 = scmp.ne.s32.totalorder %s310, %s311
    %p323 = scmp.eq.s32.totalorder %s28, 1
    %p324 = por %p322, %p323
    %p326 = scmp.ne.s32.totalorder %s311, %s325
    %p327 = scmp.eq.s32.totalorder %s28, 0
    %p328 = por %p326, %p327
    %s329 = ssub.s32 %s22, %s29
    %p330 = scmp.eq.s32.totalorder %s329, 0
    %s332 = sadd.s32 %s331, 1
    %s333 = scalar_select %p330, %s331, %s332
    %p336 = pneg %p330
    %p337 = scmp.eq.s32.totalorder %s22, 1
    %p338 = por %p336, %p337
    %p339 = scmp.ne.s32.totalorder %s331, %s334
    %p340 = scmp.eq.s32.totalorder %s22, 0
    %p341 = por %p339, %p340
    %p342 = scmp.ne.s32.totalorder %s331, %s334
    %p343 = scmp.eq.s32.totalorder %s27, 1
    %p344 = por %p342, %p343
    %p345 = scmp.ne.s32.totalorder %s334, %s335
    %p346 = scmp.eq.s32.totalorder %s27, 0
    %p347 = por %p345, %p346
    %p348 = scmp.ne.s32.totalorder %s334, %s335
    %p349 = scmp.eq.s32.totalorder %s28, 1
    %p350 = por %p348, %p349
    %p352 = scmp.ne.s32.totalorder %s335, %s351
    %p353 = scmp.eq.s32.totalorder %s28, 0
    %p354 = por %p352, %p353
    %s355 = ssub.s32 %s22, %s29
    %p356 = scmp.eq.s32.totalorder %s355, 0
    %s358 = sadd.s32 %s357, 1
    %s359 = scalar_select %p356, %s357, %s358
    %p362 = pneg %p356
    %p363 = scmp.eq.s32.totalorder %s22, 1
    %p364 = por %p362, %p363
    %p365 = scmp.ne.s32.totalorder %s357, %s360
    %p366 = scmp.eq.s32.totalorder %s22, 0
    %p367 = por %p365, %p366
    %p368 = scmp.ne.s32.totalorder %s357, %s360
    %p369 = scmp.eq.s32.totalorder %s27, 1
    %p370 = por %p368, %p369
    %p371 = scmp.ne.s32.totalorder %s360, %s361
    %p372 = scmp.eq.s32.totalorder %s27, 0
    %p373 = por %p371, %p372
    %p374 = scmp.ne.s32.totalorder %s360, %s361
    %p375 = scmp.eq.s32.totalorder %s28, 1
    %p376 = por %p374, %p375
    %p378 = scmp.ne.s32.totalorder %s361, %s377
    %p379 = scmp.eq.s32.totalorder %s28, 0
    %p380 = por %p378, %p379
    %p381 = scmp.le.s32.totalorder 1, %s22
    %p382 = scmp.lt.s32.totalorder %s22, 3
    %p383 = pnand %p381, %p382
    %p384 = pneg %p383
    // Predicated region
    $region9: #{dense_down_block.1} parent=5 // pred_check
      _
    $region10: #{dense_down_block.1} parent=5 // pred_check_branch
      %386 = sbr.rel (%p383) target = $region12
    $region11: #{dense_down_block.1} parent=5 // pred_region
      %s387 = ssub.s32 %s22, 1
      // Predicated region
      $region13: #{dense_down_block.1} parent=11 // pred_check
        %p388 = pneg %p69
      $region14: #{dense_down_block.1} parent=11 // pred_check_branch
        %390 = sbr.rel (%p388) target = $region16
      $region15: #{dense_down_block.1} parent=11 // pred_region
        _
      $region16: #{dense_down_block.1} parent=11 // pred_fallthru
        _
      // Predicated region
      $region17: #{dense_down_block.1} parent=11 // pred_check
        %p391 = pneg %p90
      $region18: #{dense_down_block.1} parent=11 // pred_check_branch
        %393 = sbr.rel (%p391) target = $region20
      $region19: #{dense_down_block.1} parent=11 // pred_region
        _
      $region20: #{dense_down_block.1} parent=11 // pred_fallthru
        _
      // Predicated region
      $region21: #{dense_down_block.1} parent=11 // pred_check
        %p394 = pneg %p111
      $region22: #{dense_down_block.1} parent=11 // pred_check_branch
        %396 = sbr.rel (%p394) target = $region24
      $region23: #{dense_down_block.1} parent=11 // pred_region
        _
      $region24: #{dense_down_block.1} parent=11 // pred_fallthru
        _
      // Predicated region
      $region25: #{dense_down_block.1} parent=11 // pred_check
        %p397 = pneg %p132
      $region26: #{dense_down_block.1} parent=11 // pred_check_branch
        %399 = sbr.rel (%p397) target = $region28
      $region27: #{dense_down_block.1} parent=11 // pred_region
        _
      $region28: #{dense_down_block.1} parent=11 // pred_fallthru
        _
      // Predicated region
      $region29: #{dense_down_block.1} parent=11 // pred_check
        %p400 = pneg %p153
      $region30: #{dense_down_block.1} parent=11 // pred_check_branch
        %402 = sbr.rel (%p400) target = $region32
      $region31: #{dense_down_block.1} parent=11 // pred_region
        _
      $region32: #{dense_down_block.1} parent=11 // pred_fallthru
        _
      // Predicated region
      $region33: #{dense_down_block.1} parent=11 // pred_check
        %p403 = pneg %p174
      $region34: #{dense_down_block.1} parent=11 // pred_check_branch
        %405 = sbr.rel (%p403) target = $region36
      $region35: #{dense_down_block.1} parent=11 // pred_region
        _
      $region36: #{dense_down_block.1} parent=11 // pred_fallthru
        _
      // Predicated region
      $region37: #{dense_down_block.1} parent=11 // pred_check
        %p406 = pneg %p195
      $region38: #{dense_down_block.1} parent=11 // pred_check_branch
        %408 = sbr.rel (%p406) target = $region40
      $region39: #{dense_down_block.1} parent=11 // pred_region
        _
      $region40: #{dense_down_block.1} parent=11 // pred_fallthru
        _
      // Predicated region
      $region41: #{dense_down_block.1} parent=11 // pred_check
        %p409 = pneg %p216
      $region42: #{dense_down_block.1} parent=11 // pred_check_branch
        %411 = sbr.rel (%p409) target = $region44
      $region43: #{dense_down_block.1} parent=11 // pred_region
        _
      $region44: #{dense_down_block.1} parent=11 // pred_fallthru
        _
      // Predicated region
      $region45: #{dense_down_block.1} parent=11 // pred_check
        %p412 = pneg %p237
      $region46: #{dense_down_block.1} parent=11 // pred_check_branch
        %414 = sbr.rel (%p412) target = $region48
      $region47: #{dense_down_block.1} parent=11 // pred_region
        _
      $region48: #{dense_down_block.1} parent=11 // pred_fallthru
        _
      // Predicated region
      $region49: #{dense_down_block.1} parent=11 // pred_check
        %p415 = pneg %p258
      $region50: #{dense_down_block.1} parent=11 // pred_check_branch
        %417 = sbr.rel (%p415) target = $region52
      $region51: #{dense_down_block.1} parent=11 // pred_region
        _
      $region52: #{dense_down_block.1} parent=11 // pred_fallthru
        _
      // Predicated region
      $region53: #{dense_down_block.1} parent=11 // pred_check
        %p418 = pneg %p279
      $region54: #{dense_down_block.1} parent=11 // pred_check_branch
        %420 = sbr.rel (%p418) target = $region56
      $region55: #{dense_down_block.1} parent=11 // pred_region
        _
      $region56: #{dense_down_block.1} parent=11 // pred_fallthru
        _
      // Predicated region
      $region57: #{dense_down_block.1} parent=11 // pred_check
        %p421 = pneg %p300
      $region58: #{dense_down_block.1} parent=11 // pred_check_branch
        %423 = sbr.rel (%p421) target = $region60
      $region59: #{dense_down_block.1} parent=11 // pred_region
        _
      $region60: #{dense_down_block.1} parent=11 // pred_fallthru
        _
      // Predicated region
      $region61: #{dense_down_block.1} parent=11 // pred_check
        %p424 = pneg %p321
      $region62: #{dense_down_block.1} parent=11 // pred_check_branch
        %426 = sbr.rel (%p424) target = $region64
      $region63: #{dense_down_block.1} parent=11 // pred_region
        _
      $region64: #{dense_down_block.1} parent=11 // pred_fallthru
        _
    $region12: #{dense_down_block.1} parent=5 // pred_fallthru
      _
    %p427 = scmp.lt.s32.totalorder %s22, 2
    // Predicated region
    $region65: #{dense_down_block.1} parent=5 // pred_check
      %p428 = pneg %p427
    $region66: #{dense_down_block.1} parent=5 // pred_check_branch
      %430 = sbr.rel (%p428) target = $region68
    $region67: #{dense_down_block.1} parent=5 // pred_region
      // Predicated region
      $region69: #{dense_down_block.1} parent=67 // pred_check
        %p431 = pneg %p42
      $region70: #{dense_down_block.1} parent=67 // pred_check_branch
        %433 = sbr.rel (%p431) target = $region72
      $region71: #{dense_down_block.1} parent=67 // pred_region
        %p434 = scmp.lt.s32.totalorder %s22, 1
        %s435 = scalar_select %p434, %s22, 1
        %s436 = smul.addr %s435, 32
        %s437 = smul.addr %s436, 4
        %s438 = scalar_lea.vmem %s0, %s437
      $region72: #{dense_down_block.1} parent=67 // pred_fallthru
        _
    $region68: #{dense_down_block.1} parent=5 // pred_fallthru
      _
    %p439 = scmp.le.s32.totalorder 1, %s22
    %p440 = scmp.lt.s32.totalorder %s22, 3
    %p441 = pnand %p439, %p440
    %p442 = pneg %p441
    // Predicated region
    $region73: #{dense_down_block.1} parent=5 // pred_check
      _
    $region74: #{dense_down_block.1} parent=5 // pred_check_branch
      %444 = sbr.rel (%p441) target = $region76
    $region75: #{dense_down_block.1} parent=5 // pred_region
      %s445 = ssub.s32 %s22, 1
      %p446 = scmp.lt.s32.totalorder %s27, 1
      %s447 = scalar_select %p446, %s27, 1
      %s448 = smul.addr %s447, 32
      %s449 = smul.addr %s448, 4
      %s450 = scalar_lea.vmem %s0, %s449
      %p451 = pneg %p48
      %p452 = pneg %p45
      %p453 = pneg %p69
      %p454 = pneg %p66
      %p455 = pneg %p90
      %p456 = pneg %p87
      %p457 = pneg %p111
      %p458 = pneg %p108
      %p459 = pneg %p132
      %p460 = pneg %p129
      %p461 = pneg %p153
      %p462 = pneg %p150
      %p463 = pneg %p174
      %p464 = pneg %p171
      %p465 = pneg %p195
      %p466 = pneg %p192
      %p467 = pneg %p216
      %p468 = pneg %p213
      %p469 = pneg %p237
      %p470 = pneg %p234
      %p471 = pneg %p258
      %p472 = pneg %p255
      %p473 = pneg %p279
      %p474 = pneg %p276
      %p475 = pneg %p300
      %p476 = pneg %p297
      %p477 = pneg %p321
      %p478 = pneg %p318
      %p479 = pneg %p347
      %p480 = pneg %p344
      %p481 = scmp.lt.s32.totalorder %s27, 1
      %s482 = scalar_select %p481, %s27, 1
      %s483 = smul.addr %s482, 2
      %s484 = smul.addr %s483, 8
      %s485 = scalar_lea.vmem %s14, %s484
      %p486 = pneg %p373
      %p487 = pneg %p370
      %p488 = scmp.lt.s32.totalorder %s27, 1
      %s489 = scalar_select %p488, %s27, 1
      %s490 = smul.addr %s489, 2
      %s491 = scalar_lea.vmem %s15, %s490
      %p492 = scmp.lt.s32.totalorder %s27, 1
      %s493 = scalar_select %p492, %s27, 1
      %s494 = smul.addr %s493, 32
      %s495 = smul.addr %s494, 4
      %s496 = scalar_lea.vmem %s0, %s495
      %p497 = scmp.lt.s32.totalorder %s27, 1
      %s498 = scalar_select %p497, %s27, 1
      %s499 = smul.addr %s498, 2
      %s500 = smul.addr %s499, 8
      %s501 = scalar_lea.vmem %s14, %s500
      %p502 = scmp.lt.s32.totalorder %s27, 1
      %s503 = scalar_select %p502, %s27, 1
      %s504 = smul.addr %s503, 2
      %s505 = scalar_lea.vmem %s15, %s504
      %v507 = vld [vmem:[%s496] sm:$0xf]
      %v508 = vld [vmem:[%s496 + $0x4] sm:$0xf]
      %v509 = vld [vmem:[%s496 + $0x8] sm:$0xf]
      %v510 = vld [vmem:[%s496 + $0xc] sm:$0xf]
      %v511 = vld [vmem:[%s496 + $0x10] sm:$0xf]
      %v512 = vld [vmem:[%s496 + $0x14] sm:$0xf]
      %v513 = vld [vmem:[%s496 + $0x18] sm:$0xf]
      %v514 = vld [vmem:[%s496 + $0x1c] sm:$0xf]
      %v515 = vld [vmem:[%s496 + $0x20] sm:$0xf]
      %v516 = vld [vmem:[%s496 + $0x24] sm:$0xf]
      %v517 = vld [vmem:[%s496 + $0x28] sm:$0xf]
      %v518 = vld [vmem:[%s496 + $0x2c] sm:$0xf]
      %v519 = vld [vmem:[%s496 + $0x30] sm:$0xf]
      %v520 = vld [vmem:[%s496 + $0x34] sm:$0xf]
      %v521 = vld [vmem:[%s496 + $0x38] sm:$0xf]
      %v522 = vld [vmem:[%s496 + $0x3c] sm:$0xf]
      %v523 = vld [vmem:[%s496 + $0x40] sm:$0xf]
      %v524 = vld [vmem:[%s496 + $0x44] sm:$0xf]
      %v525 = vld [vmem:[%s496 + $0x48] sm:$0xf]
      %v526 = vld [vmem:[%s496 + $0x4c] sm:$0xf]
      %v527 = vld [vmem:[%s496 + $0x50] sm:$0xf]
      %v528 = vld [vmem:[%s496 + $0x54] sm:$0xf]
      %v529 = vld [vmem:[%s496 + $0x58] sm:$0xf]
      %v530 = vld [vmem:[%s496 + $0x5c] sm:$0xf]
      %v531 = vld [vmem:[%s496 + $0x60] sm:$0xf]
      %v532 = vld [vmem:[%s496 + $0x64] sm:$0xf]
      %v533 = vld [vmem:[%s496 + $0x68] sm:$0xf]
      %v534 = vld [vmem:[%s496 + $0x6c] sm:$0xf]
      %v535 = vld [vmem:[%s496 + $0x70] sm:$0xf]
      %v536 = vld [vmem:[%s496 + $0x74] sm:$0xf]
      %v537 = vld [vmem:[%s496 + $0x78] sm:$0xf]
      %v538 = vld [vmem:[%s496 + $0x7c] sm:$0xf]
      %v539 = vld [vmem:[%s1] sm:$0xf]
      %v540 = vld [vmem:[%s1 + $0x4] sm:$0xf]
      %v541 = vld [vmem:[%s1 + $0x8] sm:$0xf]
      %v542 = vld [vmem:[%s1 + $0xc] sm:$0xf]
      %v543 = vld [vmem:[%s1 + $0x10] sm:$0x3]
      %v544 = vld [vmem:[%s2] sm:$0x1]
      %v577 = vunpack.c.l.b16 %v507
      %v578 = vunpack.c.l.b16 %v508
      %v579 = vunpack.c.l.b16 %v509
      %v580 = vunpack.c.l.b16 %v510
      %v581 = vunpack.c.l.b16 %v511
      %v582 = vunpack.c.l.b16 %v512
      %v583 = vunpack.c.l.b16 %v513
      %v584 = vunpack.c.l.b16 %v514
      %v585 = vunpack.c.l.b16 %v515
      %v586 = vunpack.c.l.b16 %v516
      %v587 = vunpack.c.l.b16 %v517
      %v588 = vunpack.c.l.b16 %v518
      %v589 = vunpack.c.l.b16 %v519
      %v590 = vunpack.c.l.b16 %v520
      %v591 = vunpack.c.l.b16 %v521
      %v592 = vunpack.c.l.b16 %v522
      %v593 = vunpack.c.l.b16 %v523
      %v594 = vunpack.c.l.b16 %v524
      %v595 = vunpack.c.l.b16 %v525
      %v596 = vunpack.c.l.b16 %v526
      %v597 = vunpack.c.l.b16 %v527
      %v598 = vunpack.c.l.b16 %v528
      %v599 = vunpack.c.l.b16 %v529
      %v600 = vunpack.c.l.b16 %v530
      %v601 = vunpack.c.l.b16 %v531
      %v602 = vunpack.c.l.b16 %v532
      %v603 = vunpack.c.l.b16 %v533
      %v604 = vunpack.c.l.b16 %v534
      %v605 = vunpack.c.l.b16 %v535
      %v606 = vunpack.c.l.b16 %v536
      %v607 = vunpack.c.l.b16 %v537
      %v608 = vunpack.c.l.b16 %v538
      %v609 = vpack.c.b16 %v578, %v577
      %v610 = vpack.c.b16 %v580, %v579
      %v611 = vpack.c.b16 %v582, %v581
      %v612 = vpack.c.b16 %v584, %v583
      %v613 = vpack.c.b16 %v586, %v585
      %v614 = vpack.c.b16 %v588, %v587
      %v615 = vpack.c.b16 %v590, %v589
      %v616 = vpack.c.b16 %v592, %v591
      %v617 = vpack.c.b16 %v594, %v593
      %v618 = vpack.c.b16 %v596, %v595
      %v619 = vpack.c.b16 %v598, %v597
      %v620 = vpack.c.b16 %v600, %v599
      %v621 = vpack.c.b16 %v602, %v601
      %v622 = vpack.c.b16 %v604, %v603
      %v623 = vpack.c.b16 %v606, %v605
      %v624 = vpack.c.b16 %v608, %v607
      %v626 = vshrl.u32 0, 16
      %v628 = vrot.slane %v626, 7
      %v629 = vshll.u32 0, 16
      %v631 = vor.u32 %v628, %v629
      %v633 = vshrl.u32 %v609, 16
      %v635 = vrot.slane %v633, 7
      %v636 = vshll.u32 %v609, 16
      %v638 = vor.u32 %v635, %v636
      %v640 = vshrl.u32 %v610, 16
      %v642 = vrot.slane %v640, 7
      %v643 = vshll.u32 %v610, 16
      %v645 = vor.u32 %v642, %v643
      %v647 = vshrl.u32 %v611, 16
      %v649 = vrot.slane %v647, 7
      %v650 = vshll.u32 %v611, 16
      %v652 = vor.u32 %v649, %v650
      %v654 = vshrl.u32 %v612, 16
      %v656 = vrot.slane %v654, 7
      %v657 = vshll.u32 %v612, 16
      %v659 = vor.u32 %v656, %v657
      %v661 = vshrl.u32 %v613, 16
      %v663 = vrot.slane %v661, 7
      %v664 = vshll.u32 %v613, 16
      %v666 = vor.u32 %v663, %v664
      %v668 = vshrl.u32 %v614, 16
      %v670 = vrot.slane %v668, 7
      %v671 = vshll.u32 %v614, 16
      %v673 = vor.u32 %v670, %v671
      %v675 = vshrl.u32 %v615, 16
      %v677 = vrot.slane %v675, 7
      %v678 = vshll.u32 %v615, 16
      %v680 = vor.u32 %v677, %v678
      %v682 = vshrl.u32 %v616, 16
      %v684 = vrot.slane %v682, 7
      %v685 = vshll.u32 %v616, 16
      %v687 = vor.u32 %v684, %v685
      %v689 = vshrl.u32 %v617, 16
      %v691 = vrot.slane %v689, 7
      %v692 = vshll.u32 %v617, 16
      %v694 = vor.u32 %v691, %v692
      %v696 = vshrl.u32 %v618, 16
      %v698 = vrot.slane %v696, 7
      %v699 = vshll.u32 %v618, 16
      %v701 = vor.u32 %v698, %v699
      %v703 = vshrl.u32 %v619, 16
      %v705 = vrot.slane %v703, 7
      %v706 = vshll.u32 %v619, 16
      %v708 = vor.u32 %v705, %v706
      %v710 = vshrl.u32 %v620, 16
      %v712 = vrot.slane %v710, 7
      %v713 = vshll.u32 %v620, 16
      %v715 = vor.u32 %v712, %v713
      %v717 = vshrl.u32 %v621, 16
      %v719 = vrot.slane %v717, 7
      %v720 = vshll.u32 %v621, 16
      %v722 = vor.u32 %v719, %v720
      %v724 = vshrl.u32 %v622, 16
      %v726 = vrot.slane %v724, 7
      %v727 = vshll.u32 %v622, 16
      %v729 = vor.u32 %v726, %v727
      %v731 = vshrl.u32 %v623, 16
      %v733 = vrot.slane %v731, 7
      %v734 = vshll.u32 %v623, 16
      %v736 = vor.u32 %v733, %v734
      %v738 = vshrl.u32 %v624, 16
      %v740 = vrot.slane %v738, 7
      %v741 = vshll.u32 %v624, 16
      %v743 = vor.u32 %v740, %v741
      %vm778 = vcmask 1040384
      %vm779 = vsmask.f32 256
      %vm780 = vmand %vm778, %vm779
      %v781 = vsel %vm780, 0, %v631
      %v782 = vsel %vm780, 0, %v638
      %v783 = vsel %vm780, 0, %v645
      %v784 = vsel %vm780, 0, %v652
      %v785 = vsel %vm780, 0, %v659
      %v786 = vsel %vm780, 0, %v666
      %v787 = vsel %vm780, 0, %v673
      %v788 = vsel %vm780, 0, %v680
      %v789 = vsel %vm780, 0, %v687
      %v790 = vsel %vm780, 0, %v694
      %v791 = vsel %vm780, 0, %v701
      %v792 = vsel %vm780, 0, %v708
      %v793 = vsel %vm780, 0, %v715
      %v794 = vsel %vm780, 0, %v722
      %v795 = vsel %vm780, 0, %v729
      %v796 = vsel %vm780, 0, %v736
      %v797 = vsel %vm780, 0, %v743
      %v798 = vsel %vm780, %v628, 0
      %v799 = vsel %vm780, %v635, 0
      %v800 = vsel %vm780, %v642, 0
      %v801 = vsel %vm780, %v649, 0
      %v802 = vsel %vm780, %v656, 0
      %v803 = vsel %vm780, %v663, 0
      %v804 = vsel %vm780, %v670, 0
      %v805 = vsel %vm780, %v677, 0
      %v806 = vsel %vm780, %v684, 0
      %v807 = vsel %vm780, %v691, 0
      %v808 = vsel %vm780, %v698, 0
      %v809 = vsel %vm780, %v705, 0
      %v810 = vsel %vm780, %v712, 0
      %v811 = vsel %vm780, %v719, 0
      %v812 = vsel %vm780, %v726, 0
      %v813 = vsel %vm780, %v733, 0
      %v814 = vsel %vm780, %v740, 0
      %vm815 = vsmask.f32 7424
      %v817 = vshrl.u32 %v781, 16
      %v819 = vshll.u32 %v781, 16
      %v821 = vrot.slane %v819, 1
      %v822 = vor.u32 %v817, %v821
      %v824 = vshll.u32 %v798, 16
      %v826 = vrot.slane %v824, 1
      %v827 = vsel %vm815, %v822, %v826
      %v829 = vshrl.u32 %v782, 16
      %v831 = vshll.u32 %v782, 16
      %v833 = vrot.slane %v831, 1
      %v834 = vor.u32 %v829, %v833
      %v836 = vshll.u32 %v799, 16
      %v838 = vrot.slane %v836, 1
      %v839 = vsel %vm815, %v834, %v838
      %v841 = vshrl.u32 %v783, 16
      %v843 = vshll.u32 %v783, 16
      %v845 = vrot.slane %v843, 1
      %v846 = vor.u32 %v841, %v845
      %v848 = vshll.u32 %v800, 16
      %v850 = vrot.slane %v848, 1
      %v851 = vsel %vm815, %v846, %v850
      %v853 = vshrl.u32 %v784, 16
      %v855 = vshll.u32 %v784, 16
      %v857 = vrot.slane %v855, 1
      %v858 = vor.u32 %v853, %v857
      %v860 = vshll.u32 %v801, 16
      %v862 = vrot.slane %v860, 1
      %v863 = vsel %vm815, %v858, %v862
      %v865 = vshrl.u32 %v785, 16
      %v867 = vshll.u32 %v785, 16
      %v869 = vrot.slane %v867, 1
      %v870 = vor.u32 %v865, %v869
      %v872 = vshll.u32 %v802, 16
      %v874 = vrot.slane %v872, 1
      %v875 = vsel %vm815, %v870, %v874
      %v877 = vshrl.u32 %v786, 16
      %v879 = vshll.u32 %v786, 16
      %v881 = vrot.slane %v879, 1
      %v882 = vor.u32 %v877, %v881
      %v884 = vshll.u32 %v803, 16
      %v886 = vrot.slane %v884, 1
      %v887 = vsel %vm815, %v882, %v886
      %v889 = vshrl.u32 %v787, 16
      %v891 = vshll.u32 %v787, 16
      %v893 = vrot.slane %v891, 1
      %v894 = vor.u32 %v889, %v893
      %v896 = vshll.u32 %v804, 16
      %v898 = vrot.slane %v896, 1
      %v899 = vsel %vm815, %v894, %v898
      %v901 = vshrl.u32 %v788, 16
      %v903 = vshll.u32 %v788, 16
      %v905 = vrot.slane %v903, 1
      %v906 = vor.u32 %v901, %v905
      %v908 = vshll.u32 %v805, 16
      %v910 = vrot.slane %v908, 1
      %v911 = vsel %vm815, %v906, %v910
      %v913 = vshrl.u32 %v789, 16
      %v915 = vshll.u32 %v789, 16
      %v917 = vrot.slane %v915, 1
      %v918 = vor.u32 %v913, %v917
      %v920 = vshll.u32 %v806, 16
      %v922 = vrot.slane %v920, 1
      %v923 = vsel %vm815, %v918, %v922
      %v925 = vshrl.u32 %v790, 16
      %v927 = vshll.u32 %v790, 16
      %v929 = vrot.slane %v927, 1
      %v930 = vor.u32 %v925, %v929
      %v932 = vshll.u32 %v807, 16
      %v934 = vrot.slane %v932, 1
      %v935 = vsel %vm815, %v930, %v934
      %v937 = vshrl.u32 %v791, 16
      %v939 = vshll.u32 %v791, 16
      %v941 = vrot.slane %v939, 1
      %v942 = vor.u32 %v937, %v941
      %v944 = vshll.u32 %v808, 16
      %v946 = vrot.slane %v944, 1
      %v947 = vsel %vm815, %v942, %v946
      %v949 = vshrl.u32 %v792, 16
      %v951 = vshll.u32 %v792, 16
      %v953 = vrot.slane %v951, 1
      %v954 = vor.u32 %v949, %v953
      %v956 = vshll.u32 %v809, 16
      %v958 = vrot.slane %v956, 1
      %v959 = vsel %vm815, %v954, %v958
      %v961 = vshrl.u32 %v793, 16
      %v963 = vshll.u32 %v793, 16
      %v965 = vrot.slane %v963, 1
      %v966 = vor.u32 %v961, %v965
      %v968 = vshll.u32 %v810, 16
      %v970 = vrot.slane %v968, 1
      %v971 = vsel %vm815, %v966, %v970
      %v973 = vshrl.u32 %v794, 16
      %v975 = vshll.u32 %v794, 16
      %v977 = vrot.slane %v975, 1
      %v978 = vor.u32 %v973, %v977
      %v980 = vshll.u32 %v811, 16
      %v982 = vrot.slane %v980, 1
      %v983 = vsel %vm815, %v978, %v982
      %v985 = vshrl.u32 %v795, 16
      %v987 = vshll.u32 %v795, 16
      %v989 = vrot.slane %v987, 1
      %v990 = vor.u32 %v985, %v989
      %v992 = vshll.u32 %v812, 16
      %v994 = vrot.slane %v992, 1
      %v995 = vsel %vm815, %v990, %v994
      %v997 = vshrl.u32 %v796, 16
      %v999 = vshll.u32 %v796, 16
      %v1001 = vrot.slane %v999, 1
      %v1002 = vor.u32 %v997, %v1001
      %v1004 = vshll.u32 %v813, 16
      %v1006 = vrot.slane %v1004, 1
      %v1007 = vsel %vm815, %v1002, %v1006
      %vm1040 = vcmask 1046528
      %v1041 = vrot.slane %v781, 1
      %v1042 = vrot.slane %v798, 1
      %v1043 = vsel %vm1040, %v1041, %v1042
      %v1044 = vrot.slane %v782, 1
      %v1045 = vrot.slane %v799, 1
      %v1046 = vsel %vm1040, %v1044, %v1045
      %v1047 = vrot.slane %v783, 1
      %v1048 = vrot.slane %v800, 1
      %v1049 = vsel %vm1040, %v1047, %v1048
      %v1050 = vrot.slane %v784, 1
      %v1051 = vrot.slane %v801, 1
      %v1052 = vsel %vm1040, %v1050, %v1051
      %v1053 = vrot.slane %v785, 1
      %v1054 = vrot.slane %v802, 1
      %v1055 = vsel %vm1040, %v1053, %v1054
      %v1056 = vrot.slane %v786, 1
      %v1057 = vrot.slane %v803, 1
      %v1058 = vsel %vm1040, %v1056, %v1057
      %v1059 = vrot.slane %v787, 1
      %v1060 = vrot.slane %v804, 1
      %v1061 = vsel %vm1040, %v1059, %v1060
      %v1062 = vrot.slane %v788, 1
      %v1063 = vrot.slane %v805, 1
      %v1064 = vsel %vm1040, %v1062, %v1063
      %v1065 = vrot.slane %v789, 1
      %v1066 = vrot.slane %v806, 1
      %v1067 = vsel %vm1040, %v1065, %v1066
      %v1068 = vrot.slane %v790, 1
      %v1069 = vrot.slane %v807, 1
      %v1070 = vsel %vm1040, %v1068, %v1069
      %v1071 = vrot.slane %v791, 1
      %v1072 = vrot.slane %v808, 1
      %v1073 = vsel %vm1040, %v1071, %v1072
      %v1074 = vrot.slane %v792, 1
      %v1075 = vrot.slane %v809, 1
      %v1076 = vsel %vm1040, %v1074, %v1075
      %v1077 = vrot.slane %v793, 1
      %v1078 = vrot.slane %v810, 1
      %v1079 = vsel %vm1040, %v1077, %v1078
      %v1080 = vrot.slane %v794, 1
      %v1081 = vrot.slane %v811, 1
      %v1082 = vsel %vm1040, %v1080, %v1081
      %v1083 = vrot.slane %v795, 1
      %v1084 = vrot.slane %v812, 1
      %v1085 = vsel %vm1040, %v1083, %v1084
      %v1086 = vrot.slane %v796, 1
      %v1087 = vrot.slane %v813, 1
      %v1088 = vsel %vm1040, %v1086, %v1087
      %v1090 = vshrl.u32 %v797, 16
      %v1092 = vshll.u32 %v797, 16
      %v1094 = vrot.slane %v1092, 1
      %v1095 = vor.u32 %v1090, %v1094
      %v1097 = vshll.u32 %v814, 16
      %v1099 = vrot.slane %v1097, 1
      %v1100 = vsel %vm815, %v1095, %v1099
      %v1103 = vrot.slane %v797, 1
      %v1104 = vrot.slane %v814, 1
      %v1105 = vsel %vm1040, %v1103, %v1104
      %1106 = vrot.lane.b32.xlu0 %v827, 4
      %v1107 = vpop.permute.xlu0 %1106
      %1108 = vrot.lane.b32.xlu0 %v839, 4
      %v1109 = vpop.permute.xlu0 %1108
      %1110 = vrot.lane.b32.xlu0 %v851, 4
      %v1111 = vpop.permute.xlu0 %1110
      %1112 = vrot.lane.b32.xlu0 %v863, 4
      %v1113 = vpop.permute.xlu0 %1112
      %1114 = vrot.lane.b32.xlu0 %v875, 4
      %v1115 = vpop.permute.xlu0 %1114
      %1116 = vrot.lane.b32.xlu0 %v887, 4
      %v1117 = vpop.permute.xlu0 %1116
      %1118 = vrot.lane.b32.xlu0 %v899, 4
      %v1119 = vpop.permute.xlu0 %1118
      %1120 = vrot.lane.b32.xlu0 %v911, 4
      %v1121 = vpop.permute.xlu0 %1120
      %1122 = vrot.lane.b32.xlu0 %v923, 4
      %v1123 = vpop.permute.xlu0 %1122
      %1124 = vrot.lane.b32.xlu0 %v935, 4
      %v1125 = vpop.permute.xlu0 %1124
      %1126 = vrot.lane.b32.xlu0 %v947, 4
      %v1127 = vpop.permute.xlu0 %1126
      %1128 = vrot.lane.b32.xlu0 %v959, 4
      %v1129 = vpop.permute.xlu0 %1128
      %1130 = vrot.lane.b32.xlu0 %v971, 4
      %v1131 = vpop.permute.xlu0 %1130
      %1132 = vrot.lane.b32.xlu0 %v983, 4
      %v1133 = vpop.permute.xlu0 %1132
      %1134 = vrot.lane.b32.xlu0 %v995, 4
      %v1135 = vpop.permute.xlu0 %1134
      %1136 = vrot.lane.b32.xlu0 %v1007, 4
      %v1137 = vpop.permute.xlu0 %1136
      %1138 = vrot.lane.b32.xlu0 %v1043, 8
      %v1139 = vpop.permute.xlu0 %1138
      %1140 = vrot.lane.b32.xlu0 %v1046, 8
      %v1141 = vpop.permute.xlu0 %1140
      %1142 = vrot.lane.b32.xlu0 %v1049, 8
      %v1143 = vpop.permute.xlu0 %1142
      %1144 = vrot.lane.b32.xlu0 %v1052, 8
      %v1145 = vpop.permute.xlu0 %1144
      %1146 = vrot.lane.b32.xlu0 %v1055, 8
      %v1147 = vpop.permute.xlu0 %1146
      %1148 = vrot.lane.b32.xlu0 %v1058, 8
      %v1149 = vpop.permute.xlu0 %1148
      %1150 = vrot.lane.b32.xlu0 %v1061, 8
      %v1151 = vpop.permute.xlu0 %1150
      %1152 = vrot.lane.b32.xlu0 %v1064, 8
      %v1153 = vpop.permute.xlu0 %1152
      %1154 = vrot.lane.b32.xlu0 %v1067, 8
      %v1155 = vpop.permute.xlu0 %1154
      %1156 = vrot.lane.b32.xlu0 %v1070, 8
      %v1157 = vpop.permute.xlu0 %1156
      %1158 = vrot.lane.b32.xlu0 %v1073, 8
      %v1159 = vpop.permute.xlu0 %1158
      %1160 = vrot.lane.b32.xlu0 %v1076, 8
      %v1161 = vpop.permute.xlu0 %1160
      %1162 = vrot.lane.b32.xlu0 %v1079, 8
      %v1163 = vpop.permute.xlu0 %1162
      %1164 = vrot.lane.b32.xlu0 %v1082, 8
      %v1165 = vpop.permute.xlu0 %1164
      %1166 = vrot.lane.b32.xlu0 %v1085, 8
      %v1167 = vpop.permute.xlu0 %1166
      %1168 = vrot.lane.b32.xlu0 %v1088, 8
      %v1169 = vpop.permute.xlu0 %1168
      %1170 = vrot.lane.b32.xlu0 %v782, 12
      %v1171 = vpop.permute.xlu0 %1170
      %1172 = vrot.lane.b32.xlu0 %v783, 12
      %v1173 = vpop.permute.xlu0 %1172
      %1174 = vrot.lane.b32.xlu0 %v784, 12
      %v1175 = vpop.permute.xlu0 %1174
      %1176 = vrot.lane.b32.xlu0 %v785, 12
      %v1177 = vpop.permute.xlu0 %1176
      %1178 = vrot.lane.b32.xlu0 %v786, 12
      %v1179 = vpop.permute.xlu0 %1178
      %1180 = vrot.lane.b32.xlu0 %v787, 12
      %v1181 = vpop.permute.xlu0 %1180
      %1182 = vrot.lane.b32.xlu0 %v788, 12
      %v1183 = vpop.permute.xlu0 %1182
      %1184 = vrot.lane.b32.xlu0 %v789, 12
      %v1185 = vpop.permute.xlu0 %1184
      %1186 = vrot.lane.b32.xlu0 %v790, 12
      %v1187 = vpop.permute.xlu0 %1186
      %1188 = vrot.lane.b32.xlu0 %v791, 12
      %v1189 = vpop.permute.xlu0 %1188
      %1190 = vrot.lane.b32.xlu0 %v792, 12
      %v1191 = vpop.permute.xlu0 %1190
      %1192 = vrot.lane.b32.xlu0 %v793, 12
      %v1193 = vpop.permute.xlu0 %1192
      %1194 = vrot.lane.b32.xlu0 %v794, 12
      %v1195 = vpop.permute.xlu0 %1194
      %1196 = vrot.lane.b32.xlu0 %v795, 12
      %v1197 = vpop.permute.xlu0 %1196
      %1198 = vrot.lane.b32.xlu0 %v796, 12
      %v1199 = vpop.permute.xlu0 %1198
      %1200 = vrot.lane.b32.xlu0 %v797, 12
      %v1201 = vpop.permute.xlu0 %1200
      %1202 = vrot.lane.b32.xlu0 %v839, 16
      %v1203 = vpop.permute.xlu0 %1202
      %1204 = vrot.lane.b32.xlu0 %v851, 16
      %v1205 = vpop.permute.xlu0 %1204
      %1206 = vrot.lane.b32.xlu0 %v863, 16
      %v1207 = vpop.permute.xlu0 %1206
      %1208 = vrot.lane.b32.xlu0 %v875, 16
      %v1209 = vpop.permute.xlu0 %1208
      %1210 = vrot.lane.b32.xlu0 %v887, 16
      %v1211 = vpop.permute.xlu0 %1210
      %1212 = vrot.lane.b32.xlu0 %v899, 16
      %v1213 = vpop.permute.xlu0 %1212
      %1214 = vrot.lane.b32.xlu0 %v911, 16
      %v1215 = vpop.permute.xlu0 %1214
      %1216 = vrot.lane.b32.xlu0 %v923, 16
      %v1217 = vpop.permute.xlu0 %1216
      %1218 = vrot.lane.b32.xlu0 %v935, 16
      %v1219 = vpop.permute.xlu0 %1218
      %1220 = vrot.lane.b32.xlu0 %v947, 16
      %v1221 = vpop.permute.xlu0 %1220
      %1222 = vrot.lane.b32.xlu0 %v959, 16
      %v1223 = vpop.permute.xlu0 %1222
      %1224 = vrot.lane.b32.xlu0 %v971, 16
      %v1225 = vpop.permute.xlu0 %1224
      %1226 = vrot.lane.b32.xlu0 %v983, 16
      %v1227 = vpop.permute.xlu0 %1226
      %1228 = vrot.lane.b32.xlu0 %v995, 16
      %v1229 = vpop.permute.xlu0 %1228
      %1230 = vrot.lane.b32.xlu0 %v1007, 16
      %v1231 = vpop.permute.xlu0 %1230
      %1232 = vrot.lane.b32.xlu0 %v1100, 16
      %v1233 = vpop.permute.xlu0 %1232
      %1234 = vrot.lane.b32.xlu0 %v1046, 20
      %v1235 = vpop.permute.xlu0 %1234
      %1236 = vrot.lane.b32.xlu0 %v1049, 20
      %v1237 = vpop.permute.xlu0 %1236
      %1238 = vrot.lane.b32.xlu0 %v1052, 20
      %v1239 = vpop.permute.xlu0 %1238
      %1240 = vrot.lane.b32.xlu0 %v1055, 20
      %v1241 = vpop.permute.xlu0 %1240
      %1242 = vrot.lane.b32.xlu0 %v1058, 20
      %v1243 = vpop.permute.xlu0 %1242
      %1244 = vrot.lane.b32.xlu0 %v1061, 20
      %v1245 = vpop.permute.xlu0 %1244
      %1246 = vrot.lane.b32.xlu0 %v1064, 20
      %v1247 = vpop.permute.xlu0 %1246
      %1248 = vrot.lane.b32.xlu0 %v1067, 20
      %v1249 = vpop.permute.xlu0 %1248
      %1250 = vrot.lane.b32.xlu0 %v1070, 20
      %v1251 = vpop.permute.xlu0 %1250
      %1252 = vrot.lane.b32.xlu0 %v1073, 20
      %v1253 = vpop.permute.xlu0 %1252
      %1254 = vrot.lane.b32.xlu0 %v1076, 20
      %v1255 = vpop.permute.xlu0 %1254
      %1256 = vrot.lane.b32.xlu0 %v1079, 20
      %v1257 = vpop.permute.xlu0 %1256
      %1258 = vrot.lane.b32.xlu0 %v1082, 20
      %v1259 = vpop.permute.xlu0 %1258
      %1260 = vrot.lane.b32.xlu0 %v1085, 20
      %v1261 = vpop.permute.xlu0 %1260
      %1262 = vrot.lane.b32.xlu0 %v1088, 20
      %v1263 = vpop.permute.xlu0 %1262
      %1264 = vrot.lane.b32.xlu0 %v1105, 20
      %v1265 = vpop.permute.xlu0 %1264
      %1266 = vrot.lane.b32.xlu0 %v783, 24
      %v1267 = vpop.permute.xlu0 %1266
      %1268 = vrot.lane.b32.xlu0 %v784, 24
      %v1269 = vpop.permute.xlu0 %1268
      %1270 = vrot.lane.b32.xlu0 %v785, 24
      %v1271 = vpop.permute.xlu0 %1270
      %1272 = vrot.lane.b32.xlu0 %v786, 24
      %v1273 = vpop.permute.xlu0 %1272
      %1274 = vrot.lane.b32.xlu0 %v787, 24
      %v1275 = vpop.permute.xlu0 %1274
      %1276 = vrot.lane.b32.xlu0 %v788, 24
      %v1277 = vpop.permute.xlu0 %1276
      %1278 = vrot.lane.b32.xlu0 %v789, 24
      %v1279 = vpop.permute.xlu0 %1278
      %1280 = vrot.lane.b32.xlu0 %v790, 24
      %v1281 = vpop.permute.xlu0 %1280
      %1282 = vrot.lane.b32.xlu0 %v791, 24
      %v1283 = vpop.permute.xlu0 %1282
      %1284 = vrot.lane.b32.xlu0 %v792, 24
      %v1285 = vpop.permute.xlu0 %1284
      %1286 = vrot.lane.b32.xlu0 %v793, 24
      %v1287 = vpop.permute.xlu0 %1286
      %1288 = vrot.lane.b32.xlu0 %v794, 24
      %v1289 = vpop.permute.xlu0 %1288
      %1290 = vrot.lane.b32.xlu0 %v795, 24
      %v1291 = vpop.permute.xlu0 %1290
      %1292 = vrot.lane.b32.xlu0 %v796, 24
      %v1293 = vpop.permute.xlu0 %1292
      %1294 = vrot.lane.b32.xlu0 %v797, 24
      %v1295 = vpop.permute.xlu0 %1294
      %1296 = vrot.lane.b32.xlu0 %v781, 24
      %v1297 = vpop.permute.xlu0 %1296
      %1298 = vrot.lane.b32.xlu0 %v851, 28
      %v1299 = vpop.permute.xlu0 %1298
      %1300 = vrot.lane.b32.xlu0 %v863, 28
      %v1301 = vpop.permute.xlu0 %1300
      %1302 = vrot.lane.b32.xlu0 %v875, 28
      %v1303 = vpop.permute.xlu0 %1302
      %1304 = vrot.lane.b32.xlu0 %v887, 28
      %v1305 = vpop.permute.xlu0 %1304
      %1306 = vrot.lane.b32.xlu0 %v899, 28
      %v1307 = vpop.permute.xlu0 %1306
      %1308 = vrot.lane.b32.xlu0 %v911, 28
      %v1309 = vpop.permute.xlu0 %1308
      %1310 = vrot.lane.b32.xlu0 %v923, 28
      %v1311 = vpop.permute.xlu0 %1310
      %1312 = vrot.lane.b32.xlu0 %v935, 28
      %v1313 = vpop.permute.xlu0 %1312
      %1314 = vrot.lane.b32.xlu0 %v947, 28
      %v1315 = vpop.permute.xlu0 %1314
      %1316 = vrot.lane.b32.xlu0 %v959, 28
      %v1317 = vpop.permute.xlu0 %1316
      %1318 = vrot.lane.b32.xlu0 %v971, 28
      %v1319 = vpop.permute.xlu0 %1318
      %1320 = vrot.lane.b32.xlu0 %v983, 28
      %v1321 = vpop.permute.xlu0 %1320
      %1322 = vrot.lane.b32.xlu0 %v995, 28
      %v1323 = vpop.permute.xlu0 %1322
      %1324 = vrot.lane.b32.xlu0 %v1007, 28
      %v1325 = vpop.permute.xlu0 %1324
      %1326 = vrot.lane.b32.xlu0 %v1100, 28
      %v1327 = vpop.permute.xlu0 %1326
      %1328 = vrot.lane.b32.xlu0 %v827, 28
      %v1329 = vpop.permute.xlu0 %1328
      %1330 = vrot.lane.b32.xlu0 %v1049, 32
      %v1331 = vpop.permute.xlu0 %1330
      %1332 = vrot.lane.b32.xlu0 %v1052, 32
      %v1333 = vpop.permute.xlu0 %1332
      %1334 = vrot.lane.b32.xlu0 %v1055, 32
      %v1335 = vpop.permute.xlu0 %1334
      %1336 = vrot.lane.b32.xlu0 %v1058, 32
      %v1337 = vpop.permute.xlu0 %1336
      %1338 = vrot.lane.b32.xlu0 %v1061, 32
      %v1339 = vpop.permute.xlu0 %1338
      %1340 = vrot.lane.b32.xlu0 %v1064, 32
      %v1341 = vpop.permute.xlu0 %1340
      %1342 = vrot.lane.b32.xlu0 %v1067, 32
      %v1343 = vpop.permute.xlu0 %1342
      %1344 = vrot.lane.b32.xlu0 %v1070, 32
      %v1345 = vpop.permute.xlu0 %1344
      %1346 = vrot.lane.b32.xlu0 %v1073, 32
      %v1347 = vpop.permute.xlu0 %1346
      %1348 = vrot.lane.b32.xlu0 %v1076, 32
      %v1349 = vpop.permute.xlu0 %1348
      %1350 = vrot.lane.b32.xlu0 %v1079, 32
      %v1351 = vpop.permute.xlu0 %1350
      %1352 = vrot.lane.b32.xlu0 %v1082, 32
      %v1353 = vpop.permute.xlu0 %1352
      %1354 = vrot.lane.b32.xlu0 %v1085, 32
      %v1355 = vpop.permute.xlu0 %1354
      %1356 = vrot.lane.b32.xlu0 %v1088, 32
      %v1357 = vpop.permute.xlu0 %1356
      %1358 = vrot.lane.b32.xlu0 %v1105, 32
      %v1359 = vpop.permute.xlu0 %1358
      %1360 = vrot.lane.b32.xlu0 %v1043, 32
      %v1361 = vpop.permute.xlu0 %1360
      %vm1362 = vcmask 31744
      %v1364 = vsel %vm1362, %v781, %v1107
      %v1366 = vsel %vm1362, %v782, %v1109
      %v1368 = vsel %vm1362, %v783, %v1111
      %v1370 = vsel %vm1362, %v784, %v1113
      %v1372 = vsel %vm1362, %v785, %v1115
      %v1374 = vsel %vm1362, %v786, %v1117
      %v1376 = vsel %vm1362, %v787, %v1119
      %v1378 = vsel %vm1362, %v788, %v1121
      %v1380 = vsel %vm1362, %v789, %v1123
      %v1382 = vsel %vm1362, %v790, %v1125
      %v1384 = vsel %vm1362, %v791, %v1127
      %v1386 = vsel %vm1362, %v792, %v1129
      %v1388 = vsel %vm1362, %v793, %v1131
      %v1390 = vsel %vm1362, %v794, %v1133
      %v1392 = vsel %vm1362, %v795, %v1135
      %v1394 = vsel %vm1362, %v796, %v1137
      %vm1395 = vcmask 64512
      %v1397 = vsel %vm1395, %v1364, %v1139
      %v1399 = vsel %vm1395, %v1366, %v1141
      %v1401 = vsel %vm1395, %v1368, %v1143
      %v1403 = vsel %vm1395, %v1370, %v1145
      %v1405 = vsel %vm1395, %v1372, %v1147
      %v1407 = vsel %vm1395, %v1374, %v1149
      %v1409 = vsel %vm1395, %v1376, %v1151
      %v1411 = vsel %vm1395, %v1378, %v1153
      %v1413 = vsel %vm1395, %v1380, %v1155
      %v1415 = vsel %vm1395, %v1382, %v1157
      %v1417 = vsel %vm1395, %v1384, %v1159
      %v1419 = vsel %vm1395, %v1386, %v1161
      %v1421 = vsel %vm1395, %v1388, %v1163
      %v1423 = vsel %vm1395, %v1390, %v1165
      %v1425 = vsel %vm1395, %v1392, %v1167
      %v1427 = vsel %vm1395, %v1394, %v1169
      %vm1428 = vcmask 97280
      %v1430 = vsel %vm1428, %v1397, %v1171
      %v1432 = vsel %vm1428, %v1399, %v1173
      %v1434 = vsel %vm1428, %v1401, %v1175
      %v1436 = vsel %vm1428, %v1403, %v1177
      %v1438 = vsel %vm1428, %v1405, %v1179
      %v1440 = vsel %vm1428, %v1407, %v1181
      %v1442 = vsel %vm1428, %v1409, %v1183
      %v1444 = vsel %vm1428, %v1411, %v1185
      %v1446 = vsel %vm1428, %v1413, %v1187
      %v1448 = vsel %vm1428, %v1415, %v1189
      %v1450 = vsel %vm1428, %v1417, %v1191
      %v1452 = vsel %vm1428, %v1419, %v1193
      %v1454 = vsel %vm1428, %v1421, %v1195
      %v1456 = vsel %vm1428, %v1423, %v1197
      %v1458 = vsel %vm1428, %v1425, %v1199
      %v1460 = vsel %vm1428, %v1427, %v1201
      %vm1461 = vcmask 130048
      %v1463 = vsel %vm1461, %v1430, %v1203
      %v1465 = vsel %vm1461, %v1432, %v1205
      %v1467 = vsel %vm1461, %v1434, %v1207
      %v1469 = vsel %vm1461, %v1436, %v1209
      %v1471 = vsel %vm1461, %v1438, %v1211
      %v1473 = vsel %vm1461, %v1440, %v1213
      %v1475 = vsel %vm1461, %v1442, %v1215
      %v1477 = vsel %vm1461, %v1444, %v1217
      %v1479 = vsel %vm1461, %v1446, %v1219
      %v1481 = vsel %vm1461, %v1448, %v1221
      %v1483 = vsel %vm1461, %v1450, %v1223
      %v1485 = vsel %vm1461, %v1452, %v1225
      %v1487 = vsel %vm1461, %v1454, %v1227
      %v1489 = vsel %vm1461, %v1456, %v1229
      %v1491 = vsel %vm1461, %v1458, %v1231
      %v1493 = vsel %vm1461, %v1460, %v1233
      %vm1494 = vcmask 162816
      %v1496 = vsel %vm1494, %v1463, %v1235
      %v1498 = vsel %vm1494, %v1465, %v1237
      %v1500 = vsel %vm1494, %v1467, %v1239
      %v1502 = vsel %vm1494, %v1469, %v1241
      %v1504 = vsel %vm1494, %v1471, %v1243
      %v1506 = vsel %vm1494, %v1473, %v1245
      %v1508 = vsel %vm1494, %v1475, %v1247
      %v1510 = vsel %vm1494, %v1477, %v1249
      %v1512 = vsel %vm1494, %v1479, %v1251
      %v1514 = vsel %vm1494, %v1481, %v1253
      %v1516 = vsel %vm1494, %v1483, %v1255
      %v1518 = vsel %vm1494, %v1485, %v1257
      %v1520 = vsel %vm1494, %v1487, %v1259
      %v1522 = vsel %vm1494, %v1489, %v1261
      %v1524 = vsel %vm1494, %v1491, %v1263
      %v1526 = vsel %vm1494, %v1493, %v1265
      %vm1527 = vcmask 195584
      %v1529 = vsel %vm1527, %v1496, %v1267
      %v1531 = vsel %vm1527, %v1498, %v1269
      %v1533 = vsel %vm1527, %v1500, %v1271
      %v1535 = vsel %vm1527, %v1502, %v1273
      %v1537 = vsel %vm1527, %v1504, %v1275
      %v1539 = vsel %vm1527, %v1506, %v1277
      %v1541 = vsel %vm1527, %v1508, %v1279
      %v1543 = vsel %vm1527, %v1510, %v1281
      %v1545 = vsel %vm1527, %v1512, %v1283
      %v1547 = vsel %vm1527, %v1514, %v1285
      %v1549 = vsel %vm1527, %v1516, %v1287
      %v1551 = vsel %vm1527, %v1518, %v1289
      %v1553 = vsel %vm1527, %v1520, %v1291
      %v1555 = vsel %vm1527, %v1522, %v1293
      %v1557 = vsel %vm1527, %v1524, %v1295
      %v1559 = vsel %vm1527, %v1526, %v1297
      %vm1560 = vcmask 228352
      %v1562 = vsel %vm1560, %v1529, %v1299
      %v1564 = vsel %vm1560, %v1531, %v1301
      %v1566 = vsel %vm1560, %v1533, %v1303
      %v1568 = vsel %vm1560, %v1535, %v1305
      %v1570 = vsel %vm1560, %v1537, %v1307
      %v1572 = vsel %vm1560, %v1539, %v1309
      %v1574 = vsel %vm1560, %v1541, %v1311
      %v1576 = vsel %vm1560, %v1543, %v1313
      %v1578 = vsel %vm1560, %v1545, %v1315
      %v1580 = vsel %vm1560, %v1547, %v1317
      %v1582 = vsel %vm1560, %v1549, %v1319
      %v1584 = vsel %vm1560, %v1551, %v1321
      %v1586 = vsel %vm1560, %v1553, %v1323
      %v1588 = vsel %vm1560, %v1555, %v1325
      %v1590 = vsel %vm1560, %v1557, %v1327
      %v1592 = vsel %vm1560, %v1559, %v1329
      %vm1593 = vcmask 261120
      %v1595 = vsel %vm1593, %v1562, %v1331
      %v1597 = vsel %vm1593, %v1564, %v1333
      %v1599 = vsel %vm1593, %v1566, %v1335
      %v1601 = vsel %vm1593, %v1568, %v1337
      %v1603 = vsel %vm1593, %v1570, %v1339
      %v1605 = vsel %vm1593, %v1572, %v1341
      %v1607 = vsel %vm1593, %v1574, %v1343
      %v1609 = vsel %vm1593, %v1576, %v1345
      %v1611 = vsel %vm1593, %v1578, %v1347
      %v1613 = vsel %vm1593, %v1580, %v1349
      %v1615 = vsel %vm1593, %v1582, %v1351
      %v1617 = vsel %vm1593, %v1584, %v1353
      %v1619 = vsel %vm1593, %v1586, %v1355
      %v1621 = vsel %vm1593, %v1588, %v1357
      %v1623 = vsel %vm1593, %v1590, %v1359
      %v1625 = vsel %vm1593, %v1592, %v1361
      %v1627 = vlaneseq
      %v1628 = vshrl.u32 %v1627, 7
      %v1629 = vsub.s32 0, %v1628
      %v1630 = vrot.slane %v544, %v1629
      %v1637 = vunpack.c.l.b16 %v539
      %v1638 = vunpack.c.l.b16 %v540
      %v1639 = vunpack.c.l.b16 %v541
      %v1640 = vunpack.c.l.b16 %v542
      %v1641 = vunpack.c.l.b16 %v543
      %v1642 = vpack.c.b16 %v1638, %v1637
      %v1643 = vpack.c.b16 %v1640, %v1639
      %v1644 = vpack.c.b16 %v1641, %v1641
      %vm1647 = vcmask 293888
      %v1648 = vsel %vm1647, %v1595, 0
      %v1650 = vsel %vm1647, %v1597, 0
      %v1652 = vsel %vm1647, %v1599, 0
      %v1654 = vsel %vm1647, %v1601, 0
      %v1656 = vsel %vm1647, %v1603, 0
      %v1658 = vsel %vm1647, %v1605, 0
      %v1660 = vsel %vm1647, %v1607, 0
      %v1662 = vsel %vm1647, %v1609, 0
      %v1664 = vsel %vm1647, %v1611, 0
      %v1666 = vsel %vm1647, %v1613, 0
      %v1668 = vsel %vm1647, %v1615, 0
      %v1670 = vsel %vm1647, %v1617, 0
      %v1672 = vsel %vm1647, %v1619, 0
      %v1674 = vsel %vm1647, %v1621, 0
      %v1676 = vsel %vm1647, %v1623, 0
      %v1678 = vsel %vm1647, %v1625, 0
      %vm1680 = vcmask 1041408
      %v1682 = vsel %vm1680, %v1644, 0
      %1684 = vmatprep.subr.bf16.mxu0 0
      %1685 = vmatpush1.bf16.msra.mxu0 %v1642
      %1686 = vmatprep.subr.bf16.mxu0 0
      %1687 = vmatpush1.bf16.msra.mxu0 %v1643
      %1688 = vmatprep.subr.bf16.mxu0 0
      %1689 = vmatpush1.bf16.msra.mxu0 %v1682
      %1690 = vmatprep.subr.bf16.mxu0 0
      %1691 = vmatpush1.bf16.msra.mxu0 0
      %1692 = vmatprep.subr.bf16.mxu0 0
      %1693 = vmatpush1.bf16.msra.mxu0 0
      %1694 = vmatprep.subr.bf16.mxu0 0
      %1695 = vmatpush1.bf16.msra.mxu0 0
      %1696 = vmatprep.subr.bf16.mxu0 0
      %1697 = vmatpush1.bf16.msra.mxu0 0
      %1698 = vmatprep.subr.bf16.mxu0 0
      %1699 = vmatpush1.bf16.msra.mxu0 0
      %1700 = vmatprep.subr.bf16.mxu0 0
      %1701 = vmatpush1.bf16.msra.mxu0 0
      %1702 = vmatprep.subr.bf16.mxu0 0
      %1703 = vmatpush1.bf16.msra.mxu0 0
      %1704 = vmatprep.subr.bf16.mxu0 0
      %1705 = vmatpush1.bf16.msra.mxu0 0
      %1706 = vmatprep.subr.bf16.mxu0 0
      %1707 = vmatpush1.bf16.msra.mxu0 0
      %1708 = vmatprep.subr.bf16.mxu0 0
      %1709 = vmatpush1.bf16.msra.mxu0 0
      %1710 = vmatprep.subr.bf16.mxu0 0
      %1711 = vmatpush1.bf16.msra.mxu0 0
      %1712 = vmatprep.subr.bf16.mxu0 0
      %1713 = vmatpush1.bf16.msra.mxu0 0
      %1714 = vmatprep.subr.bf16.mxu0 0
      %1715 = vmatpush1.bf16.msra.mxu0 0
      %1716 = vmatprep.mubr.bf16.mxu0 0
      %1717 = vmatmul.mubr.bf16.gmra.mrb[0].mxu0 %v1648
      %v1718 = vpop.f32.mrb[0].mxu0
      %v1719 = vadd.f32 %v1630, %v1718
      %v1720 = vpop.f32.mrb[0].mxu0
      %v1721 = vpop.f32.mrb[0].mxu0
      %v1722 = vadd.f32 %v1630, %v1721
      %v1723 = vpop.f32.mrb[0].mxu0
      %1724 = vmatprep.mubr.bf16.mxu0 0
      %1725 = vmatmul.mubr.bf16.gmra.mrb[0].mxu0 %v1650
      %v1726 = vpop.f32.mrb[0].mxu0
      %v1727 = vadd.f32 %v1630, %v1726
      %v1728 = vpop.f32.mrb[0].mxu0
      %v1729 = vpop.f32.mrb[0].mxu0
      %v1730 = vadd.f32 %v1630, %v1729
      %v1731 = vpop.f32.mrb[0].mxu0
      %1732 = vmatprep.mubr.bf16.mxu0 0
      %1733 = vmatmul.mubr.bf16.gmra.mrb[0].mxu0 %v1652
      %v1734 = vpop.f32.mrb[0].mxu0
      %v1735 = vadd.f32 %v1630, %v1734
      %v1736 = vpop.f32.mrb[0].mxu0
      %v1737 = vpop.f32.mrb[0].mxu0
      %v1738 = vadd.f32 %v1630, %v1737
      %v1739 = vpop.f32.mrb[0].mxu0
      %1740 = vmatprep.mubr.bf16.mxu0 0
      %1741 = vmatmul.mubr.bf16.gmra.mrb[0].mxu0 %v1654
      %v1742 = vpop.f32.mrb[0].mxu0
      %v1743 = vadd.f32 %v1630, %v1742
      %v1744 = vpop.f32.mrb[0].mxu0
      %v1745 = vpop.f32.mrb[0].mxu0
      %v1746 = vadd.f32 %v1630, %v1745
      %v1747 = vpop.f32.mrb[0].mxu0
      %1748 = vmatprep.mubr.bf16.mxu0 0
      %1749 = vmatmul.mubr.bf16.gmra.mrb[0].mxu0 %v1656
      %v1750 = vpop.f32.mrb[0].mxu0
      %v1751 = vadd.f32 %v1630, %v1750
      %v1752 = vpop.f32.mrb[0].mxu0
      %v1753 = vpop.f32.mrb[0].mxu0
      %v1754 = vadd.f32 %v1630, %v1753
      %v1755 = vpop.f32.mrb[0].mxu0
      %1756 = vmatprep.mubr.bf16.mxu0 0
      %1757 = vmatmul.mubr.bf16.gmra.mrb[0].mxu0 %v1658
      %v1758 = vpop.f32.mrb[0].mxu0
      %v1759 = vadd.f32 %v1630, %v1758
      %v1760 = vpop.f32.mrb[0].mxu0
      %v1761 = vpop.f32.mrb[0].mxu0
      %v1762 = vadd.f32 %v1630, %v1761
      %v1763 = vpop.f32.mrb[0].mxu0
      %1764 = vmatprep.mubr.bf16.mxu0 0
      %1765 = vmatmul.mubr.bf16.gmra.mrb[0].mxu0 %v1660
      %v1766 = vpop.f32.mrb[0].mxu0
      %v1767 = vadd.f32 %v1630, %v1766
      %v1768 = vpop.f32.mrb[0].mxu0
      %v1769 = vpop.f32.mrb[0].mxu0
      %v1770 = vadd.f32 %v1630, %v1769
      %v1771 = vpop.f32.mrb[0].mxu0
      %1772 = vmatprep.mubr.bf16.mxu0 0
      %1773 = vmatmul.mubr.bf16.gmra.mrb[0].mxu0 %v1662
      %v1774 = vpop.f32.mrb[0].mxu0
      %v1775 = vadd.f32 %v1630, %v1774
      %v1776 = vpop.f32.mrb[0].mxu0
      %v1777 = vpop.f32.mrb[0].mxu0
      %v1778 = vadd.f32 %v1630, %v1777
      %v1779 = vpop.f32.mrb[0].mxu0
      %1780 = vmatprep.mubr.bf16.mxu0 0
      %1781 = vmatmul.mubr.bf16.gmra.mrb[0].mxu0 %v1664
      %v1782 = vpop.f32.mrb[0].mxu0
      %v1783 = vadd.f32 %v1630, %v1782
      %v1784 = vpop.f32.mrb[0].mxu0
      %v1785 = vpop.f32.mrb[0].mxu0
      %v1786 = vadd.f32 %v1630, %v1785
      %v1787 = vpop.f32.mrb[0].mxu0
      %1788 = vmatprep.mubr.bf16.mxu0 0
      %1789 = vmatmul.mubr.bf16.gmra.mrb[0].mxu0 %v1666
      %v1790 = vpop.f32.mrb[0].mxu0
      %v1791 = vadd.f32 %v1630, %v1790
      %v1792 = vpop.f32.mrb[0].mxu0
      %v1793 = vpop.f32.mrb[0].mxu0
      %v1794 = vadd.f32 %v1630, %v1793
      %v1795 = vpop.f32.mrb[0].mxu0
      %1796 = vmatprep.mubr.bf16.mxu0 0
      %1797 = vmatmul.mubr.bf16.gmra.mrb[0].mxu0 %v1668
      %v1798 = vpop.f32.mrb[0].mxu0
      %v1799 = vadd.f32 %v1630, %v1798
      %v1800 = vpop.f32.mrb[0].mxu0
      %v1801 = vpop.f32.mrb[0].mxu0
      %v1802 = vadd.f32 %v1630, %v1801
      %v1803 = vpop.f32.mrb[0].mxu0
      %1804 = vmatprep.mubr.bf16.mxu0 0
      %1805 = vmatmul.mubr.bf16.gmra.mrb[0].mxu0 %v1670
      %v1806 = vpop.f32.mrb[0].mxu0
      %v1807 = vadd.f32 %v1630, %v1806
      %v1808 = vpop.f32.mrb[0].mxu0
      %v1809 = vpop.f32.mrb[0].mxu0
      %v1810 = vadd.f32 %v1630, %v1809
      %v1811 = vpop.f32.mrb[0].mxu0
      %1812 = vmatprep.mubr.bf16.mxu0 0
      %1813 = vmatmul.mubr.bf16.gmra.mrb[0].mxu0 %v1672
      %v1814 = vpop.f32.mrb[0].mxu0
      %v1815 = vadd.f32 %v1630, %v1814
      %v1816 = vpop.f32.mrb[0].mxu0
      %v1817 = vpop.f32.mrb[0].mxu0
      %v1818 = vadd.f32 %v1630, %v1817
      %v1819 = vpop.f32.mrb[0].mxu0
      %1820 = vmatprep.mubr.bf16.mxu0 0
      %1821 = vmatmul.mubr.bf16.gmra.mrb[0].mxu0 %v1674
      %v1822 = vpop.f32.mrb[0].mxu0
      %v1823 = vadd.f32 %v1630, %v1822
      %v1824 = vpop.f32.mrb[0].mxu0
      %v1825 = vpop.f32.mrb[0].mxu0
      %v1826 = vadd.f32 %v1630, %v1825
      %v1827 = vpop.f32.mrb[0].mxu0
      %1828 = vmatprep.mubr.bf16.mxu0 0
      %1829 = vmatmul.mubr.bf16.gmra.mrb[0].mxu0 %v1676
      %v1830 = vpop.f32.mrb[0].mxu0
      %v1831 = vadd.f32 %v1630, %v1830
      %v1832 = vpop.f32.mrb[0].mxu0
      %v1833 = vpop.f32.mrb[0].mxu0
      %v1834 = vadd.f32 %v1630, %v1833
      %v1835 = vpop.f32.mrb[0].mxu0
      %1836 = vmatprep.mubr.bf16.mxu0 0
      %1837 = vmatmul.mubr.bf16.gmra.mrb[0].mxu0 %v1678
      %v1838 = vpop.f32.mrb[0].mxu0
      %v1839 = vadd.f32 %v1630, %v1838
      %v1840 = vpop.f32.mrb[0].mxu0
      %v1841 = vpop.f32.mrb[0].mxu0
      %v1842 = vadd.f32 %v1630, %v1841
      %v1843 = vpop.f32.mrb[0].mxu0
      %1844 = vdwg.mxu0
      %vm1845 = vcmp.gt.f32.partialorder %v1719, 0.0
      %vm1846 = vcmp.gt.f32.partialorder %v1722, 0.0
      %vm1847 = vcmp.gt.f32.partialorder %v1727, 0.0
      %vm1848 = vcmp.gt.f32.partialorder %v1730, 0.0
      %vm1849 = vcmp.gt.f32.partialorder %v1735, 0.0
      %vm1850 = vcmp.gt.f32.partialorder %v1738, 0.0
      %vm1851 = vcmp.gt.f32.partialorder %v1743, 0.0
      %vm1852 = vcmp.gt.f32.partialorder %v1746, 0.0
      %vm1853 = vcmp.gt.f32.partialorder %v1751, 0.0
      %vm1854 = vcmp.gt.f32.partialorder %v1754, 0.0
      %vm1855 = vcmp.gt.f32.partialorder %v1759, 0.0
      %vm1856 = vcmp.gt.f32.partialorder %v1762, 0.0
      %vm1857 = vcmp.gt.f32.partialorder %v1767, 0.0
      %vm1858 = vcmp.gt.f32.partialorder %v1770, 0.0
      %vm1859 = vcmp.gt.f32.partialorder %v1775, 0.0
      %vm1860 = vcmp.gt.f32.partialorder %v1778, 0.0
      %vm1861 = vcmp.gt.f32.partialorder %v1783, 0.0
      %vm1862 = vcmp.gt.f32.partialorder %v1786, 0.0
      %vm1863 = vcmp.gt.f32.partialorder %v1791, 0.0
      %vm1864 = vcmp.gt.f32.partialorder %v1794, 0.0
      %vm1865 = vcmp.gt.f32.partialorder %v1799, 0.0
      %vm1866 = vcmp.gt.f32.partialorder %v1802, 0.0
      %vm1867 = vcmp.gt.f32.partialorder %v1807, 0.0
      %vm1868 = vcmp.gt.f32.partialorder %v1810, 0.0
      %vm1869 = vcmp.gt.f32.partialorder %v1815, 0.0
      %vm1870 = vcmp.gt.f32.partialorder %v1818, 0.0
      %vm1871 = vcmp.gt.f32.partialorder %v1823, 0.0
      %vm1872 = vcmp.gt.f32.partialorder %v1826, 0.0
      %vm1873 = vcmp.gt.f32.partialorder %v1831, 0.0
      %vm1874 = vcmp.gt.f32.partialorder %v1834, 0.0
      %vm1875 = vcmp.gt.f32.partialorder %v1839, 0.0
      %vm1876 = vcmp.gt.f32.partialorder %v1842, 0.0
      %v1877 = vmul.f32 %v1719, 0.01
      %v1878 = vmul.f32 %v1722, 0.01
      %v1879 = vmul.f32 %v1727, 0.01
      %v1880 = vmul.f32 %v1730, 0.01
      %v1881 = vmul.f32 %v1735, 0.01
      %v1882 = vmul.f32 %v1738, 0.01
      %v1883 = vmul.f32 %v1743, 0.01
      %v1884 = vmul.f32 %v1746, 0.01
      %v1885 = vmul.f32 %v1751, 0.01
      %v1886 = vmul.f32 %v1754, 0.01
      %v1887 = vmul.f32 %v1759, 0.01
      %v1888 = vmul.f32 %v1762, 0.01
      %v1889 = vmul.f32 %v1767, 0.01
      %v1890 = vmul.f32 %v1770, 0.01
      %v1891 = vmul.f32 %v1775, 0.01
      %v1892 = vmul.f32 %v1778, 0.01
      %v1893 = vmul.f32 %v1783, 0.01
      %v1894 = vmul.f32 %v1786, 0.01
      %v1895 = vmul.f32 %v1791, 0.01
      %v1896 = vmul.f32 %v1794, 0.01
      %v1897 = vmul.f32 %v1799, 0.01
      %v1898 = vmul.f32 %v1802, 0.01
      %v1899 = vmul.f32 %v1807, 0.01
      %v1900 = vmul.f32 %v1810, 0.01
      %v1901 = vmul.f32 %v1815, 0.01
      %v1902 = vmul.f32 %v1818, 0.01
      %v1903 = vmul.f32 %v1823, 0.01
      %v1904 = vmul.f32 %v1826, 0.01
      %v1905 = vmul.f32 %v1831, 0.01
      %v1906 = vmul.f32 %v1834, 0.01
      %v1907 = vmul.f32 %v1839, 0.01
      %v1908 = vmul.f32 %v1842, 0.01
      %v1909 = vsel %vm1845, %v1719, %v1877
      %v1910 = vsel %vm1846, %v1722, %v1878
      %v1911 = vsel %vm1847, %v1727, %v1879
      %v1912 = vsel %vm1848, %v1730, %v1880
      %v1913 = vsel %vm1849, %v1735, %v1881
      %v1914 = vsel %vm1850, %v1738, %v1882
      %v1915 = vsel %vm1851, %v1743, %v1883
      %v1916 = vsel %vm1852, %v1746, %v1884
      %v1917 = vsel %vm1853, %v1751, %v1885
      %v1918 = vsel %vm1854, %v1754, %v1886
      %v1919 = vsel %vm1855, %v1759, %v1887
      %v1920 = vsel %vm1856, %v1762, %v1888
      %v1921 = vsel %vm1857, %v1767, %v1889
      %v1922 = vsel %vm1858, %v1770, %v1890
      %v1923 = vsel %vm1859, %v1775, %v1891
      %v1924 = vsel %vm1860, %v1778, %v1892
      %v1925 = vsel %vm1861, %v1783, %v1893
      %v1926 = vsel %vm1862, %v1786, %v1894
      %v1927 = vsel %vm1863, %v1791, %v1895
      %v1928 = vsel %vm1864, %v1794, %v1896
      %v1929 = vsel %vm1865, %v1799, %v1897
      %v1930 = vsel %vm1866, %v1802, %v1898
      %v1931 = vsel %vm1867, %v1807, %v1899
      %v1932 = vsel %vm1868, %v1810, %v1900
      %v1933 = vsel %vm1869, %v1815, %v1901
      %v1934 = vsel %vm1870, %v1818, %v1902
      %v1935 = vsel %vm1871, %v1823, %v1903
      %v1936 = vsel %vm1872, %v1826, %v1904
      %v1937 = vsel %vm1873, %v1831, %v1905
      %v1938 = vsel %vm1874, %v1834, %v1906
      %v1939 = vsel %vm1875, %v1839, %v1907
      %v1940 = vsel %vm1876, %v1842, %v1908
      %v1941 = vpack.c.bf16 %v1910, %v1909
      %v1942 = vpack.c.bf16 %v1912, %v1911
      %v1943 = vpack.c.bf16 %v1914, %v1913
      %v1944 = vpack.c.bf16 %v1916, %v1915
      %v1945 = vpack.c.bf16 %v1918, %v1917
      %v1946 = vpack.c.bf16 %v1920, %v1919
      %v1947 = vpack.c.bf16 %v1922, %v1921
      %v1948 = vpack.c.bf16 %v1924, %v1923
      %v1949 = vpack.c.bf16 %v1926, %v1925
      %v1950 = vpack.c.bf16 %v1928, %v1927
      %v1951 = vpack.c.bf16 %v1930, %v1929
      %v1952 = vpack.c.bf16 %v1932, %v1931
      %v1953 = vpack.c.bf16 %v1934, %v1933
      %v1954 = vpack.c.bf16 %v1936, %v1935
      %v1955 = vpack.c.bf16 %v1938, %v1937
      %v1956 = vpack.c.bf16 %v1940, %v1939
      %v1957 = vld [vmem:[%s3] sm:$0x3]
      %v1958 = vld [vmem:[%s4] sm:$0xf]
      %v1960 = vsel %vm1395, %v1941, 0
      %v1963 = vsel %vm1395, %v1942, 0
      %v1966 = vsel %vm1395, %v1943, 0
      %v1969 = vsel %vm1395, %v1944, 0
      %v1972 = vsel %vm1395, %v1945, 0
      %v1975 = vsel %vm1395, %v1946, 0
      %v1978 = vsel %vm1395, %v1947, 0
      %v1981 = vsel %vm1395, %v1948, 0
      %v1984 = vsel %vm1395, %v1949, 0
      %v1987 = vsel %vm1395, %v1950, 0
      %v1990 = vsel %vm1395, %v1951, 0
      %v1993 = vsel %vm1395, %v1952, 0
      %v1996 = vsel %vm1395, %v1953, 0
      %v1999 = vsel %vm1395, %v1954, 0
      %v2002 = vsel %vm1395, %v1955, 0
      %v2005 = vsel %vm1395, %v1956, 0
      %vm2007 = vcmask 1043456
      %v2009 = vsel %vm2007, %v1958, 0
      %2011 = vmatprep.subr.bf16.mxu0 0
      %2012 = vmatpush1.bf16.msra.mxu0 %v2009
      %2013 = vmatprep.subr.bf16.mxu0 0
      %2014 = vmatpush1.bf16.msra.mxu0 0
      %2015 = vmatprep.subr.bf16.mxu0 0
      %2016 = vmatpush1.bf16.msra.mxu0 0
      %2017 = vmatprep.subr.bf16.mxu0 0
      %2018 = vmatpush1.bf16.msra.mxu0 0
      %2019 = vmatprep.subr.bf16.mxu0 0
      %2020 = vmatpush1.bf16.msra.mxu0 0
      %2021 = vmatprep.subr.bf16.mxu0 0
      %2022 = vmatpush1.bf16.msra.mxu0 0
      %2023 = vmatprep.subr.bf16.mxu0 0
      %2024 = vmatpush1.bf16.msra.mxu0 0
      %2025 = vmatprep.subr.bf16.mxu0 0
      %2026 = vmatpush1.bf16.msra.mxu0 0
      %2027 = vmatprep.subr.bf16.mxu0 0
      %2028 = vmatpush1.bf16.msra.mxu0 0
      %2029 = vmatprep.subr.bf16.mxu0 0
      %2030 = vmatpush1.bf16.msra.mxu0 0
      %2031 = vmatprep.subr.bf16.mxu0 0
      %2032 = vmatpush1.bf16.msra.mxu0 0
      %2033 = vmatprep.subr.bf16.mxu0 0
      %2034 = vmatpush1.bf16.msra.mxu0 0
      %2035 = vmatprep.subr.bf16.mxu0 0
      %2036 = vmatpush1.bf16.msra.mxu0 0
      %2037 = vmatprep.subr.bf16.mxu0 0
      %2038 = vmatpush1.bf16.msra.mxu0 0
      %2039 = vmatprep.subr.bf16.mxu0 0
      %2040 = vmatpush1.bf16.msra.mxu0 0
      %2041 = vmatprep.subr.bf16.mxu0 0
      %2042 = vmatpush1.bf16.msra.mxu0 0
      %2043 = vmatprep.mubr.bf16.mxu0 0
      %2044 = vmatmul.mubr.bf16.gmra.mrb[0].mxu0 %v1960
      %v2045 = vpop.f32.mrb[0].mxu0
      %v2046 = vadd.f32 0.0, %v2045
      %v2047 = vpop.f32.mrb[0].mxu0
      %v2048 = vpop.f32.mrb[0].mxu0
      %v2049 = vadd.f32 0.0, %v2048
      %v2050 = vpop.f32.mrb[0].mxu0
      %2051 = vmatprep.mubr.bf16.mxu0 0
      %2052 = vmatmul.mubr.bf16.gmra.mrb[0].mxu0 %v1963
      %v2053 = vpop.f32.mrb[0].mxu0
      %v2054 = vadd.f32 0.0, %v2053
      %v2055 = vpop.f32.mrb[0].mxu0
      %v2056 = vpop.f32.mrb[0].mxu0
      %v2057 = vadd.f32 0.0, %v2056
      %v2058 = vpop.f32.mrb[0].mxu0
      %2059 = vmatprep.mubr.bf16.mxu0 0
      %2060 = vmatmul.mubr.bf16.gmra.mrb[0].mxu0 %v1966
      %v2061 = vpop.f32.mrb[0].mxu0
      %v2062 = vadd.f32 0.0, %v2061
      %v2063 = vpop.f32.mrb[0].mxu0
      %v2064 = vpop.f32.mrb[0].mxu0
      %v2065 = vadd.f32 0.0, %v2064
      %v2066 = vpop.f32.mrb[0].mxu0
      %2067 = vmatprep.mubr.bf16.mxu0 0
      %2068 = vmatmul.mubr.bf16.gmra.mrb[0].mxu0 %v1969
      %v2069 = vpop.f32.mrb[0].mxu0
      %v2070 = vadd.f32 0.0, %v2069
      %v2071 = vpop.f32.mrb[0].mxu0
      %v2072 = vpop.f32.mrb[0].mxu0
      %v2073 = vadd.f32 0.0, %v2072
      %v2074 = vpop.f32.mrb[0].mxu0
      %2075 = vmatprep.mubr.bf16.mxu0 0
      %2076 = vmatmul.mubr.bf16.gmra.mrb[0].mxu0 %v1972
      %v2077 = vpop.f32.mrb[0].mxu0
      %v2078 = vadd.f32 0.0, %v2077
      %v2079 = vpop.f32.mrb[0].mxu0
      %v2080 = vpop.f32.mrb[0].mxu0
      %v2081 = vadd.f32 0.0, %v2080
      %v2082 = vpop.f32.mrb[0].mxu0
      %2083 = vmatprep.mubr.bf16.mxu0 0
      %2084 = vmatmul.mubr.bf16.gmra.mrb[0].mxu0 %v1975
      %v2085 = vpop.f32.mrb[0].mxu0
      %v2086 = vadd.f32 0.0, %v2085
      %v2087 = vpop.f32.mrb[0].mxu0
      %v2088 = vpop.f32.mrb[0].mxu0
      %v2089 = vadd.f32 0.0, %v2088
      %v2090 = vpop.f32.mrb[0].mxu0
      %2091 = vmatprep.mubr.bf16.mxu0 0
      %2092 = vmatmul.mubr.bf16.gmra.mrb[0].mxu0 %v1978
      %v2093 = vpop.f32.mrb[0].mxu0
      %v2094 = vadd.f32 0.0, %v2093
      %v2095 = vpop.f32.mrb[0].mxu0
      %v2096 = vpop.f32.mrb[0].mxu0
      %v2097 = vadd.f32 0.0, %v2096
      %v2098 = vpop.f32.mrb[0].mxu0
      %2099 = vmatprep.mubr.bf16.mxu0 0
      %2100 = vmatmul.mubr.bf16.gmra.mrb[0].mxu0 %v1981
      %v2101 = vpop.f32.mrb[0].mxu0
      %v2102 = vadd.f32 0.0, %v2101
      %v2103 = vpop.f32.mrb[0].mxu0
      %v2104 = vpop.f32.mrb[0].mxu0
      %v2105 = vadd.f32 0.0, %v2104
      %v2106 = vpop.f32.mrb[0].mxu0
      %2107 = vmatprep.mubr.bf16.mxu0 0
      %2108 = vmatmul.mubr.bf16.gmra.mrb[0].mxu0 %v1984
      %v2109 = vpop.f32.mrb[0].mxu0
      %v2110 = vadd.f32 0.0, %v2109
      %v2111 = vpop.f32.mrb[0].mxu0
      %v2112 = vpop.f32.mrb[0].mxu0
      %v2113 = vadd.f32 0.0, %v2112
      %v2114 = vpop.f32.mrb[0].mxu0
      %2115 = vmatprep.mubr.bf16.mxu0 0
      %2116 = vmatmul.mubr.bf16.gmra.mrb[0].mxu0 %v1987
      %v2117 = vpop.f32.mrb[0].mxu0
      %v2118 = vadd.f32 0.0, %v2117
      %v2119 = vpop.f32.mrb[0].mxu0
      %v2120 = vpop.f32.mrb[0].mxu0
      %v2121 = vadd.f32 0.0, %v2120
      %v2122 = vpop.f32.mrb[0].mxu0
      %2123 = vmatprep.mubr.bf16.mxu0 0
      %2124 = vmatmul.mubr.bf16.gmra.mrb[0].mxu0 %v1990
      %v2125 = vpop.f32.mrb[0].mxu0
      %v2126 = vadd.f32 0.0, %v2125
      %v2127 = vpop.f32.mrb[0].mxu0
      %v2128 = vpop.f32.mrb[0].mxu0
      %v2129 = vadd.f32 0.0, %v2128
      %v2130 = vpop.f32.mrb[0].mxu0
      %2131 = vmatprep.mubr.bf16.mxu0 0
      %2132 = vmatmul.mubr.bf16.gmra.mrb[0].mxu0 %v1993
      %v2133 = vpop.f32.mrb[0].mxu0
      %v2134 = vadd.f32 0.0, %v2133
      %v2135 = vpop.f32.mrb[0].mxu0
      %v2136 = vpop.f32.mrb[0].mxu0
      %v2137 = vadd.f32 0.0, %v2136
      %v2138 = vpop.f32.mrb[0].mxu0
      %2139 = vmatprep.mubr.bf16.mxu0 0
      %2140 = vmatmul.mubr.bf16.gmra.mrb[0].mxu0 %v1996
      %v2141 = vpop.f32.mrb[0].mxu0
      %v2142 = vadd.f32 0.0, %v2141
      %v2143 = vpop.f32.mrb[0].mxu0
      %v2144 = vpop.f32.mrb[0].mxu0
      %v2145 = vadd.f32 0.0, %v2144
      %v2146 = vpop.f32.mrb[0].mxu0
      %2147 = vmatprep.mubr.bf16.mxu0 0
      %2148 = vmatmul.mubr.bf16.gmra.mrb[0].mxu0 %v1999
      %v2149 = vpop.f32.mrb[0].mxu0
      %v2150 = vadd.f32 0.0, %v2149
      %v2151 = vpop.f32.mrb[0].mxu0
      %v2152 = vpop.f32.mrb[0].mxu0
      %v2153 = vadd.f32 0.0, %v2152
      %v2154 = vpop.f32.mrb[0].mxu0
      %2155 = vmatprep.mubr.bf16.mxu0 0
      %2156 = vmatmul.mubr.bf16.gmra.mrb[0].mxu0 %v2002
      %v2157 = vpop.f32.mrb[0].mxu0
      %v2158 = vadd.f32 0.0, %v2157
      %v2159 = vpop.f32.mrb[0].mxu0
      %v2160 = vpop.f32.mrb[0].mxu0
      %v2161 = vadd.f32 0.0, %v2160
      %v2162 = vpop.f32.mrb[0].mxu0
      %2163 = vmatprep.mubr.bf16.mxu0 0
      %2164 = vmatmul.mubr.bf16.gmra.mrb[0].mxu0 %v2005
      %v2165 = vpop.f32.mrb[0].mxu0
      %v2166 = vadd.f32 0.0, %v2165
      %v2167 = vpop.f32.mrb[0].mxu0
      %v2168 = vpop.f32.mrb[0].mxu0
      %v2169 = vadd.f32 0.0, %v2168
      %v2170 = vpop.f32.mrb[0].mxu0
      %2171 = vdwg.mxu0
      %v2172 = vsel %vm1362, %v609, 0
      %v2174 = vsel %vm1362, %v610, 0
      %v2176 = vsel %vm1362, %v611, 0
      %v2178 = vsel %vm1362, %v612, 0
      %v2180 = vsel %vm1362, %v613, 0
      %v2182 = vsel %vm1362, %v614, 0
      %v2184 = vsel %vm1362, %v615, 0
      %v2186 = vsel %vm1362, %v616, 0
      %v2188 = vsel %vm1362, %v617, 0
      %v2190 = vsel %vm1362, %v618, 0
      %v2192 = vsel %vm1362, %v619, 0
      %v2194 = vsel %vm1362, %v620, 0
      %v2196 = vsel %vm1362, %v621, 0
      %v2198 = vsel %vm1362, %v622, 0
      %v2200 = vsel %vm1362, %v623, 0
      %v2202 = vsel %vm1362, %v624, 0
      %v2205 = vsel %vm1680, %v1957, 0
      %2207 = vmatprep.subr.bf16.mxu0 0
      %2208 = vmatpush1.bf16.msra.mxu0 %v2205
      %2209 = vmatprep.subr.bf16.mxu0 0
      %2210 = vmatpush1.bf16.msra.mxu0 0
      %2211 = vmatprep.subr.bf16.mxu0 0
      %2212 = vmatpush1.bf16.msra.mxu0 0
      %2213 = vmatprep.subr.bf16.mxu0 0
      %2214 = vmatpush1.bf16.msra.mxu0 0
      %2215 = vmatprep.subr.bf16.mxu0 0
      %2216 = vmatpush1.bf16.msra.mxu0 0
      %2217 = vmatprep.subr.bf16.mxu0 0
      %2218 = vmatpush1.bf16.msra.mxu0 0
      %2219 = vmatprep.subr.bf16.mxu0 0
      %2220 = vmatpush1.bf16.msra.mxu0 0
      %2221 = vmatprep.subr.bf16.mxu0 0
      %2222 = vmatpush1.bf16.msra.mxu0 0
      %2223 = vmatprep.subr.bf16.mxu0 0
      %2224 = vmatpush1.bf16.msra.mxu0 0
      %2225 = vmatprep.subr.bf16.mxu0 0
      %2226 = vmatpush1.bf16.msra.mxu0 0
      %2227 = vmatprep.subr.bf16.mxu0 0
      %2228 = vmatpush1.bf16.msra.mxu0 0
      %2229 = vmatprep.subr.bf16.mxu0 0
      %2230 = vmatpush1.bf16.msra.mxu0 0
      %2231 = vmatprep.subr.bf16.mxu0 0
      %2232 = vmatpush1.bf16.msra.mxu0 0
      %2233 = vmatprep.subr.bf16.mxu0 0
      %2234 = vmatpush1.bf16.msra.mxu0 0
      %2235 = vmatprep.subr.bf16.mxu0 0
      %2236 = vmatpush1.bf16.msra.mxu0 0
      %2237 = vmatprep.subr.bf16.mxu0 0
      %2238 = vmatpush1.bf16.msra.mxu0 0
      %2239 = vmatprep.mubr.bf16.mxu0 0
      %2240 = vmatmul.mubr.bf16.gmra.mrb[0].mxu0 %v2172
      %v2241 = vpop.f32.mrb[0].mxu0
      %v2242 = vadd.f32 %v2046, %v2241
      %v2243 = vpop.f32.mrb[0].mxu0
      %v2244 = vpop.f32.mrb[0].mxu0
      %v2245 = vadd.f32 %v2049, %v2244
      %v2246 = vpop.f32.mrb[0].mxu0
      %2247 = vmatprep.mubr.bf16.mxu0 0
      %2248 = vmatmul.mubr.bf16.gmra.mrb[0].mxu0 %v2174
      %v2249 = vpop.f32.mrb[0].mxu0
      %v2250 = vadd.f32 %v2054, %v2249
      %v2251 = vpop.f32.mrb[0].mxu0
      %v2252 = vpop.f32.mrb[0].mxu0
      %v2253 = vadd.f32 %v2057, %v2252
      %v2254 = vpop.f32.mrb[0].mxu0
      %2255 = vmatprep.mubr.bf16.mxu0 0
      %2256 = vmatmul.mubr.bf16.gmra.mrb[0].mxu0 %v2176
      %v2257 = vpop.f32.mrb[0].mxu0
      %v2258 = vadd.f32 %v2062, %v2257
      %v2259 = vpop.f32.mrb[0].mxu0
      %v2260 = vpop.f32.mrb[0].mxu0
      %v2261 = vadd.f32 %v2065, %v2260
      %v2262 = vpop.f32.mrb[0].mxu0
      %2263 = vmatprep.mubr.bf16.mxu0 0
      %2264 = vmatmul.mubr.bf16.gmra.mrb[0].mxu0 %v2178
      %v2265 = vpop.f32.mrb[0].mxu0
      %v2266 = vadd.f32 %v2070, %v2265
      %v2267 = vpop.f32.mrb[0].mxu0
      %v2268 = vpop.f32.mrb[0].mxu0
      %v2269 = vadd.f32 %v2073, %v2268
      %v2270 = vpop.f32.mrb[0].mxu0
      %2271 = vmatprep.mubr.bf16.mxu0 0
      %2272 = vmatmul.mubr.bf16.gmra.mrb[0].mxu0 %v2180
      %v2273 = vpop.f32.mrb[0].mxu0
      %v2274 = vadd.f32 %v2078, %v2273
      %v2275 = vpop.f32.mrb[0].mxu0
      %v2276 = vpop.f32.mrb[0].mxu0
      %v2277 = vadd.f32 %v2081, %v2276
      %v2278 = vpop.f32.mrb[0].mxu0
      %2279 = vmatprep.mubr.bf16.mxu0 0
      %2280 = vmatmul.mubr.bf16.gmra.mrb[0].mxu0 %v2182
      %v2281 = vpop.f32.mrb[0].mxu0
      %v2282 = vadd.f32 %v2086, %v2281
      %v2283 = vpop.f32.mrb[0].mxu0
      %v2284 = vpop.f32.mrb[0].mxu0
      %v2285 = vadd.f32 %v2089, %v2284
      %v2286 = vpop.f32.mrb[0].mxu0
      %2287 = vmatprep.mubr.bf16.mxu0 0
      %2288 = vmatmul.mubr.bf16.gmra.mrb[0].mxu0 %v2184
      %v2289 = vpop.f32.mrb[0].mxu0
      %v2290 = vadd.f32 %v2094, %v2289
      %v2291 = vpop.f32.mrb[0].mxu0
      %v2292 = vpop.f32.mrb[0].mxu0
      %v2293 = vadd.f32 %v2097, %v2292
      %v2294 = vpop.f32.mrb[0].mxu0
      %2295 = vmatprep.mubr.bf16.mxu0 0
      %2296 = vmatmul.mubr.bf16.gmra.mrb[0].mxu0 %v2186
      %v2297 = vpop.f32.mrb[0].mxu0
      %v2298 = vadd.f32 %v2102, %v2297
      %v2299 = vpop.f32.mrb[0].mxu0
      %v2300 = vpop.f32.mrb[0].mxu0
      %v2301 = vadd.f32 %v2105, %v2300
      %v2302 = vpop.f32.mrb[0].mxu0
      %2303 = vmatprep.mubr.bf16.mxu0 0
      %2304 = vmatmul.mubr.bf16.gmra.mrb[0].mxu0 %v2188
      %v2305 = vpop.f32.mrb[0].mxu0
      %v2306 = vadd.f32 %v2110, %v2305
      %v2307 = vpop.f32.mrb[0].mxu0
      %v2308 = vpop.f32.mrb[0].mxu0
      %v2309 = vadd.f32 %v2113, %v2308
      %v2310 = vpop.f32.mrb[0].mxu0
      %2311 = vmatprep.mubr.bf16.mxu0 0
      %2312 = vmatmul.mubr.bf16.gmra.mrb[0].mxu0 %v2190
      %v2313 = vpop.f32.mrb[0].mxu0
      %v2314 = vadd.f32 %v2118, %v2313
      %v2315 = vpop.f32.mrb[0].mxu0
      %v2316 = vpop.f32.mrb[0].mxu0
      %v2317 = vadd.f32 %v2121, %v2316
      %v2318 = vpop.f32.mrb[0].mxu0
      %2319 = vmatprep.mubr.bf16.mxu0 0
      %2320 = vmatmul.mubr.bf16.gmra.mrb[0].mxu0 %v2192
      %v2321 = vpop.f32.mrb[0].mxu0
      %v2322 = vadd.f32 %v2126, %v2321
      %v2323 = vpop.f32.mrb[0].mxu0
      %v2324 = vpop.f32.mrb[0].mxu0
      %v2325 = vadd.f32 %v2129, %v2324
      %v2326 = vpop.f32.mrb[0].mxu0
      %2327 = vmatprep.mubr.bf16.mxu0 0
      %2328 = vmatmul.mubr.bf16.gmra.mrb[0].mxu0 %v2194
      %v2329 = vpop.f32.mrb[0].mxu0
      %v2330 = vadd.f32 %v2134, %v2329
      %v2331 = vpop.f32.mrb[0].mxu0
      %v2332 = vpop.f32.mrb[0].mxu0
      %v2333 = vadd.f32 %v2137, %v2332
      %v2334 = vpop.f32.mrb[0].mxu0
      %2335 = vmatprep.mubr.bf16.mxu0 0
      %2336 = vmatmul.mubr.bf16.gmra.mrb[0].mxu0 %v2196
      %v2337 = vpop.f32.mrb[0].mxu0
      %v2338 = vadd.f32 %v2142, %v2337
      %v2339 = vpop.f32.mrb[0].mxu0
      %v2340 = vpop.f32.mrb[0].mxu0
      %v2341 = vadd.f32 %v2145, %v2340
      %v2342 = vpop.f32.mrb[0].mxu0
      %2343 = vmatprep.mubr.bf16.mxu0 0
      %2344 = vmatmul.mubr.bf16.gmra.mrb[0].mxu0 %v2198
      %v2345 = vpop.f32.mrb[0].mxu0
      %v2346 = vadd.f32 %v2150, %v2345
      %v2347 = vpop.f32.mrb[0].mxu0
      %v2348 = vpop.f32.mrb[0].mxu0
      %v2349 = vadd.f32 %v2153, %v2348
      %v2350 = vpop.f32.mrb[0].mxu0
      %2351 = vmatprep.mubr.bf16.mxu0 0
      %2352 = vmatmul.mubr.bf16.gmra.mrb[0].mxu0 %v2200
      %v2353 = vpop.f32.mrb[0].mxu0
      %v2354 = vadd.f32 %v2158, %v2353
      %v2355 = vpop.f32.mrb[0].mxu0
      %v2356 = vpop.f32.mrb[0].mxu0
      %v2357 = vadd.f32 %v2161, %v2356
      %v2358 = vpop.f32.mrb[0].mxu0
      %2359 = vmatprep.mubr.bf16.mxu0 0
      %2360 = vmatmul.mubr.bf16.gmra.mrb[0].mxu0 %v2202
      %v2361 = vpop.f32.mrb[0].mxu0
      %v2362 = vadd.f32 %v2166, %v2361
      %v2363 = vpop.f32.mrb[0].mxu0
      %v2364 = vpop.f32.mrb[0].mxu0
      %v2365 = vadd.f32 %v2169, %v2364
      %v2366 = vpop.f32.mrb[0].mxu0
      %2367 = vdwg.mxu0
      %v2368 = vld [vmem:[%s5] sm:$0x1]
      %v2370 = vlaneseq
      %v2371 = vshrl.u32 %v2370, 7
      %v2372 = vsub.s32 0, %v2371
      %v2373 = vrot.slane %v2368, %v2372
      %v2375 = vadd.f32 %v2242, %v2373
      %v2376 = vadd.f32 %v2245, %v2373
      %v2377 = vadd.f32 %v2250, %v2373
      %v2378 = vadd.f32 %v2253, %v2373
      %v2379 = vadd.f32 %v2258, %v2373
      %v2380 = vadd.f32 %v2261, %v2373
      %v2381 = vadd.f32 %v2266, %v2373
      %v2382 = vadd.f32 %v2269, %v2373
      %v2383 = vadd.f32 %v2274, %v2373
      %v2384 = vadd.f32 %v2277, %v2373
      %v2385 = vadd.f32 %v2282, %v2373
      %v2386 = vadd.f32 %v2285, %v2373
      %v2387 = vadd.f32 %v2290, %v2373
      %v2388 = vadd.f32 %v2293, %v2373
      %v2389 = vadd.f32 %v2298, %v2373
      %v2390 = vadd.f32 %v2301, %v2373
      %v2391 = vadd.f32 %v2306, %v2373
      %v2392 = vadd.f32 %v2309, %v2373
      %v2393 = vadd.f32 %v2314, %v2373
      %v2394 = vadd.f32 %v2317, %v2373
      %v2395 = vadd.f32 %v2322, %v2373
      %v2396 = vadd.f32 %v2325, %v2373
      %v2397 = vadd.f32 %v2330, %v2373
      %v2398 = vadd.f32 %v2333, %v2373
      %v2399 = vadd.f32 %v2338, %v2373
      %v2400 = vadd.f32 %v2341, %v2373
      %v2401 = vadd.f32 %v2346, %v2373
      %v2402 = vadd.f32 %v2349, %v2373
      %v2403 = vadd.f32 %v2354, %v2373
      %v2404 = vadd.f32 %v2357, %v2373
      %v2405 = vadd.f32 %v2362, %v2373
      %v2406 = vadd.f32 %v2365, %v2373
      %v2407 = vpack.c.bf16 %v2376, %v2375
      %v2408 = vpack.c.bf16 %v2378, %v2377
      %v2409 = vpack.c.bf16 %v2380, %v2379
      %v2410 = vpack.c.bf16 %v2382, %v2381
      %v2411 = vpack.c.bf16 %v2384, %v2383
      %v2412 = vpack.c.bf16 %v2386, %v2385
      %v2413 = vpack.c.bf16 %v2388, %v2387
      %v2414 = vpack.c.bf16 %v2390, %v2389
      %v2415 = vpack.c.bf16 %v2392, %v2391
      %v2416 = vpack.c.bf16 %v2394, %v2393
      %v2417 = vpack.c.bf16 %v2396, %v2395
      %v2418 = vpack.c.bf16 %v2398, %v2397
      %v2419 = vpack.c.bf16 %v2400, %v2399
      %v2420 = vpack.c.bf16 %v2402, %v2401
      %v2421 = vpack.c.bf16 %v2404, %v2403
      %v2422 = vpack.c.bf16 %v2406, %v2405
      %v2423 = vld [vmem:[%s6] sm:$0xf]
      %v2424 = vld [vmem:[%s6 + $0x4] sm:$0xf]
      %v2425 = vld [vmem:[%s6 + $0x8] sm:$0xf]
      %v2426 = vld [vmem:[%s6 + $0xc] sm:$0xf]
      %v2427 = vld [vmem:[%s6 + $0x10] sm:$0xf]
      %v2428 = vld [vmem:[%s6 + $0x14] sm:$0xf]
      %v2429 = vld [vmem:[%s6 + $0x18] sm:$0xf]
      %v2430 = vld [vmem:[%s6 + $0x1c] sm:$0xf]
      %v2431 = vld [vmem:[%s6 + $0x20] sm:$0xf]
      %v2432 = vld [vmem:[%s7] sm:$0x1]
      %v2434 = vshrl.u32 %v2407, 16
      %v2436 = vrot.slane %v2434, 7
      %v2437 = vshll.u32 %v2407, 16
      %v2439 = vor.u32 %v2436, %v2437
      %v2441 = vshrl.u32 %v2408, 16
      %v2443 = vrot.slane %v2441, 7
      %v2444 = vshll.u32 %v2408, 16
      %v2446 = vor.u32 %v2443, %v2444
      %v2448 = vshrl.u32 %v2409, 16
      %v2450 = vrot.slane %v2448, 7
      %v2451 = vshll.u32 %v2409, 16
      %v2453 = vor.u32 %v2450, %v2451
      %v2455 = vshrl.u32 %v2410, 16
      %v2457 = vrot.slane %v2455, 7
      %v2458 = vshll.u32 %v2410, 16
      %v2460 = vor.u32 %v2457, %v2458
      %v2462 = vshrl.u32 %v2411, 16
      %v2464 = vrot.slane %v2462, 7
      %v2465 = vshll.u32 %v2411, 16
      %v2467 = vor.u32 %v2464, %v2465
      %v2469 = vshrl.u32 %v2412, 16
      %v2471 = vrot.slane %v2469, 7
      %v2472 = vshll.u32 %v2412, 16
      %v2474 = vor.u32 %v2471, %v2472
      %v2476 = vshrl.u32 %v2413, 16
      %v2478 = vrot.slane %v2476, 7
      %v2479 = vshll.u32 %v2413, 16
      %v2481 = vor.u32 %v2478, %v2479
      %v2483 = vshrl.u32 %v2414, 16
      %v2485 = vrot.slane %v2483, 7
      %v2486 = vshll.u32 %v2414, 16
      %v2488 = vor.u32 %v2485, %v2486
      %v2490 = vshrl.u32 %v2415, 16
      %v2492 = vrot.slane %v2490, 7
      %v2493 = vshll.u32 %v2415, 16
      %v2495 = vor.u32 %v2492, %v2493
      %v2497 = vshrl.u32 %v2416, 16
      %v2499 = vrot.slane %v2497, 7
      %v2500 = vshll.u32 %v2416, 16
      %v2502 = vor.u32 %v2499, %v2500
      %v2504 = vshrl.u32 %v2417, 16
      %v2506 = vrot.slane %v2504, 7
      %v2507 = vshll.u32 %v2417, 16
      %v2509 = vor.u32 %v2506, %v2507
      %v2511 = vshrl.u32 %v2418, 16
      %v2513 = vrot.slane %v2511, 7
      %v2514 = vshll.u32 %v2418, 16
      %v2516 = vor.u32 %v2513, %v2514
      %v2518 = vshrl.u32 %v2419, 16
      %v2520 = vrot.slane %v2518, 7
      %v2521 = vshll.u32 %v2419, 16
      %v2523 = vor.u32 %v2520, %v2521
      %v2525 = vshrl.u32 %v2420, 16
      %v2527 = vrot.slane %v2525, 7
      %v2528 = vshll.u32 %v2420, 16
      %v2530 = vor.u32 %v2527, %v2528
      %v2532 = vshrl.u32 %v2421, 16
      %v2534 = vrot.slane %v2532, 7
      %v2535 = vshll.u32 %v2421, 16
      %v2537 = vor.u32 %v2534, %v2535
      %v2539 = vshrl.u32 %v2422, 16
      %v2541 = vrot.slane %v2539, 7
      %v2542 = vshll.u32 %v2422, 16
      %v2544 = vor.u32 %v2541, %v2542
      %v2577 = vsel %vm780, 0, %v2439
      %v2578 = vsel %vm780, 0, %v2446
      %v2579 = vsel %vm780, 0, %v2453
      %v2580 = vsel %vm780, 0, %v2460
      %v2581 = vsel %vm780, 0, %v2467
      %v2582 = vsel %vm780, 0, %v2474
      %v2583 = vsel %vm780, 0, %v2481
      %v2584 = vsel %vm780, 0, %v2488
      %v2585 = vsel %vm780, 0, %v2495
      %v2586 = vsel %vm780, 0, %v2502
      %v2587 = vsel %vm780, 0, %v2509
      %v2588 = vsel %vm780, 0, %v2516
      %v2589 = vsel %vm780, 0, %v2523
      %v2590 = vsel %vm780, 0, %v2530
      %v2591 = vsel %vm780, 0, %v2537
      %v2592 = vsel %vm780, 0, %v2544
      %v2593 = vsel %vm780, %v2436, 0
      %v2594 = vsel %vm780, %v2443, 0
      %v2595 = vsel %vm780, %v2450, 0
      %v2596 = vsel %vm780, %v2457, 0
      %v2597 = vsel %vm780, %v2464, 0
      %v2598 = vsel %vm780, %v2471, 0
      %v2599 = vsel %vm780, %v2478, 0
      %v2600 = vsel %vm780, %v2485, 0
      %v2601 = vsel %vm780, %v2492, 0
      %v2602 = vsel %vm780, %v2499, 0
      %v2603 = vsel %vm780, %v2506, 0
      %v2604 = vsel %vm780, %v2513, 0
      %v2605 = vsel %vm780, %v2520, 0
      %v2606 = vsel %vm780, %v2527, 0
      %v2607 = vsel %vm780, %v2534, 0
      %v2608 = vsel %vm780, %v2541, 0
      %v2610 = vshrl.u32 %v2577, 16
      %v2612 = vshll.u32 %v2577, 16
      %v2614 = vrot.slane %v2612, 1
      %v2615 = vor.u32 %v2610, %v2614
      %v2617 = vshll.u32 %v2593, 16
      %v2619 = vrot.slane %v2617, 1
      %v2620 = vsel %vm815, %v2615, %v2619
      %v2622 = vshrl.u32 %v2578, 16
      %v2624 = vshll.u32 %v2578, 16
      %v2626 = vrot.slane %v2624, 1
      %v2627 = vor.u32 %v2622, %v2626
      %v2629 = vshll.u32 %v2594, 16
      %v2631 = vrot.slane %v2629, 1
      %v2632 = vsel %vm815, %v2627, %v2631
      %v2634 = vshrl.u32 %v2579, 16
      %v2636 = vshll.u32 %v2579, 16
      %v2638 = vrot.slane %v2636, 1
      %v2639 = vor.u32 %v2634, %v2638
      %v2641 = vshll.u32 %v2595, 16
      %v2643 = vrot.slane %v2641, 1
      %v2644 = vsel %vm815, %v2639, %v2643
      %v2646 = vshrl.u32 %v2580, 16
      %v2648 = vshll.u32 %v2580, 16
      %v2650 = vrot.slane %v2648, 1
      %v2651 = vor.u32 %v2646, %v2650
      %v2653 = vshll.u32 %v2596, 16
      %v2655 = vrot.slane %v2653, 1
      %v2656 = vsel %vm815, %v2651, %v2655
      %v2658 = vshrl.u32 %v2581, 16
      %v2660 = vshll.u32 %v2581, 16
      %v2662 = vrot.slane %v2660, 1
      %v2663 = vor.u32 %v2658, %v2662
      %v2665 = vshll.u32 %v2597, 16
      %v2667 = vrot.slane %v2665, 1
      %v2668 = vsel %vm815, %v2663, %v2667
      %v2670 = vshrl.u32 %v2582, 16
      %v2672 = vshll.u32 %v2582, 16
      %v2674 = vrot.slane %v2672, 1
      %v2675 = vor.u32 %v2670, %v2674
      %v2677 = vshll.u32 %v2598, 16
      %v2679 = vrot.slane %v2677, 1
      %v2680 = vsel %vm815, %v2675, %v2679
      %v2682 = vshrl.u32 %v2583, 16
      %v2684 = vshll.u32 %v2583, 16
      %v2686 = vrot.slane %v2684, 1
      %v2687 = vor.u32 %v2682, %v2686
      %v2689 = vshll.u32 %v2599, 16
      %v2691 = vrot.slane %v2689, 1
      %v2692 = vsel %vm815, %v2687, %v2691
      %v2694 = vshrl.u32 %v2584, 16
      %v2696 = vshll.u32 %v2584, 16
      %v2698 = vrot.slane %v2696, 1
      %v2699 = vor.u32 %v2694, %v2698
      %v2701 = vshll.u32 %v2600, 16
      %v2703 = vrot.slane %v2701, 1
      %v2704 = vsel %vm815, %v2699, %v2703
      %v2706 = vshrl.u32 %v2585, 16
      %v2708 = vshll.u32 %v2585, 16
      %v2710 = vrot.slane %v2708, 1
      %v2711 = vor.u32 %v2706, %v2710
      %v2713 = vshll.u32 %v2601, 16
      %v2715 = vrot.slane %v2713, 1
      %v2716 = vsel %vm815, %v2711, %v2715
      %v2718 = vshrl.u32 %v2586, 16
      %v2720 = vshll.u32 %v2586, 16
      %v2722 = vrot.slane %v2720, 1
      %v2723 = vor.u32 %v2718, %v2722
      %v2725 = vshll.u32 %v2602, 16
      %v2727 = vrot.slane %v2725, 1
      %v2728 = vsel %vm815, %v2723, %v2727
      %v2730 = vshrl.u32 %v2587, 16
      %v2732 = vshll.u32 %v2587, 16
      %v2734 = vrot.slane %v2732, 1
      %v2735 = vor.u32 %v2730, %v2734
      %v2737 = vshll.u32 %v2603, 16
      %v2739 = vrot.slane %v2737, 1
      %v2740 = vsel %vm815, %v2735, %v2739
      %v2742 = vshrl.u32 %v2588, 16
      %v2744 = vshll.u32 %v2588, 16
      %v2746 = vrot.slane %v2744, 1
      %v2747 = vor.u32 %v2742, %v2746
      %v2749 = vshll.u32 %v2604, 16
      %v2751 = vrot.slane %v2749, 1
      %v2752 = vsel %vm815, %v2747, %v2751
      %v2754 = vshrl.u32 %v2589, 16
      %v2756 = vshll.u32 %v2589, 16
      %v2758 = vrot.slane %v2756, 1
      %v2759 = vor.u32 %v2754, %v2758
      %v2761 = vshll.u32 %v2605, 16
      %v2763 = vrot.slane %v2761, 1
      %v2764 = vsel %vm815, %v2759, %v2763
      %v2766 = vshrl.u32 %v2590, 16
      %v2768 = vshll.u32 %v2590, 16
      %v2770 = vrot.slane %v2768, 1
      %v2771 = vor.u32 %v2766, %v2770
      %v2773 = vshll.u32 %v2606, 16
      %v2775 = vrot.slane %v2773, 1
      %v2776 = vsel %vm815, %v2771, %v2775
      %v2778 = vshrl.u32 %v2591, 16
      %v2780 = vshll.u32 %v2591, 16
      %v2782 = vrot.slane %v2780, 1
      %v2783 = vor.u32 %v2778, %v2782
      %v2785 = vshll.u32 %v2607, 16
      %v2787 = vrot.slane %v2785, 1
      %v2788 = vsel %vm815, %v2783, %v2787
      %v2819 = vrot.slane %v2577, 1
      %v2820 = vrot.slane %v2593, 1
      %v2821 = vsel %vm1040, %v2819, %v2820
      %v2822 = vrot.slane %v2578, 1
      %v2823 = vrot.slane %v2594, 1
      %v2824 = vsel %vm1040, %v2822, %v2823
      %v2825 = vrot.slane %v2579, 1
      %v2826 = vrot.slane %v2595, 1
      %v2827 = vsel %vm1040, %v2825, %v2826
      %v2828 = vrot.slane %v2580, 1
      %v2829 = vrot.slane %v2596, 1
      %v2830 = vsel %vm1040, %v2828, %v2829
      %v2831 = vrot.slane %v2581, 1
      %v2832 = vrot.slane %v2597, 1
      %v2833 = vsel %vm1040, %v2831, %v2832
      %v2834 = vrot.slane %v2582, 1
      %v2835 = vrot.slane %v2598, 1
      %v2836 = vsel %vm1040, %v2834, %v2835
      %v2837 = vrot.slane %v2583, 1
      %v2838 = vrot.slane %v2599, 1
      %v2839 = vsel %vm1040, %v2837, %v2838
      %v2840 = vrot.slane %v2584, 1
      %v2841 = vrot.slane %v2600, 1
      %v2842 = vsel %vm1040, %v2840, %v2841
      %v2843 = vrot.slane %v2585, 1
      %v2844 = vrot.slane %v2601, 1
      %v2845 = vsel %vm1040, %v2843, %v2844
      %v2846 = vrot.slane %v2586, 1
      %v2847 = vrot.slane %v2602, 1
      %v2848 = vsel %vm1040, %v2846, %v2847
      %v2849 = vrot.slane %v2587, 1
      %v2850 = vrot.slane %v2603, 1
      %v2851 = vsel %vm1040, %v2849, %v2850
      %v2852 = vrot.slane %v2588, 1
      %v2853 = vrot.slane %v2604, 1
      %v2854 = vsel %vm1040, %v2852, %v2853
      %v2855 = vrot.slane %v2589, 1
      %v2856 = vrot.slane %v2605, 1
      %v2857 = vsel %vm1040, %v2855, %v2856
      %v2858 = vrot.slane %v2590, 1
      %v2859 = vrot.slane %v2606, 1
      %v2860 = vsel %vm1040, %v2858, %v2859
      %v2861 = vrot.slane %v2591, 1
      %v2862 = vrot.slane %v2607, 1
      %v2863 = vsel %vm1040, %v2861, %v2862
      %v2865 = vshrl.u32 %v2592, 16
      %v2867 = vshll.u32 %v2592, 16
      %v2869 = vrot.slane %v2867, 1
      %v2870 = vor.u32 %v2865, %v2869
      %v2872 = vshll.u32 %v2608, 16
      %v2874 = vrot.slane %v2872, 1
      %v2875 = vsel %vm815, %v2870, %v2874
      %v2878 = vrot.slane %v2592, 1
      %v2879 = vrot.slane %v2608, 1
      %v2880 = vsel %vm1040, %v2878, %v2879
      %2881 = vrot.lane.b32.xlu0 %v827, 8
      %v2882 = vpop.permute.xlu0 %2881
      %2883 = vrot.lane.b32.xlu0 %v2620, 8
      %v2884 = vpop.permute.xlu0 %2883
      %2885 = vrot.lane.b32.xlu0 %v2632, 8
      %v2886 = vpop.permute.xlu0 %2885
      %2887 = vrot.lane.b32.xlu0 %v2644, 8
      %v2888 = vpop.permute.xlu0 %2887
      %2889 = vrot.lane.b32.xlu0 %v2656, 8
      %v2890 = vpop.permute.xlu0 %2889
      %2891 = vrot.lane.b32.xlu0 %v2668, 8
      %v2892 = vpop.permute.xlu0 %2891
      %2893 = vrot.lane.b32.xlu0 %v2680, 8
      %v2894 = vpop.permute.xlu0 %2893
      %2895 = vrot.lane.b32.xlu0 %v2692, 8
      %v2896 = vpop.permute.xlu0 %2895
      %2897 = vrot.lane.b32.xlu0 %v2704, 8
      %v2898 = vpop.permute.xlu0 %2897
      %2899 = vrot.lane.b32.xlu0 %v2716, 8
      %v2900 = vpop.permute.xlu0 %2899
      %2901 = vrot.lane.b32.xlu0 %v2728, 8
      %v2902 = vpop.permute.xlu0 %2901
      %2903 = vrot.lane.b32.xlu0 %v2740, 8
      %v2904 = vpop.permute.xlu0 %2903
      %2905 = vrot.lane.b32.xlu0 %v2752, 8
      %v2906 = vpop.permute.xlu0 %2905
      %2907 = vrot.lane.b32.xlu0 %v2764, 8
      %v2908 = vpop.permute.xlu0 %2907
      %2909 = vrot.lane.b32.xlu0 %v2776, 8
      %v2910 = vpop.permute.xlu0 %2909
      %2911 = vrot.lane.b32.xlu0 %v2788, 8
      %v2912 = vpop.permute.xlu0 %2911
      %2913 = vrot.lane.b32.xlu0 %v1043, 16
      %v2914 = vpop.permute.xlu0 %2913
      %2915 = vrot.lane.b32.xlu0 %v2821, 16
      %v2916 = vpop.permute.xlu0 %2915
      %2917 = vrot.lane.b32.xlu0 %v2824, 16
      %v2918 = vpop.permute.xlu0 %2917
      %2919 = vrot.lane.b32.xlu0 %v2827, 16
      %v2920 = vpop.permute.xlu0 %2919
      %2921 = vrot.lane.b32.xlu0 %v2830, 16
      %v2922 = vpop.permute.xlu0 %2921
      %2923 = vrot.lane.b32.xlu0 %v2833, 16
      %v2924 = vpop.permute.xlu0 %2923
      %2925 = vrot.lane.b32.xlu0 %v2836, 16
      %v2926 = vpop.permute.xlu0 %2925
      %2927 = vrot.lane.b32.xlu0 %v2839, 16
      %v2928 = vpop.permute.xlu0 %2927
      %2929 = vrot.lane.b32.xlu0 %v2842, 16
      %v2930 = vpop.permute.xlu0 %2929
      %2931 = vrot.lane.b32.xlu0 %v2845, 16
      %v2932 = vpop.permute.xlu0 %2931
      %2933 = vrot.lane.b32.xlu0 %v2848, 16
      %v2934 = vpop.permute.xlu0 %2933
      %2935 = vrot.lane.b32.xlu0 %v2851, 16
      %v2936 = vpop.permute.xlu0 %2935
      %2937 = vrot.lane.b32.xlu0 %v2854, 16
      %v2938 = vpop.permute.xlu0 %2937
      %2939 = vrot.lane.b32.xlu0 %v2857, 16
      %v2940 = vpop.permute.xlu0 %2939
      %2941 = vrot.lane.b32.xlu0 %v2860, 16
      %v2942 = vpop.permute.xlu0 %2941
      %2943 = vrot.lane.b32.xlu0 %v2863, 16
      %v2944 = vpop.permute.xlu0 %2943
      %2945 = vrot.lane.b32.xlu0 %v2577, 24
      %v2946 = vpop.permute.xlu0 %2945
      %2947 = vrot.lane.b32.xlu0 %v2578, 24
      %v2948 = vpop.permute.xlu0 %2947
      %2949 = vrot.lane.b32.xlu0 %v2579, 24
      %v2950 = vpop.permute.xlu0 %2949
      %2951 = vrot.lane.b32.xlu0 %v2580, 24
      %v2952 = vpop.permute.xlu0 %2951
      %2953 = vrot.lane.b32.xlu0 %v2581, 24
      %v2954 = vpop.permute.xlu0 %2953
      %2955 = vrot.lane.b32.xlu0 %v2582, 24
      %v2956 = vpop.permute.xlu0 %2955
      %2957 = vrot.lane.b32.xlu0 %v2583, 24
      %v2958 = vpop.permute.xlu0 %2957
      %2959 = vrot.lane.b32.xlu0 %v2584, 24
      %v2960 = vpop.permute.xlu0 %2959
      %2961 = vrot.lane.b32.xlu0 %v2585, 24
      %v2962 = vpop.permute.xlu0 %2961
      %2963 = vrot.lane.b32.xlu0 %v2586, 24
      %v2964 = vpop.permute.xlu0 %2963
      %2965 = vrot.lane.b32.xlu0 %v2587, 24
      %v2966 = vpop.permute.xlu0 %2965
      %2967 = vrot.lane.b32.xlu0 %v2588, 24
      %v2968 = vpop.permute.xlu0 %2967
      %2969 = vrot.lane.b32.xlu0 %v2589, 24
      %v2970 = vpop.permute.xlu0 %2969
      %2971 = vrot.lane.b32.xlu0 %v2590, 24
      %v2972 = vpop.permute.xlu0 %2971
      %2973 = vrot.lane.b32.xlu0 %v2591, 24
      %v2974 = vpop.permute.xlu0 %2973
      %2975 = vrot.lane.b32.xlu0 %v2592, 24
      %v2976 = vpop.permute.xlu0 %2975
      %2977 = vrot.lane.b32.xlu0 %v2620, 32
      %v2978 = vpop.permute.xlu0 %2977
      %2979 = vrot.lane.b32.xlu0 %v2632, 32
      %v2980 = vpop.permute.xlu0 %2979
      %2981 = vrot.lane.b32.xlu0 %v2644, 32
      %v2982 = vpop.permute.xlu0 %2981
      %2983 = vrot.lane.b32.xlu0 %v2656, 32
      %v2984 = vpop.permute.xlu0 %2983
      %2985 = vrot.lane.b32.xlu0 %v2668, 32
      %v2986 = vpop.permute.xlu0 %2985
      %2987 = vrot.lane.b32.xlu0 %v2680, 32
      %v2988 = vpop.permute.xlu0 %2987
      %2989 = vrot.lane.b32.xlu0 %v2692, 32
      %v2990 = vpop.permute.xlu0 %2989
      %2991 = vrot.lane.b32.xlu0 %v2704, 32
      %v2992 = vpop.permute.xlu0 %2991
      %2993 = vrot.lane.b32.xlu0 %v2716, 32
      %v2994 = vpop.permute.xlu0 %2993
      %2995 = vrot.lane.b32.xlu0 %v2728, 32
      %v2996 = vpop.permute.xlu0 %2995
      %2997 = vrot.lane.b32.xlu0 %v2740, 32
      %v2998 = vpop.permute.xlu0 %2997
      %2999 = vrot.lane.b32.xlu0 %v2752, 32
      %v3000 = vpop.permute.xlu0 %2999
      %3001 = vrot.lane.b32.xlu0 %v2764, 32
      %v3002 = vpop.permute.xlu0 %3001
      %3003 = vrot.lane.b32.xlu0 %v2776, 32
      %v3004 = vpop.permute.xlu0 %3003
      %3005 = vrot.lane.b32.xlu0 %v2788, 32
      %v3006 = vpop.permute.xlu0 %3005
      %3007 = vrot.lane.b32.xlu0 %v2875, 32
      %v3008 = vpop.permute.xlu0 %3007
      %3009 = vrot.lane.b32.xlu0 %v2821, 40
      %v3010 = vpop.permute.xlu0 %3009
      %3011 = vrot.lane.b32.xlu0 %v2824, 40
      %v3012 = vpop.permute.xlu0 %3011
      %3013 = vrot.lane.b32.xlu0 %v2827, 40
      %v3014 = vpop.permute.xlu0 %3013
      %3015 = vrot.lane.b32.xlu0 %v2830, 40
      %v3016 = vpop.permute.xlu0 %3015
      %3017 = vrot.lane.b32.xlu0 %v2833, 40
      %v3018 = vpop.permute.xlu0 %3017
      %3019 = vrot.lane.b32.xlu0 %v2836, 40
      %v3020 = vpop.permute.xlu0 %3019
      %3021 = vrot.lane.b32.xlu0 %v2839, 40
      %v3022 = vpop.permute.xlu0 %3021
      %3023 = vrot.lane.b32.xlu0 %v2842, 40
      %v3024 = vpop.permute.xlu0 %3023
      %3025 = vrot.lane.b32.xlu0 %v2845, 40
      %v3026 = vpop.permute.xlu0 %3025
      %3027 = vrot.lane.b32.xlu0 %v2848, 40
      %v3028 = vpop.permute.xlu0 %3027
      %3029 = vrot.lane.b32.xlu0 %v2851, 40
      %v3030 = vpop.permute.xlu0 %3029
      %3031 = vrot.lane.b32.xlu0 %v2854, 40
      %v3032 = vpop.permute.xlu0 %3031
      %3033 = vrot.lane.b32.xlu0 %v2857, 40
      %v3034 = vpop.permute.xlu0 %3033
      %3035 = vrot.lane.b32.xlu0 %v2860, 40
      %v3036 = vpop.permute.xlu0 %3035
      %3037 = vrot.lane.b32.xlu0 %v2863, 40
      %v3038 = vpop.permute.xlu0 %3037
      %3039 = vrot.lane.b32.xlu0 %v2880, 40
      %v3040 = vpop.permute.xlu0 %3039
      %3041 = vrot.lane.b32.xlu0 %v2578, 48
      %v3042 = vpop.permute.xlu0 %3041
      %3043 = vrot.lane.b32.xlu0 %v2579, 48
      %v3044 = vpop.permute.xlu0 %3043
      %3045 = vrot.lane.b32.xlu0 %v2580, 48
      %v3046 = vpop.permute.xlu0 %3045
      %3047 = vrot.lane.b32.xlu0 %v2581, 48
      %v3048 = vpop.permute.xlu0 %3047
      %3049 = vrot.lane.b32.xlu0 %v2582, 48
      %v3050 = vpop.permute.xlu0 %3049
      %3051 = vrot.lane.b32.xlu0 %v2583, 48
      %v3052 = vpop.permute.xlu0 %3051
      %3053 = vrot.lane.b32.xlu0 %v2584, 48
      %v3054 = vpop.permute.xlu0 %3053
      %3055 = vrot.lane.b32.xlu0 %v2585, 48
      %v3056 = vpop.permute.xlu0 %3055
      %3057 = vrot.lane.b32.xlu0 %v2586, 48
      %v3058 = vpop.permute.xlu0 %3057
      %3059 = vrot.lane.b32.xlu0 %v2587, 48
      %v3060 = vpop.permute.xlu0 %3059
      %3061 = vrot.lane.b32.xlu0 %v2588, 48
      %v3062 = vpop.permute.xlu0 %3061
      %3063 = vrot.lane.b32.xlu0 %v2589, 48
      %v3064 = vpop.permute.xlu0 %3063
      %3065 = vrot.lane.b32.xlu0 %v2590, 48
      %v3066 = vpop.permute.xlu0 %3065
      %3067 = vrot.lane.b32.xlu0 %v2591, 48
      %v3068 = vpop.permute.xlu0 %3067
      %3069 = vrot.lane.b32.xlu0 %v2592, 48
      %v3070 = vpop.permute.xlu0 %3069
      %3071 = vrot.lane.b32.xlu0 %v781, 48
      %v3072 = vpop.permute.xlu0 %3071
      %3073 = vrot.lane.b32.xlu0 %v2632, 56
      %v3074 = vpop.permute.xlu0 %3073
      %3075 = vrot.lane.b32.xlu0 %v2644, 56
      %v3076 = vpop.permute.xlu0 %3075
      %3077 = vrot.lane.b32.xlu0 %v2656, 56
      %v3078 = vpop.permute.xlu0 %3077
      %3079 = vrot.lane.b32.xlu0 %v2668, 56
      %v3080 = vpop.permute.xlu0 %3079
      %3081 = vrot.lane.b32.xlu0 %v2680, 56
      %v3082 = vpop.permute.xlu0 %3081
      %3083 = vrot.lane.b32.xlu0 %v2692, 56
      %v3084 = vpop.permute.xlu0 %3083
      %3085 = vrot.lane.b32.xlu0 %v2704, 56
      %v3086 = vpop.permute.xlu0 %3085
      %3087 = vrot.lane.b32.xlu0 %v2716, 56
      %v3088 = vpop.permute.xlu0 %3087
      %3089 = vrot.lane.b32.xlu0 %v2728, 56
      %v3090 = vpop.permute.xlu0 %3089
      %3091 = vrot.lane.b32.xlu0 %v2740, 56
      %v3092 = vpop.permute.xlu0 %3091
      %3093 = vrot.lane.b32.xlu0 %v2752, 56
      %v3094 = vpop.permute.xlu0 %3093
      %3095 = vrot.lane.b32.xlu0 %v2764, 56
      %v3096 = vpop.permute.xlu0 %3095
      %3097 = vrot.lane.b32.xlu0 %v2776, 56
      %v3098 = vpop.permute.xlu0 %3097
      %3099 = vrot.lane.b32.xlu0 %v2788, 56
      %v3100 = vpop.permute.xlu0 %3099
      %3101 = vrot.lane.b32.xlu0 %v2875, 56
      %v3102 = vpop.permute.xlu0 %3101
      %3103 = vrot.lane.b32.xlu0 %v827, 56
      %v3104 = vpop.permute.xlu0 %3103
      %3105 = vrot.lane.b32.xlu0 %v2824, 64
      %v3106 = vpop.permute.xlu0 %3105
      %3107 = vrot.lane.b32.xlu0 %v2827, 64
      %v3108 = vpop.permute.xlu0 %3107
      %3109 = vrot.lane.b32.xlu0 %v2830, 64
      %v3110 = vpop.permute.xlu0 %3109
      %3111 = vrot.lane.b32.xlu0 %v2833, 64
      %v3112 = vpop.permute.xlu0 %3111
      %3113 = vrot.lane.b32.xlu0 %v2836, 64
      %v3114 = vpop.permute.xlu0 %3113
      %3115 = vrot.lane.b32.xlu0 %v2839, 64
      %v3116 = vpop.permute.xlu0 %3115
      %3117 = vrot.lane.b32.xlu0 %v2842, 64
      %v3118 = vpop.permute.xlu0 %3117
      %3119 = vrot.lane.b32.xlu0 %v2845, 64
      %v3120 = vpop.permute.xlu0 %3119
      %3121 = vrot.lane.b32.xlu0 %v2848, 64
      %v3122 = vpop.permute.xlu0 %3121
      %3123 = vrot.lane.b32.xlu0 %v2851, 64
      %v3124 = vpop.permute.xlu0 %3123
      %3125 = vrot.lane.b32.xlu0 %v2854, 64
      %v3126 = vpop.permute.xlu0 %3125
      %3127 = vrot.lane.b32.xlu0 %v2857, 64
      %v3128 = vpop.permute.xlu0 %3127
      %3129 = vrot.lane.b32.xlu0 %v2860, 64
      %v3130 = vpop.permute.xlu0 %3129
      %3131 = vrot.lane.b32.xlu0 %v2863, 64
      %v3132 = vpop.permute.xlu0 %3131
      %3133 = vrot.lane.b32.xlu0 %v2880, 64
      %v3134 = vpop.permute.xlu0 %3133
      %3135 = vrot.lane.b32.xlu0 %v1043, 64
      %v3136 = vpop.permute.xlu0 %3135
      %v3138 = vsel %vm1395, %v781, %v2882
      %v3140 = vsel %vm1395, %v2577, %v2884
      %v3142 = vsel %vm1395, %v2578, %v2886
      %v3144 = vsel %vm1395, %v2579, %v2888
      %v3146 = vsel %vm1395, %v2580, %v2890
      %v3148 = vsel %vm1395, %v2581, %v2892
      %v3150 = vsel %vm1395, %v2582, %v2894
      %v3152 = vsel %vm1395, %v2583, %v2896
      %v3154 = vsel %vm1395, %v2584, %v2898
      %v3156 = vsel %vm1395, %v2585, %v2900
      %v3158 = vsel %vm1395, %v2586, %v2902
      %v3160 = vsel %vm1395, %v2587, %v2904
      %v3162 = vsel %vm1395, %v2588, %v2906
      %v3164 = vsel %vm1395, %v2589, %v2908
      %v3166 = vsel %vm1395, %v2590, %v2910
      %v3168 = vsel %vm1395, %v2591, %v2912
      %v3170 = vsel %vm1461, %v3138, %v2914
      %v3172 = vsel %vm1461, %v3140, %v2916
      %v3174 = vsel %vm1461, %v3142, %v2918
      %v3176 = vsel %vm1461, %v3144, %v2920
      %v3178 = vsel %vm1461, %v3146, %v2922
      %v3180 = vsel %vm1461, %v3148, %v2924
      %v3182 = vsel %vm1461, %v3150, %v2926
      %v3184 = vsel %vm1461, %v3152, %v2928
      %v3186 = vsel %vm1461, %v3154, %v2930
      %v3188 = vsel %vm1461, %v3156, %v2932
      %v3190 = vsel %vm1461, %v3158, %v2934
      %v3192 = vsel %vm1461, %v3160, %v2936
      %v3194 = vsel %vm1461, %v3162, %v2938
      %v3196 = vsel %vm1461, %v3164, %v2940
      %v3198 = vsel %vm1461, %v3166, %v2942
      %v3200 = vsel %vm1461, %v3168, %v2944
      %v3202 = vsel %vm1527, %v3170, %v2946
      %v3204 = vsel %vm1527, %v3172, %v2948
      %v3206 = vsel %vm1527, %v3174, %v2950
      %v3208 = vsel %vm1527, %v3176, %v2952
      %v3210 = vsel %vm1527, %v3178, %v2954
      %v3212 = vsel %vm1527, %v3180, %v2956
      %v3214 = vsel %vm1527, %v3182, %v2958
      %v3216 = vsel %vm1527, %v3184, %v2960
      %v3218 = vsel %vm1527, %v3186, %v2962
      %v3220 = vsel %vm1527, %v3188, %v2964
      %v3222 = vsel %vm1527, %v3190, %v2966
      %v3224 = vsel %vm1527, %v3192, %v2968
      %v3226 = vsel %vm1527, %v3194, %v2970
      %v3228 = vsel %vm1527, %v3196, %v2972
      %v3230 = vsel %vm1527, %v3198, %v2974
      %v3232 = vsel %vm1527, %v3200, %v2976
      %v3234 = vsel %vm1593, %v3202, %v2978
      %v3236 = vsel %vm1593, %v3204, %v2980
      %v3238 = vsel %vm1593, %v3206, %v2982
      %v3240 = vsel %vm1593, %v3208, %v2984
      %v3242 = vsel %vm1593, %v3210, %v2986
      %v3244 = vsel %vm1593, %v3212, %v2988
      %v3246 = vsel %vm1593, %v3214, %v2990
      %v3248 = vsel %vm1593, %v3216, %v2992
      %v3250 = vsel %vm1593, %v3218, %v2994
      %v3252 = vsel %vm1593, %v3220, %v2996
      %v3254 = vsel %vm1593, %v3222, %v2998
      %v3256 = vsel %vm1593, %v3224, %v3000
      %v3258 = vsel %vm1593, %v3226, %v3002
      %v3260 = vsel %vm1593, %v3228, %v3004
      %v3262 = vsel %vm1593, %v3230, %v3006
      %v3264 = vsel %vm1593, %v3232, %v3008
      %vm3265 = vcmask 326656
      %v3267 = vsel %vm3265, %v3234, %v3010
      %v3269 = vsel %vm3265, %v3236, %v3012
      %v3271 = vsel %vm3265, %v3238, %v3014
      %v3273 = vsel %vm3265, %v3240, %v3016
      %v3275 = vsel %vm3265, %v3242, %v3018
      %v3277 = vsel %vm3265, %v3244, %v3020
      %v3279 = vsel %vm3265, %v3246, %v3022
      %v3281 = vsel %vm3265, %v3248, %v3024
      %v3283 = vsel %vm3265, %v3250, %v3026
      %v3285 = vsel %vm3265, %v3252, %v3028
      %v3287 = vsel %vm3265, %v3254, %v3030
      %v3289 = vsel %vm3265, %v3256, %v3032
      %v3291 = vsel %vm3265, %v3258, %v3034
      %v3293 = vsel %vm3265, %v3260, %v3036
      %v3295 = vsel %vm3265, %v3262, %v3038
      %v3297 = vsel %vm3265, %v3264, %v3040
      %vm3298 = vcmask 392192
      %v3300 = vsel %vm3298, %v3267, %v3042
      %v3302 = vsel %vm3298, %v3269, %v3044
      %v3304 = vsel %vm3298, %v3271, %v3046
      %v3306 = vsel %vm3298, %v3273, %v3048
      %v3308 = vsel %vm3298, %v3275, %v3050
      %v3310 = vsel %vm3298, %v3277, %v3052
      %v3312 = vsel %vm3298, %v3279, %v3054
      %v3314 = vsel %vm3298, %v3281, %v3056
      %v3316 = vsel %vm3298, %v3283, %v3058
      %v3318 = vsel %vm3298, %v3285, %v3060
      %v3320 = vsel %vm3298, %v3287, %v3062
      %v3322 = vsel %vm3298, %v3289, %v3064
      %v3324 = vsel %vm3298, %v3291, %v3066
      %v3326 = vsel %vm3298, %v3293, %v3068
      %v3328 = vsel %vm3298, %v3295, %v3070
      %v3330 = vsel %vm3298, %v3297, %v3072
      %vm3331 = vcmask 457728
      %v3333 = vsel %vm3331, %v3300, %v3074
      %v3335 = vsel %vm3331, %v3302, %v3076
      %v3337 = vsel %vm3331, %v3304, %v3078
      %v3339 = vsel %vm3331, %v3306, %v3080
      %v3341 = vsel %vm3331, %v3308, %v3082
      %v3343 = vsel %vm3331, %v3310, %v3084
      %v3345 = vsel %vm3331, %v3312, %v3086
      %v3347 = vsel %vm3331, %v3314, %v3088
      %v3349 = vsel %vm3331, %v3316, %v3090
      %v3351 = vsel %vm3331, %v3318, %v3092
      %v3353 = vsel %vm3331, %v3320, %v3094
      %v3355 = vsel %vm3331, %v3322, %v3096
      %v3357 = vsel %vm3331, %v3324, %v3098
      %v3359 = vsel %vm3331, %v3326, %v3100
      %v3361 = vsel %vm3331, %v3328, %v3102
      %v3363 = vsel %vm3331, %v3330, %v3104
      %vm3364 = vcmask 523264
      %v3366 = vsel %vm3364, %v3333, %v3106
      %v3368 = vsel %vm3364, %v3335, %v3108
      %v3370 = vsel %vm3364, %v3337, %v3110
      %v3372 = vsel %vm3364, %v3339, %v3112
      %v3374 = vsel %vm3364, %v3341, %v3114
      %v3376 = vsel %vm3364, %v3343, %v3116
      %v3378 = vsel %vm3364, %v3345, %v3118
      %v3380 = vsel %vm3364, %v3347, %v3120
      %v3382 = vsel %vm3364, %v3349, %v3122
      %v3384 = vsel %vm3364, %v3351, %v3124
      %v3386 = vsel %vm3364, %v3353, %v3126
      %v3388 = vsel %vm3364, %v3355, %v3128
      %v3390 = vsel %vm3364, %v3357, %v3130
      %v3392 = vsel %vm3364, %v3359, %v3132
      %v3394 = vsel %vm3364, %v3361, %v3134
      %v3396 = vsel %vm3364, %v3363, %v3136
      %v3398 = vlaneseq
      %v3399 = vshrl.u32 %v3398, 7
      %v3400 = vsub.s32 0, %v3399
      %v3401 = vrot.slane %v2432, %v3400
      %v3412 = vunpack.c.l.b16 %v2423
      %v3413 = vunpack.c.l.b16 %v2424
      %v3414 = vunpack.c.l.b16 %v2425
      %v3415 = vunpack.c.l.b16 %v2426
      %v3416 = vunpack.c.l.b16 %v2427
      %v3417 = vunpack.c.l.b16 %v2428
      %v3418 = vunpack.c.l.b16 %v2429
      %v3419 = vunpack.c.l.b16 %v2430
      %v3420 = vunpack.c.l.b16 %v2431
      %v3421 = vpack.c.b16 %v3413, %v3412
      %v3422 = vpack.c.b16 %v3415, %v3414
      %v3423 = vpack.c.b16 %v3417, %v3416
      %v3424 = vpack.c.b16 %v3419, %v3418
      %v3425 = vpack.c.b16 %v3420, %v3420
      %vm3430 = vcmask 588800
      %v3431 = vsel %vm3430, %v3366, 0
      %v3433 = vsel %vm3430, %v3368, 0
      %v3435 = vsel %vm3430, %v3370, 0
      %v3437 = vsel %vm3430, %v3372, 0
      %v3439 = vsel %vm3430, %v3374, 0
      %v3441 = vsel %vm3430, %v3376, 0
      %v3443 = vsel %vm3430, %v3378, 0
      %v3445 = vsel %vm3430, %v3380, 0
      %v3447 = vsel %vm3430, %v3382, 0
      %v3449 = vsel %vm3430, %v3384, 0
      %v3451 = vsel %vm3430, %v3386, 0
      %v3453 = vsel %vm3430, %v3388, 0
      %v3455 = vsel %vm3430, %v3390, 0
      %v3457 = vsel %vm3430, %v3392, 0
      %v3459 = vsel %vm3430, %v3394, 0
      %v3461 = vsel %vm3430, %v3396, 0
      %v3464 = vsel %vm2007, %v3425, 0
      %3466 = vmatprep.subr.bf16.mxu0 0
      %3467 = vmatpush1.bf16.msra.mxu0 %v3421
      %3468 = vmatprep.subr.bf16.mxu0 0
      %3469 = vmatpush1.bf16.msra.mxu0 %v3422
      %3470 = vmatprep.subr.bf16.mxu0 0
      %3471 = vmatpush1.bf16.msra.mxu0 %v3423
      %3472 = vmatprep.subr.bf16.mxu0 0
      %3473 = vmatpush1.bf16.msra.mxu0 %v3424
      %3474 = vmatprep.subr.bf16.mxu0 0
      %3475 = vmatpush1.bf16.msra.mxu0 %v3464
      %3476 = vmatprep.subr.bf16.mxu0 0
      %3477 = vmatpush1.bf16.msra.mxu0 0
      %3478 = vmatprep.subr.bf16.mxu0 0
      %3479 = vmatpush1.bf16.msra.mxu0 0
      %3480 = vmatprep.subr.bf16.mxu0 0
      %3481 = vmatpush1.bf16.msra.mxu0 0
      %3482 = vmatprep.subr.bf16.mxu0 0
      %3483 = vmatpush1.bf16.msra.mxu0 0
      %3484 = vmatprep.subr.bf16.mxu0 0
      %3485 = vmatpush1.bf16.msra.mxu0 0
      %3486 = vmatprep.subr.bf16.mxu0 0
      %3487 = vmatpush1.bf16.msra.mxu0 0
      %3488 = vmatprep.subr.bf16.mxu0 0
      %3489 = vmatpush1.bf16.msra.mxu0 0
      %3490 = vmatprep.subr.bf16.mxu0 0
      %3491 = vmatpush1.bf16.msra.mxu0 0
      %3492 = vmatprep.subr.bf16.mxu0 0
      %3493 = vmatpush1.bf16.msra.mxu0 0
      %3494 = vmatprep.subr.bf16.mxu0 0
      %3495 = vmatpush1.bf16.msra.mxu0 0
      %3496 = vmatprep.subr.bf16.mxu0 0
      %3497 = vmatpush1.bf16.msra.mxu0 0
      %3498 = vmatprep.mubr.bf16.mxu0 0
      %3499 = vmatmul.mubr.bf16.gmra.mrb[0].mxu0 %v3431
      %v3500 = vpop.f32.mrb[0].mxu0
      %v3501 = vadd.f32 %v3401, %v3500
      %v3502 = vpop.f32.mrb[0].mxu0
      %v3503 = vpop.f32.mrb[0].mxu0
      %v3504 = vadd.f32 %v3401, %v3503
      %v3505 = vpop.f32.mrb[0].mxu0
      %3506 = vmatprep.mubr.bf16.mxu0 0
      %3507 = vmatmul.mubr.bf16.gmra.mrb[0].mxu0 %v3433
      %v3508 = vpop.f32.mrb[0].mxu0
      %v3509 = vadd.f32 %v3401, %v3508
      %v3510 = vpop.f32.mrb[0].mxu0
      %v3511 = vpop.f32.mrb[0].mxu0
      %v3512 = vadd.f32 %v3401, %v3511
      %v3513 = vpop.f32.mrb[0].mxu0
      %3514 = vmatprep.mubr.bf16.mxu0 0
      %3515 = vmatmul.mubr.bf16.gmra.mrb[0].mxu0 %v3435
      %v3516 = vpop.f32.mrb[0].mxu0
      %v3517 = vadd.f32 %v3401, %v3516
      %v3518 = vpop.f32.mrb[0].mxu0
      %v3519 = vpop.f32.mrb[0].mxu0
      %v3520 = vadd.f32 %v3401, %v3519
      %v3521 = vpop.f32.mrb[0].mxu0
      %3522 = vmatprep.mubr.bf16.mxu0 0
      %3523 = vmatmul.mubr.bf16.gmra.mrb[0].mxu0 %v3437
      %v3524 = vpop.f32.mrb[0].mxu0
      %v3525 = vadd.f32 %v3401, %v3524
      %v3526 = vpop.f32.mrb[0].mxu0
      %v3527 = vpop.f32.mrb[0].mxu0
      %v3528 = vadd.f32 %v3401, %v3527
      %v3529 = vpop.f32.mrb[0].mxu0
      %3530 = vmatprep.mubr.bf16.mxu0 0
      %3531 = vmatmul.mubr.bf16.gmra.mrb[0].mxu0 %v3439
      %v3532 = vpop.f32.mrb[0].mxu0
      %v3533 = vadd.f32 %v3401, %v3532
      %v3534 = vpop.f32.mrb[0].mxu0
      %v3535 = vpop.f32.mrb[0].mxu0
      %v3536 = vadd.f32 %v3401, %v3535
      %v3537 = vpop.f32.mrb[0].mxu0
      %3538 = vmatprep.mubr.bf16.mxu0 0
      %3539 = vmatmul.mubr.bf16.gmra.mrb[0].mxu0 %v3441
      %v3540 = vpop.f32.mrb[0].mxu0
      %v3541 = vadd.f32 %v3401, %v3540
      %v3542 = vpop.f32.mrb[0].mxu0
      %v3543 = vpop.f32.mrb[0].mxu0
      %v3544 = vadd.f32 %v3401, %v3543
      %v3545 = vpop.f32.mrb[0].mxu0
      %3546 = vmatprep.mubr.bf16.mxu0 0
      %3547 = vmatmul.mubr.bf16.gmra.mrb[0].mxu0 %v3443
      %v3548 = vpop.f32.mrb[0].mxu0
      %v3549 = vadd.f32 %v3401, %v3548
      %v3550 = vpop.f32.mrb[0].mxu0
      %v3551 = vpop.f32.mrb[0].mxu0
      %v3552 = vadd.f32 %v3401, %v3551
      %v3553 = vpop.f32.mrb[0].mxu0
      %3554 = vmatprep.mubr.bf16.mxu0 0
      %3555 = vmatmul.mubr.bf16.gmra.mrb[0].mxu0 %v3445
      %v3556 = vpop.f32.mrb[0].mxu0
      %v3557 = vadd.f32 %v3401, %v3556
      %v3558 = vpop.f32.mrb[0].mxu0
      %v3559 = vpop.f32.mrb[0].mxu0
      %v3560 = vadd.f32 %v3401, %v3559
      %v3561 = vpop.f32.mrb[0].mxu0
      %3562 = vmatprep.mubr.bf16.mxu0 0
      %3563 = vmatmul.mubr.bf16.gmra.mrb[0].mxu0 %v3447
      %v3564 = vpop.f32.mrb[0].mxu0
      %v3565 = vadd.f32 %v3401, %v3564
      %v3566 = vpop.f32.mrb[0].mxu0
      %v3567 = vpop.f32.mrb[0].mxu0
      %v3568 = vadd.f32 %v3401, %v3567
      %v3569 = vpop.f32.mrb[0].mxu0
      %3570 = vmatprep.mubr.bf16.mxu0 0
      %3571 = vmatmul.mubr.bf16.gmra.mrb[0].mxu0 %v3449
      %v3572 = vpop.f32.mrb[0].mxu0
      %v3573 = vadd.f32 %v3401, %v3572
      %v3574 = vpop.f32.mrb[0].mxu0
      %v3575 = vpop.f32.mrb[0].mxu0
      %v3576 = vadd.f32 %v3401, %v3575
      %v3577 = vpop.f32.mrb[0].mxu0
      %3578 = vmatprep.mubr.bf16.mxu0 0
      %3579 = vmatmul.mubr.bf16.gmra.mrb[0].mxu0 %v3451
      %v3580 = vpop.f32.mrb[0].mxu0
      %v3581 = vadd.f32 %v3401, %v3580
      %v3582 = vpop.f32.mrb[0].mxu0
      %v3583 = vpop.f32.mrb[0].mxu0
      %v3584 = vadd.f32 %v3401, %v3583
      %v3585 = vpop.f32.mrb[0].mxu0
      %3586 = vmatprep.mubr.bf16.mxu0 0
      %3587 = vmatmul.mubr.bf16.gmra.mrb[0].mxu0 %v3453
      %v3588 = vpop.f32.mrb[0].mxu0
      %v3589 = vadd.f32 %v3401, %v3588
      %v3590 = vpop.f32.mrb[0].mxu0
      %v3591 = vpop.f32.mrb[0].mxu0
      %v3592 = vadd.f32 %v3401, %v3591
      %v3593 = vpop.f32.mrb[0].mxu0
      %3594 = vmatprep.mubr.bf16.mxu0 0
      %3595 = vmatmul.mubr.bf16.gmra.mrb[0].mxu0 %v3455
      %v3596 = vpop.f32.mrb[0].mxu0
      %v3597 = vadd.f32 %v3401, %v3596
      %v3598 = vpop.f32.mrb[0].mxu0
      %v3599 = vpop.f32.mrb[0].mxu0
      %v3600 = vadd.f32 %v3401, %v3599
      %v3601 = vpop.f32.mrb[0].mxu0
      %3602 = vmatprep.mubr.bf16.mxu0 0
      %3603 = vmatmul.mubr.bf16.gmra.mrb[0].mxu0 %v3457
      %v3604 = vpop.f32.mrb[0].mxu0
      %v3605 = vadd.f32 %v3401, %v3604
      %v3606 = vpop.f32.mrb[0].mxu0
      %v3607 = vpop.f32.mrb[0].mxu0
      %v3608 = vadd.f32 %v3401, %v3607
      %v3609 = vpop.f32.mrb[0].mxu0
      %3610 = vmatprep.mubr.bf16.mxu0 0
      %3611 = vmatmul.mubr.bf16.gmra.mrb[0].mxu0 %v3459
      %v3612 = vpop.f32.mrb[0].mxu0
      %v3613 = vadd.f32 %v3401, %v3612
      %v3614 = vpop.f32.mrb[0].mxu0
      %v3615 = vpop.f32.mrb[0].mxu0
      %v3616 = vadd.f32 %v3401, %v3615
      %v3617 = vpop.f32.mrb[0].mxu0
      %3618 = vmatprep.mubr.bf16.mxu0 0
      %3619 = vmatmul.mubr.bf16.gmra.mrb[0].mxu0 %v3461
      %v3620 = vpop.f32.mrb[0].mxu0
      %v3621 = vadd.f32 %v3401, %v3620
      %v3622 = vpop.f32.mrb[0].mxu0
      %v3623 = vpop.f32.mrb[0].mxu0
      %v3624 = vadd.f32 %v3401, %v3623
      %v3625 = vpop.f32.mrb[0].mxu0
      %3626 = vdwg.mxu0
      %vm3627 = vcmp.gt.f32.partialorder %v3501, 0.0
      %vm3628 = vcmp.gt.f32.partialorder %v3504, 0.0
      %vm3629 = vcmp.gt.f32.partialorder %v3509, 0.0
      %vm3630 = vcmp.gt.f32.partialorder %v3512, 0.0
      %vm3631 = vcmp.gt.f32.partialorder %v3517, 0.0
      %vm3632 = vcmp.gt.f32.partialorder %v3520, 0.0
      %vm3633 = vcmp.gt.f32.partialorder %v3525, 0.0
      %vm3634 = vcmp.gt.f32.partialorder %v3528, 0.0
      %vm3635 = vcmp.gt.f32.partialorder %v3533, 0.0
      %vm3636 = vcmp.gt.f32.partialorder %v3536, 0.0
      %vm3637 = vcmp.gt.f32.partialorder %v3541, 0.0
      %vm3638 = vcmp.gt.f32.partialorder %v3544, 0.0
      %vm3639 = vcmp.gt.f32.partialorder %v3549, 0.0
      %vm3640 = vcmp.gt.f32.partialorder %v3552, 0.0
      %vm3641 = vcmp.gt.f32.partialorder %v3557, 0.0
      %vm3642 = vcmp.gt.f32.partialorder %v3560, 0.0
      %vm3643 = vcmp.gt.f32.partialorder %v3565, 0.0
      %vm3644 = vcmp.gt.f32.partialorder %v3568, 0.0
      %vm3645 = vcmp.gt.f32.partialorder %v3573, 0.0
      %vm3646 = vcmp.gt.f32.partialorder %v3576, 0.0
      %vm3647 = vcmp.gt.f32.partialorder %v3581, 0.0
      %vm3648 = vcmp.gt.f32.partialorder %v3584, 0.0
      %vm3649 = vcmp.gt.f32.partialorder %v3589, 0.0
      %vm3650 = vcmp.gt.f32.partialorder %v3592, 0.0
      %vm3651 = vcmp.gt.f32.partialorder %v3597, 0.0
      %vm3652 = vcmp.gt.f32.partialorder %v3600, 0.0
      %vm3653 = vcmp.gt.f32.partialorder %v3605, 0.0
      %vm3654 = vcmp.gt.f32.partialorder %v3608, 0.0
      %vm3655 = vcmp.gt.f32.partialorder %v3613, 0.0
      %vm3656 = vcmp.gt.f32.partialorder %v3616, 0.0
      %vm3657 = vcmp.gt.f32.partialorder %v3621, 0.0
      %vm3658 = vcmp.gt.f32.partialorder %v3624, 0.0
      %v3659 = vmul.f32 %v3501, 0.01
      %v3660 = vmul.f32 %v3504, 0.01
      %v3661 = vmul.f32 %v3509, 0.01
      %v3662 = vmul.f32 %v3512, 0.01
      %v3663 = vmul.f32 %v3517, 0.01
      %v3664 = vmul.f32 %v3520, 0.01
      %v3665 = vmul.f32 %v3525, 0.01
      %v3666 = vmul.f32 %v3528, 0.01
      %v3667 = vmul.f32 %v3533, 0.01
      %v3668 = vmul.f32 %v3536, 0.01
      %v3669 = vmul.f32 %v3541, 0.01
      %v3670 = vmul.f32 %v3544, 0.01
      %v3671 = vmul.f32 %v3549, 0.01
      %v3672 = vmul.f32 %v3552, 0.01
      %v3673 = vmul.f32 %v3557, 0.01
      %v3674 = vmul.f32 %v3560, 0.01
      %v3675 = vmul.f32 %v3565, 0.01
      %v3676 = vmul.f32 %v3568, 0.01
      %v3677 = vmul.f32 %v3573, 0.01
      %v3678 = vmul.f32 %v3576, 0.01
      %v3679 = vmul.f32 %v3581, 0.01
      %v3680 = vmul.f32 %v3584, 0.01
      %v3681 = vmul.f32 %v3589, 0.01
      %v3682 = vmul.f32 %v3592, 0.01
      %v3683 = vmul.f32 %v3597, 0.01
      %v3684 = vmul.f32 %v3600, 0.01
      %v3685 = vmul.f32 %v3605, 0.01
      %v3686 = vmul.f32 %v3608, 0.01
      %v3687 = vmul.f32 %v3613, 0.01
      %v3688 = vmul.f32 %v3616, 0.01
      %v3689 = vmul.f32 %v3621, 0.01
      %v3690 = vmul.f32 %v3624, 0.01
      %v3691 = vsel %vm3627, %v3501, %v3659
      %v3692 = vsel %vm3628, %v3504, %v3660
      %v3693 = vsel %vm3629, %v3509, %v3661
      %v3694 = vsel %vm3630, %v3512, %v3662
      %v3695 = vsel %vm3631, %v3517, %v3663
      %v3696 = vsel %vm3632, %v3520, %v3664
      %v3697 = vsel %vm3633, %v3525, %v3665
      %v3698 = vsel %vm3634, %v3528, %v3666
      %v3699 = vsel %vm3635, %v3533, %v3667
      %v3700 = vsel %vm3636, %v3536, %v3668
      %v3701 = vsel %vm3637, %v3541, %v3669
      %v3702 = vsel %vm3638, %v3544, %v3670
      %v3703 = vsel %vm3639, %v3549, %v3671
      %v3704 = vsel %vm3640, %v3552, %v3672
      %v3705 = vsel %vm3641, %v3557, %v3673
      %v3706 = vsel %vm3642, %v3560, %v3674
      %v3707 = vsel %vm3643, %v3565, %v3675
      %v3708 = vsel %vm3644, %v3568, %v3676
      %v3709 = vsel %vm3645, %v3573, %v3677
      %v3710 = vsel %vm3646, %v3576, %v3678
      %v3711 = vsel %vm3647, %v3581, %v3679
      %v3712 = vsel %vm3648, %v3584, %v3680
      %v3713 = vsel %vm3649, %v3589, %v3681
      %v3714 = vsel %vm3650, %v3592, %v3682
      %v3715 = vsel %vm3651, %v3597, %v3683
      %v3716 = vsel %vm3652, %v3600, %v3684
      %v3717 = vsel %vm3653, %v3605, %v3685
      %v3718 = vsel %vm3654, %v3608, %v3686
      %v3719 = vsel %vm3655, %v3613, %v3687
      %v3720 = vsel %vm3656, %v3616, %v3688
      %v3721 = vsel %vm3657, %v3621, %v3689
      %v3722 = vsel %vm3658, %v3624, %v3690
      %v3723 = vpack.c.bf16 %v3692, %v3691
      %v3724 = vpack.c.bf16 %v3694, %v3693
      %v3725 = vpack.c.bf16 %v3696, %v3695
      %v3726 = vpack.c.bf16 %v3698, %v3697
      %v3727 = vpack.c.bf16 %v3700, %v3699
      %v3728 = vpack.c.bf16 %v3702, %v3701
      %v3729 = vpack.c.bf16 %v3704, %v3703
      %v3730 = vpack.c.bf16 %v3706, %v3705
      %v3731 = vpack.c.bf16 %v3708, %v3707
      %v3732 = vpack.c.bf16 %v3710, %v3709
      %v3733 = vpack.c.bf16 %v3712, %v3711
      %v3734 = vpack.c.bf16 %v3714, %v3713
      %v3735 = vpack.c.bf16 %v3716, %v3715
      %v3736 = vpack.c.bf16 %v3718, %v3717
      %v3737 = vpack.c.bf16 %v3720, %v3719
      %v3738 = vpack.c.bf16 %v3722, %v3721
      %v3739 = vld [vmem:[%s8] sm:$0x3]
      %v3740 = vld [vmem:[%s9] sm:$0xf]
      %v3742 = vsel %vm2007, %v3740, 0
      %3744 = vmatprep.subr.bf16.mxu0 0
      %3745 = vmatpush1.bf16.msra.mxu0 %v3742
      %3746 = vmatprep.subr.bf16.mxu0 0
      %3747 = vmatpush1.bf16.msra.mxu0 0
      %3748 = vmatprep.subr.bf16.mxu0 0
      %3749 = vmatpush1.bf16.msra.mxu0 0
      %3750 = vmatprep.subr.bf16.mxu0 0
      %3751 = vmatpush1.bf16.msra.mxu0 0
      %3752 = vmatprep.subr.bf16.mxu0 0
      %3753 = vmatpush1.bf16.msra.mxu0 0
      %3754 = vmatprep.subr.bf16.mxu0 0
      %3755 = vmatpush1.bf16.msra.mxu0 0
      %3756 = vmatprep.subr.bf16.mxu0 0
      %3757 = vmatpush1.bf16.msra.mxu0 0
      %3758 = vmatprep.subr.bf16.mxu0 0
      %3759 = vmatpush1.bf16.msra.mxu0 0
      %3760 = vmatprep.subr.bf16.mxu0 0
      %3761 = vmatpush1.bf16.msra.mxu0 0
      %3762 = vmatprep.subr.bf16.mxu0 0
      %3763 = vmatpush1.bf16.msra.mxu0 0
      %3764 = vmatprep.subr.bf16.mxu0 0
      %3765 = vmatpush1.bf16.msra.mxu0 0
      %3766 = vmatprep.subr.bf16.mxu0 0
      %3767 = vmatpush1.bf16.msra.mxu0 0
      %3768 = vmatprep.subr.bf16.mxu0 0
      %3769 = vmatpush1.bf16.msra.mxu0 0
      %3770 = vmatprep.subr.bf16.mxu0 0
      %3771 = vmatpush1.bf16.msra.mxu0 0
      %3772 = vmatprep.subr.bf16.mxu0 0
      %3773 = vmatpush1.bf16.msra.mxu0 0
      %3774 = vmatprep.subr.bf16.mxu0 0
      %3775 = vmatpush1.bf16.msra.mxu0 0
      %3776 = vmatprep.mubr.bf16.mxu0 0
      %3777 = vmatmul.mubr.bf16.gmra.mrb[0].mxu0 %v1960
      %v3778 = vpop.f32.mrb[0].mxu0
      %v3779 = vadd.f32 0.0, %v3778
      %v3780 = vpop.f32.mrb[0].mxu0
      %v3781 = vpop.f32.mrb[0].mxu0
      %v3782 = vadd.f32 0.0, %v3781
      %v3783 = vpop.f32.mrb[0].mxu0
      %3784 = vmatprep.mubr.bf16.mxu0 0
      %3785 = vmatmul.mubr.bf16.gmra.mrb[0].mxu0 %v1963
      %v3786 = vpop.f32.mrb[0].mxu0
      %v3787 = vadd.f32 0.0, %v3786
      %v3788 = vpop.f32.mrb[0].mxu0
      %v3789 = vpop.f32.mrb[0].mxu0
      %v3790 = vadd.f32 0.0, %v3789
      %v3791 = vpop.f32.mrb[0].mxu0
      %3792 = vmatprep.mubr.bf16.mxu0 0
      %3793 = vmatmul.mubr.bf16.gmra.mrb[0].mxu0 %v1966
      %v3794 = vpop.f32.mrb[0].mxu0
      %v3795 = vadd.f32 0.0, %v3794
      %v3796 = vpop.f32.mrb[0].mxu0
      %v3797 = vpop.f32.mrb[0].mxu0
      %v3798 = vadd.f32 0.0, %v3797
      %v3799 = vpop.f32.mrb[0].mxu0
      %3800 = vmatprep.mubr.bf16.mxu0 0
      %3801 = vmatmul.mubr.bf16.gmra.mrb[0].mxu0 %v1969
      %v3802 = vpop.f32.mrb[0].mxu0
      %v3803 = vadd.f32 0.0, %v3802
      %v3804 = vpop.f32.mrb[0].mxu0
      %v3805 = vpop.f32.mrb[0].mxu0
      %v3806 = vadd.f32 0.0, %v3805
      %v3807 = vpop.f32.mrb[0].mxu0
      %3808 = vmatprep.mubr.bf16.mxu0 0
      %3809 = vmatmul.mubr.bf16.gmra.mrb[0].mxu0 %v1972
      %v3810 = vpop.f32.mrb[0].mxu0
      %v3811 = vadd.f32 0.0, %v3810
      %v3812 = vpop.f32.mrb[0].mxu0
      %v3813 = vpop.f32.mrb[0].mxu0
      %v3814 = vadd.f32 0.0, %v3813
      %v3815 = vpop.f32.mrb[0].mxu0
      %3816 = vmatprep.mubr.bf16.mxu0 0
      %3817 = vmatmul.mubr.bf16.gmra.mrb[0].mxu0 %v1975
      %v3818 = vpop.f32.mrb[0].mxu0
      %v3819 = vadd.f32 0.0, %v3818
      %v3820 = vpop.f32.mrb[0].mxu0
      %v3821 = vpop.f32.mrb[0].mxu0
      %v3822 = vadd.f32 0.0, %v3821
      %v3823 = vpop.f32.mrb[0].mxu0
      %3824 = vmatprep.mubr.bf16.mxu0 0
      %3825 = vmatmul.mubr.bf16.gmra.mrb[0].mxu0 %v1978
      %v3826 = vpop.f32.mrb[0].mxu0
      %v3827 = vadd.f32 0.0, %v3826
      %v3828 = vpop.f32.mrb[0].mxu0
      %v3829 = vpop.f32.mrb[0].mxu0
      %v3830 = vadd.f32 0.0, %v3829
      %v3831 = vpop.f32.mrb[0].mxu0
      %3832 = vmatprep.mubr.bf16.mxu0 0
      %3833 = vmatmul.mubr.bf16.gmra.mrb[0].mxu0 %v1981
      %v3834 = vpop.f32.mrb[0].mxu0
      %v3835 = vadd.f32 0.0, %v3834
      %v3836 = vpop.f32.mrb[0].mxu0
      %v3837 = vpop.f32.mrb[0].mxu0
      %v3838 = vadd.f32 0.0, %v3837
      %v3839 = vpop.f32.mrb[0].mxu0
      %3840 = vmatprep.mubr.bf16.mxu0 0
      %3841 = vmatmul.mubr.bf16.gmra.mrb[0].mxu0 %v1984
      %v3842 = vpop.f32.mrb[0].mxu0
      %v3843 = vadd.f32 0.0, %v3842
      %v3844 = vpop.f32.mrb[0].mxu0
      %v3845 = vpop.f32.mrb[0].mxu0
      %v3846 = vadd.f32 0.0, %v3845
      %v3847 = vpop.f32.mrb[0].mxu0
      %3848 = vmatprep.mubr.bf16.mxu0 0
      %3849 = vmatmul.mubr.bf16.gmra.mrb[0].mxu0 %v1987
      %v3850 = vpop.f32.mrb[0].mxu0
      %v3851 = vadd.f32 0.0, %v3850
      %v3852 = vpop.f32.mrb[0].mxu0
      %v3853 = vpop.f32.mrb[0].mxu0
      %v3854 = vadd.f32 0.0, %v3853
      %v3855 = vpop.f32.mrb[0].mxu0
      %3856 = vmatprep.mubr.bf16.mxu0 0
      %3857 = vmatmul.mubr.bf16.gmra.mrb[0].mxu0 %v1990
      %v3858 = vpop.f32.mrb[0].mxu0
      %v3859 = vadd.f32 0.0, %v3858
      %v3860 = vpop.f32.mrb[0].mxu0
      %v3861 = vpop.f32.mrb[0].mxu0
      %v3862 = vadd.f32 0.0, %v3861
      %v3863 = vpop.f32.mrb[0].mxu0
      %3864 = vmatprep.mubr.bf16.mxu0 0
      %3865 = vmatmul.mubr.bf16.gmra.mrb[0].mxu0 %v1993
      %v3866 = vpop.f32.mrb[0].mxu0
      %v3867 = vadd.f32 0.0, %v3866
      %v3868 = vpop.f32.mrb[0].mxu0
      %v3869 = vpop.f32.mrb[0].mxu0
      %v3870 = vadd.f32 0.0, %v3869
      %v3871 = vpop.f32.mrb[0].mxu0
      %3872 = vmatprep.mubr.bf16.mxu0 0
      %3873 = vmatmul.mubr.bf16.gmra.mrb[0].mxu0 %v1996
      %v3874 = vpop.f32.mrb[0].mxu0
      %v3875 = vadd.f32 0.0, %v3874
      %v3876 = vpop.f32.mrb[0].mxu0
      %v3877 = vpop.f32.mrb[0].mxu0
      %v3878 = vadd.f32 0.0, %v3877
      %v3879 = vpop.f32.mrb[0].mxu0
      %3880 = vmatprep.mubr.bf16.mxu0 0
      %3881 = vmatmul.mubr.bf16.gmra.mrb[0].mxu0 %v1999
      %v3882 = vpop.f32.mrb[0].mxu0
      %v3883 = vadd.f32 0.0, %v3882
      %v3884 = vpop.f32.mrb[0].mxu0
      %v3885 = vpop.f32.mrb[0].mxu0
      %v3886 = vadd.f32 0.0, %v3885
      %v3887 = vpop.f32.mrb[0].mxu0
      %3888 = vmatprep.mubr.bf16.mxu0 0
      %3889 = vmatmul.mubr.bf16.gmra.mrb[0].mxu0 %v2002
      %v3890 = vpop.f32.mrb[0].mxu0
      %v3891 = vadd.f32 0.0, %v3890
      %v3892 = vpop.f32.mrb[0].mxu0
      %v3893 = vpop.f32.mrb[0].mxu0
      %v3894 = vadd.f32 0.0, %v3893
      %v3895 = vpop.f32.mrb[0].mxu0
      %3896 = vmatprep.mubr.bf16.mxu0 0
      %3897 = vmatmul.mubr.bf16.gmra.mrb[0].mxu0 %v2005
      %v3898 = vpop.f32.mrb[0].mxu0
      %v3899 = vadd.f32 0.0, %v3898
      %v3900 = vpop.f32.mrb[0].mxu0
      %v3901 = vpop.f32.mrb[0].mxu0
      %v3902 = vadd.f32 0.0, %v3901
      %v3903 = vpop.f32.mrb[0].mxu0
      %3904 = vdwg.mxu0
      %v3906 = vsel %vm1680, %v3739, 0
      %3908 = vmatprep.subr.bf16.mxu0 0
      %3909 = vmatpush1.bf16.msra.mxu0 %v3906
      %3910 = vmatprep.subr.bf16.mxu0 0
      %3911 = vmatpush1.bf16.msra.mxu0 0
      %3912 = vmatprep.subr.bf16.mxu0 0
      %3913 = vmatpush1.bf16.msra.mxu0 0
      %3914 = vmatprep.subr.bf16.mxu0 0
      %3915 = vmatpush1.bf16.msra.mxu0 0
      %3916 = vmatprep.subr.bf16.mxu0 0
      %3917 = vmatpush1.bf16.msra.mxu0 0
      %3918 = vmatprep.subr.bf16.mxu0 0
      %3919 = vmatpush1.bf16.msra.mxu0 0
      %3920 = vmatprep.subr.bf16.mxu0 0
      %3921 = vmatpush1.bf16.msra.mxu0 0
      %3922 = vmatprep.subr.bf16.mxu0 0
      %3923 = vmatpush1.bf16.msra.mxu0 0
      %3924 = vmatprep.subr.bf16.mxu0 0
      %3925 = vmatpush1.bf16.msra.mxu0 0
      %3926 = vmatprep.subr.bf16.mxu0 0
      %3927 = vmatpush1.bf16.msra.mxu0 0
      %3928 = vmatprep.subr.bf16.mxu0 0
      %3929 = vmatpush1.bf16.msra.mxu0 0
      %3930 = vmatprep.subr.bf16.mxu0 0
      %3931 = vmatpush1.bf16.msra.mxu0 0
      %3932 = vmatprep.subr.bf16.mxu0 0
      %3933 = vmatpush1.bf16.msra.mxu0 0
      %3934 = vmatprep.subr.bf16.mxu0 0
      %3935 = vmatpush1.bf16.msra.mxu0 0
      %3936 = vmatprep.subr.bf16.mxu0 0
      %3937 = vmatpush1.bf16.msra.mxu0 0
      %3938 = vmatprep.subr.bf16.mxu0 0
      %3939 = vmatpush1.bf16.msra.mxu0 0
      %3940 = vmatprep.mubr.bf16.mxu0 0
      %3941 = vmatmul.mubr.bf16.gmra.mrb[0].mxu0 %v2172
      %v3942 = vpop.f32.mrb[0].mxu0
      %v3943 = vadd.f32 %v3779, %v3942
      %v3944 = vpop.f32.mrb[0].mxu0
      %v3945 = vpop.f32.mrb[0].mxu0
      %v3946 = vadd.f32 %v3782, %v3945
      %v3947 = vpop.f32.mrb[0].mxu0
      %3948 = vmatprep.mubr.bf16.mxu0 0
      %3949 = vmatmul.mubr.bf16.gmra.mrb[0].mxu0 %v2174
      %v3950 = vpop.f32.mrb[0].mxu0
      %v3951 = vadd.f32 %v3787, %v3950
      %v3952 = vpop.f32.mrb[0].mxu0
      %v3953 = vpop.f32.mrb[0].mxu0
      %v3954 = vadd.f32 %v3790, %v3953
      %v3955 = vpop.f32.mrb[0].mxu0
      %3956 = vmatprep.mubr.bf16.mxu0 0
      %3957 = vmatmul.mubr.bf16.gmra.mrb[0].mxu0 %v2176
      %v3958 = vpop.f32.mrb[0].mxu0
      %v3959 = vadd.f32 %v3795, %v3958
      %v3960 = vpop.f32.mrb[0].mxu0
      %v3961 = vpop.f32.mrb[0].mxu0
      %v3962 = vadd.f32 %v3798, %v3961
      %v3963 = vpop.f32.mrb[0].mxu0
      %3964 = vmatprep.mubr.bf16.mxu0 0
      %3965 = vmatmul.mubr.bf16.gmra.mrb[0].mxu0 %v2178
      %v3966 = vpop.f32.mrb[0].mxu0
      %v3967 = vadd.f32 %v3803, %v3966
      %v3968 = vpop.f32.mrb[0].mxu0
      %v3969 = vpop.f32.mrb[0].mxu0
      %v3970 = vadd.f32 %v3806, %v3969
      %v3971 = vpop.f32.mrb[0].mxu0
      %3972 = vmatprep.mubr.bf16.mxu0 0
      %3973 = vmatmul.mubr.bf16.gmra.mrb[0].mxu0 %v2180
      %v3974 = vpop.f32.mrb[0].mxu0
      %v3975 = vadd.f32 %v3811, %v3974
      %v3976 = vpop.f32.mrb[0].mxu0
      %v3977 = vpop.f32.mrb[0].mxu0
      %v3978 = vadd.f32 %v3814, %v3977
      %v3979 = vpop.f32.mrb[0].mxu0
      %3980 = vmatprep.mubr.bf16.mxu0 0
      %3981 = vmatmul.mubr.bf16.gmra.mrb[0].mxu0 %v2182
      %v3982 = vpop.f32.mrb[0].mxu0
      %v3983 = vadd.f32 %v3819, %v3982
      %v3984 = vpop.f32.mrb[0].mxu0
      %v3985 = vpop.f32.mrb[0].mxu0
      %v3986 = vadd.f32 %v3822, %v3985
      %v3987 = vpop.f32.mrb[0].mxu0
      %3988 = vmatprep.mubr.bf16.mxu0 0
      %3989 = vmatmul.mubr.bf16.gmra.mrb[0].mxu0 %v2184
      %v3990 = vpop.f32.mrb[0].mxu0
      %v3991 = vadd.f32 %v3827, %v3990
      %v3992 = vpop.f32.mrb[0].mxu0
      %v3993 = vpop.f32.mrb[0].mxu0
      %v3994 = vadd.f32 %v3830, %v3993
      %v3995 = vpop.f32.mrb[0].mxu0
      %3996 = vmatprep.mubr.bf16.mxu0 0
      %3997 = vmatmul.mubr.bf16.gmra.mrb[0].mxu0 %v2186
      %v3998 = vpop.f32.mrb[0].mxu0
      %v3999 = vadd.f32 %v3835, %v3998
      %v4000 = vpop.f32.mrb[0].mxu0
      %v4001 = vpop.f32.mrb[0].mxu0
      %v4002 = vadd.f32 %v3838, %v4001
      %v4003 = vpop.f32.mrb[0].mxu0
      %4004 = vmatprep.mubr.bf16.mxu0 0
      %4005 = vmatmul.mubr.bf16.gmra.mrb[0].mxu0 %v2188
      %v4006 = vpop.f32.mrb[0].mxu0
      %v4007 = vadd.f32 %v3843, %v4006
      %v4008 = vpop.f32.mrb[0].mxu0
      %v4009 = vpop.f32.mrb[0].mxu0
      %v4010 = vadd.f32 %v3846, %v4009
      %v4011 = vpop.f32.mrb[0].mxu0
      %4012 = vmatprep.mubr.bf16.mxu0 0
      %4013 = vmatmul.mubr.bf16.gmra.mrb[0].mxu0 %v2190
      %v4014 = vpop.f32.mrb[0].mxu0
      %v4015 = vadd.f32 %v3851, %v4014
      %v4016 = vpop.f32.mrb[0].mxu0
      %v4017 = vpop.f32.mrb[0].mxu0
      %v4018 = vadd.f32 %v3854, %v4017
      %v4019 = vpop.f32.mrb[0].mxu0
      %4020 = vmatprep.mubr.bf16.mxu0 0
      %4021 = vmatmul.mubr.bf16.gmra.mrb[0].mxu0 %v2192
      %v4022 = vpop.f32.mrb[0].mxu0
      %v4023 = vadd.f32 %v3859, %v4022
      %v4024 = vpop.f32.mrb[0].mxu0
      %v4025 = vpop.f32.mrb[0].mxu0
      %v4026 = vadd.f32 %v3862, %v4025
      %v4027 = vpop.f32.mrb[0].mxu0
      %4028 = vmatprep.mubr.bf16.mxu0 0
      %4029 = vmatmul.mubr.bf16.gmra.mrb[0].mxu0 %v2194
      %v4030 = vpop.f32.mrb[0].mxu0
      %v4031 = vadd.f32 %v3867, %v4030
      %v4032 = vpop.f32.mrb[0].mxu0
      %v4033 = vpop.f32.mrb[0].mxu0
      %v4034 = vadd.f32 %v3870, %v4033
      %v4035 = vpop.f32.mrb[0].mxu0
      %4036 = vmatprep.mubr.bf16.mxu0 0
      %4037 = vmatmul.mubr.bf16.gmra.mrb[0].mxu0 %v2196
      %v4038 = vpop.f32.mrb[0].mxu0
      %v4039 = vadd.f32 %v3875, %v4038
      %v4040 = vpop.f32.mrb[0].mxu0
      %v4041 = vpop.f32.mrb[0].mxu0
      %v4042 = vadd.f32 %v3878, %v4041
      %v4043 = vpop.f32.mrb[0].mxu0
      %4044 = vmatprep.mubr.bf16.mxu0 0
      %4045 = vmatmul.mubr.bf16.gmra.mrb[0].mxu0 %v2198
      %v4046 = vpop.f32.mrb[0].mxu0
      %v4047 = vadd.f32 %v3883, %v4046
      %v4048 = vpop.f32.mrb[0].mxu0
      %v4049 = vpop.f32.mrb[0].mxu0
      %v4050 = vadd.f32 %v3886, %v4049
      %v4051 = vpop.f32.mrb[0].mxu0
      %4052 = vmatprep.mubr.bf16.mxu0 0
      %4053 = vmatmul.mubr.bf16.gmra.mrb[0].mxu0 %v2200
      %v4054 = vpop.f32.mrb[0].mxu0
      %v4055 = vadd.f32 %v3891, %v4054
      %v4056 = vpop.f32.mrb[0].mxu0
      %v4057 = vpop.f32.mrb[0].mxu0
      %v4058 = vadd.f32 %v3894, %v4057
      %v4059 = vpop.f32.mrb[0].mxu0
      %4060 = vmatprep.mubr.bf16.mxu0 0
      %4061 = vmatmul.mubr.bf16.gmra.mrb[0].mxu0 %v2202
      %v4062 = vpop.f32.mrb[0].mxu0
      %v4063 = vadd.f32 %v3899, %v4062
      %v4064 = vpop.f32.mrb[0].mxu0
      %v4065 = vpop.f32.mrb[0].mxu0
      %v4066 = vadd.f32 %v3902, %v4065
      %v4067 = vpop.f32.mrb[0].mxu0
      %4068 = vdwg.mxu0
      %v4069 = vld [vmem:[%s10] sm:$0xf]
      %v4071 = vsel %vm1395, %v3723, 0
      %v4074 = vsel %vm1395, %v3724, 0
      %v4077 = vsel %vm1395, %v3725, 0
      %v4080 = vsel %vm1395, %v3726, 0
      %v4083 = vsel %vm1395, %v3727, 0
      %v4086 = vsel %vm1395, %v3728, 0
      %v4089 = vsel %vm1395, %v3729, 0
      %v4092 = vsel %vm1395, %v3730, 0
      %v4095 = vsel %vm1395, %v3731, 0
      %v4098 = vsel %vm1395, %v3732, 0
      %v4101 = vsel %vm1395, %v3733, 0
      %v4104 = vsel %vm1395, %v3734, 0
      %v4107 = vsel %vm1395, %v3735, 0
      %v4110 = vsel %vm1395, %v3736, 0
      %v4113 = vsel %vm1395, %v3737, 0
      %v4116 = vsel %vm1395, %v3738, 0
      %v4119 = vsel %vm2007, %v4069, 0
      %4121 = vmatprep.subr.bf16.mxu0 0
      %4122 = vmatpush1.bf16.msra.mxu0 %v4119
      %4123 = vmatprep.subr.bf16.mxu0 0
      %4124 = vmatpush1.bf16.msra.mxu0 0
      %4125 = vmatprep.subr.bf16.mxu0 0
      %4126 = vmatpush1.bf16.msra.mxu0 0
      %4127 = vmatprep.subr.bf16.mxu0 0
      %4128 = vmatpush1.bf16.msra.mxu0 0
      %4129 = vmatprep.subr.bf16.mxu0 0
      %4130 = vmatpush1.bf16.msra.mxu0 0
      %4131 = vmatprep.subr.bf16.mxu0 0
      %4132 = vmatpush1.bf16.msra.mxu0 0
      %4133 = vmatprep.subr.bf16.mxu0 0
      %4134 = vmatpush1.bf16.msra.mxu0 0
      %4135 = vmatprep.subr.bf16.mxu0 0
      %4136 = vmatpush1.bf16.msra.mxu0 0
      %4137 = vmatprep.subr.bf16.mxu0 0
      %4138 = vmatpush1.bf16.msra.mxu0 0
      %4139 = vmatprep.subr.bf16.mxu0 0
      %4140 = vmatpush1.bf16.msra.mxu0 0
      %4141 = vmatprep.subr.bf16.mxu0 0
      %4142 = vmatpush1.bf16.msra.mxu0 0
      %4143 = vmatprep.subr.bf16.mxu0 0
      %4144 = vmatpush1.bf16.msra.mxu0 0
      %4145 = vmatprep.subr.bf16.mxu0 0
      %4146 = vmatpush1.bf16.msra.mxu0 0
      %4147 = vmatprep.subr.bf16.mxu0 0
      %4148 = vmatpush1.bf16.msra.mxu0 0
      %4149 = vmatprep.subr.bf16.mxu0 0
      %4150 = vmatpush1.bf16.msra.mxu0 0
      %4151 = vmatprep.subr.bf16.mxu0 0
      %4152 = vmatpush1.bf16.msra.mxu0 0
      %4153 = vmatprep.mubr.bf16.mxu0 0
      %4154 = vmatmul.mubr.bf16.gmra.mrb[0].mxu0 %v4071
      %v4155 = vpop.f32.mrb[0].mxu0
      %v4156 = vadd.f32 0.0, %v4155
      %v4157 = vpop.f32.mrb[0].mxu0
      %v4158 = vpop.f32.mrb[0].mxu0
      %v4159 = vadd.f32 0.0, %v4158
      %v4160 = vpop.f32.mrb[0].mxu0
      %4161 = vmatprep.mubr.bf16.mxu0 0
      %4162 = vmatmul.mubr.bf16.gmra.mrb[0].mxu0 %v4074
      %v4163 = vpop.f32.mrb[0].mxu0
      %v4164 = vadd.f32 0.0, %v4163
      %v4165 = vpop.f32.mrb[0].mxu0
      %v4166 = vpop.f32.mrb[0].mxu0
      %v4167 = vadd.f32 0.0, %v4166
      %v4168 = vpop.f32.mrb[0].mxu0
      %4169 = vmatprep.mubr.bf16.mxu0 0
      %4170 = vmatmul.mubr.bf16.gmra.mrb[0].mxu0 %v4077
      %v4171 = vpop.f32.mrb[0].mxu0
      %v4172 = vadd.f32 0.0, %v4171
      %v4173 = vpop.f32.mrb[0].mxu0
      %v4174 = vpop.f32.mrb[0].mxu0
      %v4175 = vadd.f32 0.0, %v4174
      %v4176 = vpop.f32.mrb[0].mxu0
      %4177 = vmatprep.mubr.bf16.mxu0 0
      %4178 = vmatmul.mubr.bf16.gmra.mrb[0].mxu0 %v4080
      %v4179 = vpop.f32.mrb[0].mxu0
      %v4180 = vadd.f32 0.0, %v4179
      %v4181 = vpop.f32.mrb[0].mxu0
      %v4182 = vpop.f32.mrb[0].mxu0
      %v4183 = vadd.f32 0.0, %v4182
      %v4184 = vpop.f32.mrb[0].mxu0
      %4185 = vmatprep.mubr.bf16.mxu0 0
      %4186 = vmatmul.mubr.bf16.gmra.mrb[0].mxu0 %v4083
      %v4187 = vpop.f32.mrb[0].mxu0
      %v4188 = vadd.f32 0.0, %v4187
      %v4189 = vpop.f32.mrb[0].mxu0
      %v4190 = vpop.f32.mrb[0].mxu0
      %v4191 = vadd.f32 0.0, %v4190
      %v4192 = vpop.f32.mrb[0].mxu0
      %4193 = vmatprep.mubr.bf16.mxu0 0
      %4194 = vmatmul.mubr.bf16.gmra.mrb[0].mxu0 %v4086
      %v4195 = vpop.f32.mrb[0].mxu0
      %v4196 = vadd.f32 0.0, %v4195
      %v4197 = vpop.f32.mrb[0].mxu0
      %v4198 = vpop.f32.mrb[0].mxu0
      %v4199 = vadd.f32 0.0, %v4198
      %v4200 = vpop.f32.mrb[0].mxu0
      %4201 = vmatprep.mubr.bf16.mxu0 0
      %4202 = vmatmul.mubr.bf16.gmra.mrb[0].mxu0 %v4089
      %v4203 = vpop.f32.mrb[0].mxu0
      %v4204 = vadd.f32 0.0, %v4203
      %v4205 = vpop.f32.mrb[0].mxu0
      %v4206 = vpop.f32.mrb[0].mxu0
      %v4207 = vadd.f32 0.0, %v4206
      %v4208 = vpop.f32.mrb[0].mxu0
      %4209 = vmatprep.mubr.bf16.mxu0 0
      %4210 = vmatmul.mubr.bf16.gmra.mrb[0].mxu0 %v4092
      %v4211 = vpop.f32.mrb[0].mxu0
      %v4212 = vadd.f32 0.0, %v4211
      %v4213 = vpop.f32.mrb[0].mxu0
      %v4214 = vpop.f32.mrb[0].mxu0
      %v4215 = vadd.f32 0.0, %v4214
      %v4216 = vpop.f32.mrb[0].mxu0
      %4217 = vmatprep.mubr.bf16.mxu0 0
      %4218 = vmatmul.mubr.bf16.gmra.mrb[0].mxu0 %v4095
      %v4219 = vpop.f32.mrb[0].mxu0
      %v4220 = vadd.f32 0.0, %v4219
      %v4221 = vpop.f32.mrb[0].mxu0
      %v4222 = vpop.f32.mrb[0].mxu0
      %v4223 = vadd.f32 0.0, %v4222
      %v4224 = vpop.f32.mrb[0].mxu0
      %4225 = vmatprep.mubr.bf16.mxu0 0
      %4226 = vmatmul.mubr.bf16.gmra.mrb[0].mxu0 %v4098
      %v4227 = vpop.f32.mrb[0].mxu0
      %v4228 = vadd.f32 0.0, %v4227
      %v4229 = vpop.f32.mrb[0].mxu0
      %v4230 = vpop.f32.mrb[0].mxu0
      %v4231 = vadd.f32 0.0, %v4230
      %v4232 = vpop.f32.mrb[0].mxu0
      %4233 = vmatprep.mubr.bf16.mxu0 0
      %4234 = vmatmul.mubr.bf16.gmra.mrb[0].mxu0 %v4101
      %v4235 = vpop.f32.mrb[0].mxu0
      %v4236 = vadd.f32 0.0, %v4235
      %v4237 = vpop.f32.mrb[0].mxu0
      %v4238 = vpop.f32.mrb[0].mxu0
      %v4239 = vadd.f32 0.0, %v4238
      %v4240 = vpop.f32.mrb[0].mxu0
      %4241 = vmatprep.mubr.bf16.mxu0 0
      %4242 = vmatmul.mubr.bf16.gmra.mrb[0].mxu0 %v4104
      %v4243 = vpop.f32.mrb[0].mxu0
      %v4244 = vadd.f32 0.0, %v4243
      %v4245 = vpop.f32.mrb[0].mxu0
      %v4246 = vpop.f32.mrb[0].mxu0
      %v4247 = vadd.f32 0.0, %v4246
      %v4248 = vpop.f32.mrb[0].mxu0
      %4249 = vmatprep.mubr.bf16.mxu0 0
      %4250 = vmatmul.mubr.bf16.gmra.mrb[0].mxu0 %v4107
      %v4251 = vpop.f32.mrb[0].mxu0
      %v4252 = vadd.f32 0.0, %v4251
      %v4253 = vpop.f32.mrb[0].mxu0
      %v4254 = vpop.f32.mrb[0].mxu0
      %v4255 = vadd.f32 0.0, %v4254
      %v4256 = vpop.f32.mrb[0].mxu0
      %4257 = vmatprep.mubr.bf16.mxu0 0
      %4258 = vmatmul.mubr.bf16.gmra.mrb[0].mxu0 %v4110
      %v4259 = vpop.f32.mrb[0].mxu0
      %v4260 = vadd.f32 0.0, %v4259
      %v4261 = vpop.f32.mrb[0].mxu0
      %v4262 = vpop.f32.mrb[0].mxu0
      %v4263 = vadd.f32 0.0, %v4262
      %v4264 = vpop.f32.mrb[0].mxu0
      %4265 = vmatprep.mubr.bf16.mxu0 0
      %4266 = vmatmul.mubr.bf16.gmra.mrb[0].mxu0 %v4113
      %v4267 = vpop.f32.mrb[0].mxu0
      %v4268 = vadd.f32 0.0, %v4267
      %v4269 = vpop.f32.mrb[0].mxu0
      %v4270 = vpop.f32.mrb[0].mxu0
      %v4271 = vadd.f32 0.0, %v4270
      %v4272 = vpop.f32.mrb[0].mxu0
      %4273 = vmatprep.mubr.bf16.mxu0 0
      %4274 = vmatmul.mubr.bf16.gmra.mrb[0].mxu0 %v4116
      %v4275 = vpop.f32.mrb[0].mxu0
      %v4276 = vadd.f32 0.0, %v4275
      %v4277 = vpop.f32.mrb[0].mxu0
      %v4278 = vpop.f32.mrb[0].mxu0
      %v4279 = vadd.f32 0.0, %v4278
      %v4280 = vpop.f32.mrb[0].mxu0
      %4281 = vdwg.mxu0
      %v4282 = vadd.f32 %v3943, %v4156
      %v4283 = vadd.f32 %v3946, %v4159
      %v4284 = vadd.f32 %v3951, %v4164
      %v4285 = vadd.f32 %v3954, %v4167
      %v4286 = vadd.f32 %v3959, %v4172
      %v4287 = vadd.f32 %v3962, %v4175
      %v4288 = vadd.f32 %v3967, %v4180
      %v4289 = vadd.f32 %v3970, %v4183
      %v4290 = vadd.f32 %v3975, %v4188
      %v4291 = vadd.f32 %v3978, %v4191
      %v4292 = vadd.f32 %v3983, %v4196
      %v4293 = vadd.f32 %v3986, %v4199
      %v4294 = vadd.f32 %v3991, %v4204
      %v4295 = vadd.f32 %v3994, %v4207
      %v4296 = vadd.f32 %v3999, %v4212
      %v4297 = vadd.f32 %v4002, %v4215
      %v4298 = vadd.f32 %v4007, %v4220
      %v4299 = vadd.f32 %v4010, %v4223
      %v4300 = vadd.f32 %v4015, %v4228
      %v4301 = vadd.f32 %v4018, %v4231
      %v4302 = vadd.f32 %v4023, %v4236
      %v4303 = vadd.f32 %v4026, %v4239
      %v4304 = vadd.f32 %v4031, %v4244
      %v4305 = vadd.f32 %v4034, %v4247
      %v4306 = vadd.f32 %v4039, %v4252
      %v4307 = vadd.f32 %v4042, %v4255
      %v4308 = vadd.f32 %v4047, %v4260
      %v4309 = vadd.f32 %v4050, %v4263
      %v4310 = vadd.f32 %v4055, %v4268
      %v4311 = vadd.f32 %v4058, %v4271
      %v4312 = vadd.f32 %v4063, %v4276
      %v4313 = vadd.f32 %v4066, %v4279
      %v4314 = vld [vmem:[%s11] sm:$0x1]
      %v4316 = vlaneseq
      %v4317 = vshrl.u32 %v4316, 7
      %v4318 = vsub.s32 0, %v4317
      %v4319 = vrot.slane %v4314, %v4318
      %v4321 = vadd.f32 %v4282, %v4319
      %v4322 = vadd.f32 %v4283, %v4319
      %v4323 = vadd.f32 %v4284, %v4319
      %v4324 = vadd.f32 %v4285, %v4319
      %v4325 = vadd.f32 %v4286, %v4319
      %v4326 = vadd.f32 %v4287, %v4319
      %v4327 = vadd.f32 %v4288, %v4319
      %v4328 = vadd.f32 %v4289, %v4319
      %v4329 = vadd.f32 %v4290, %v4319
      %v4330 = vadd.f32 %v4291, %v4319
      %v4331 = vadd.f32 %v4292, %v4319
      %v4332 = vadd.f32 %v4293, %v4319
      %v4333 = vadd.f32 %v4294, %v4319
      %v4334 = vadd.f32 %v4295, %v4319
      %v4335 = vadd.f32 %v4296, %v4319
      %v4336 = vadd.f32 %v4297, %v4319
      %v4337 = vadd.f32 %v4298, %v4319
      %v4338 = vadd.f32 %v4299, %v4319
      %v4339 = vadd.f32 %v4300, %v4319
      %v4340 = vadd.f32 %v4301, %v4319
      %v4341 = vadd.f32 %v4302, %v4319
      %v4342 = vadd.f32 %v4303, %v4319
      %v4343 = vadd.f32 %v4304, %v4319
      %v4344 = vadd.f32 %v4305, %v4319
      %v4345 = vadd.f32 %v4306, %v4319
      %v4346 = vadd.f32 %v4307, %v4319
      %v4347 = vadd.f32 %v4308, %v4319
      %v4348 = vadd.f32 %v4309, %v4319
      %v4349 = vadd.f32 %v4310, %v4319
      %v4350 = vadd.f32 %v4311, %v4319
      %v4351 = vadd.f32 %v4312, %v4319
      %v4352 = vadd.f32 %v4313, %v4319
      %v4353 = vpack.c.bf16 %v4322, %v4321
      %v4354 = vpack.c.bf16 %v4324, %v4323
      %v4355 = vpack.c.bf16 %v4326, %v4325
      %v4356 = vpack.c.bf16 %v4328, %v4327
      %v4357 = vpack.c.bf16 %v4330, %v4329
      %v4358 = vpack.c.bf16 %v4332, %v4331
      %v4359 = vpack.c.bf16 %v4334, %v4333
      %v4360 = vpack.c.bf16 %v4336, %v4335
      %v4361 = vpack.c.bf16 %v4338, %v4337
      %v4362 = vpack.c.bf16 %v4340, %v4339
      %v4363 = vpack.c.bf16 %v4342, %v4341
      %v4364 = vpack.c.bf16 %v4344, %v4343
      %v4365 = vpack.c.bf16 %v4346, %v4345
      %v4366 = vpack.c.bf16 %v4348, %v4347
      %v4367 = vpack.c.bf16 %v4350, %v4349
      %v4368 = vpack.c.bf16 %v4352, %v4351
      %v4369 = vld [vmem:[%s12] sm:$0xf]
      %v4370 = vld [vmem:[%s12 + $0x4] sm:$0xf]
      %v4371 = vld [vmem:[%s12 + $0x8] sm:$0xf]
      %v4372 = vld [vmem:[%s12 + $0xc] sm:$0xf]
      %v4373 = vld [vmem:[%s12 + $0x10] sm:$0xf]
      %v4374 = vld [vmem:[%s12 + $0x14] sm:$0xf]
      %v4375 = vld [vmem:[%s12 + $0x18] sm:$0xf]
      %v4376 = vld [vmem:[%s12 + $0x1c] sm:$0xf]
      %v4377 = vld [vmem:[%s12 + $0x20] sm:$0xf]
      %v4378 = vld [vmem:[%s13] sm:$0x1]
      %v4380 = vshrl.u32 %v4353, 16
      %v4382 = vrot.slane %v4380, 7
      %v4383 = vshll.u32 %v4353, 16
      %v4385 = vor.u32 %v4382, %v4383
      %v4387 = vshrl.u32 %v4354, 16
      %v4389 = vrot.slane %v4387, 7
      %v4390 = vshll.u32 %v4354, 16
      %v4392 = vor.u32 %v4389, %v4390
      %v4394 = vshrl.u32 %v4355, 16
      %v4396 = vrot.slane %v4394, 7
      %v4397 = vshll.u32 %v4355, 16
      %v4399 = vor.u32 %v4396, %v4397
      %v4401 = vshrl.u32 %v4356, 16
      %v4403 = vrot.slane %v4401, 7
      %v4404 = vshll.u32 %v4356, 16
      %v4406 = vor.u32 %v4403, %v4404
      %v4408 = vshrl.u32 %v4357, 16
      %v4410 = vrot.slane %v4408, 7
      %v4411 = vshll.u32 %v4357, 16
      %v4413 = vor.u32 %v4410, %v4411
      %v4415 = vshrl.u32 %v4358, 16
      %v4417 = vrot.slane %v4415, 7
      %v4418 = vshll.u32 %v4358, 16
      %v4420 = vor.u32 %v4417, %v4418
      %v4422 = vshrl.u32 %v4359, 16
      %v4424 = vrot.slane %v4422, 7
      %v4425 = vshll.u32 %v4359, 16
      %v4427 = vor.u32 %v4424, %v4425
      %v4429 = vshrl.u32 %v4360, 16
      %v4431 = vrot.slane %v4429, 7
      %v4432 = vshll.u32 %v4360, 16
      %v4434 = vor.u32 %v4431, %v4432
      %v4436 = vshrl.u32 %v4361, 16
      %v4438 = vrot.slane %v4436, 7
      %v4439 = vshll.u32 %v4361, 16
      %v4441 = vor.u32 %v4438, %v4439
      %v4443 = vshrl.u32 %v4362, 16
      %v4445 = vrot.slane %v4443, 7
      %v4446 = vshll.u32 %v4362, 16
      %v4448 = vor.u32 %v4445, %v4446
      %v4450 = vshrl.u32 %v4363, 16
      %v4452 = vrot.slane %v4450, 7
      %v4453 = vshll.u32 %v4363, 16
      %v4455 = vor.u32 %v4452, %v4453
      %v4457 = vshrl.u32 %v4364, 16
      %v4459 = vrot.slane %v4457, 7
      %v4460 = vshll.u32 %v4364, 16
      %v4462 = vor.u32 %v4459, %v4460
      %v4464 = vshrl.u32 %v4365, 16
      %v4466 = vrot.slane %v4464, 7
      %v4467 = vshll.u32 %v4365, 16
      %v4469 = vor.u32 %v4466, %v4467
      %v4471 = vshrl.u32 %v4366, 16
      %v4473 = vrot.slane %v4471, 7
      %v4474 = vshll.u32 %v4366, 16
      %v4476 = vor.u32 %v4473, %v4474
      %v4478 = vshrl.u32 %v4367, 16
      %v4480 = vrot.slane %v4478, 7
      %v4481 = vshll.u32 %v4367, 16
      %v4483 = vor.u32 %v4480, %v4481
      %v4485 = vshrl.u32 %v4368, 16
      %v4487 = vrot.slane %v4485, 7
      %v4488 = vshll.u32 %v4368, 16
      %v4490 = vor.u32 %v4487, %v4488
      %v4523 = vsel %vm780, 0, %v4385
      %v4524 = vsel %vm780, 0, %v4392
      %v4525 = vsel %vm780, 0, %v4399
      %v4526 = vsel %vm780, 0, %v4406
      %v4527 = vsel %vm780, 0, %v4413
      %v4528 = vsel %vm780, 0, %v4420
      %v4529 = vsel %vm780, 0, %v4427
      %v4530 = vsel %vm780, 0, %v4434
      %v4531 = vsel %vm780, 0, %v4441
      %v4532 = vsel %vm780, 0, %v4448
      %v4533 = vsel %vm780, 0, %v4455
      %v4534 = vsel %vm780, 0, %v4462
      %v4535 = vsel %vm780, 0, %v4469
      %v4536 = vsel %vm780, 0, %v4476
      %v4537 = vsel %vm780, 0, %v4483
      %v4538 = vsel %vm780, 0, %v4490
      %v4539 = vsel %vm780, %v4382, 0
      %v4540 = vsel %vm780, %v4389, 0
      %v4541 = vsel %vm780, %v4396, 0
      %v4542 = vsel %vm780, %v4403, 0
      %v4543 = vsel %vm780, %v4410, 0
      %v4544 = vsel %vm780, %v4417, 0
      %v4545 = vsel %vm780, %v4424, 0
      %v4546 = vsel %vm780, %v4431, 0
      %v4547 = vsel %vm780, %v4438, 0
      %v4548 = vsel %vm780, %v4445, 0
      %v4549 = vsel %vm780, %v4452, 0
      %v4550 = vsel %vm780, %v4459, 0
      %v4551 = vsel %vm780, %v4466, 0
      %v4552 = vsel %vm780, %v4473, 0
      %v4553 = vsel %vm780, %v4480, 0
      %v4554 = vsel %vm780, %v4487, 0
      %v4556 = vshrl.u32 %v4523, 16
      %v4558 = vshll.u32 %v4523, 16
      %v4560 = vrot.slane %v4558, 1
      %v4561 = vor.u32 %v4556, %v4560
      %v4563 = vshll.u32 %v4539, 16
      %v4565 = vrot.slane %v4563, 1
      %v4566 = vsel %vm815, %v4561, %v4565
      %v4568 = vshrl.u32 %v4524, 16
      %v4570 = vshll.u32 %v4524, 16
      %v4572 = vrot.slane %v4570, 1
      %v4573 = vor.u32 %v4568, %v4572
      %v4575 = vshll.u32 %v4540, 16
      %v4577 = vrot.slane %v4575, 1
      %v4578 = vsel %vm815, %v4573, %v4577
      %v4580 = vshrl.u32 %v4525, 16
      %v4582 = vshll.u32 %v4525, 16
      %v4584 = vrot.slane %v4582, 1
      %v4585 = vor.u32 %v4580, %v4584
      %v4587 = vshll.u32 %v4541, 16
      %v4589 = vrot.slane %v4587, 1
      %v4590 = vsel %vm815, %v4585, %v4589
      %v4592 = vshrl.u32 %v4526, 16
      %v4594 = vshll.u32 %v4526, 16
      %v4596 = vrot.slane %v4594, 1
      %v4597 = vor.u32 %v4592, %v4596
      %v4599 = vshll.u32 %v4542, 16
      %v4601 = vrot.slane %v4599, 1
      %v4602 = vsel %vm815, %v4597, %v4601
      %v4604 = vshrl.u32 %v4527, 16
      %v4606 = vshll.u32 %v4527, 16
      %v4608 = vrot.slane %v4606, 1
      %v4609 = vor.u32 %v4604, %v4608
      %v4611 = vshll.u32 %v4543, 16
      %v4613 = vrot.slane %v4611, 1
      %v4614 = vsel %vm815, %v4609, %v4613
      %v4616 = vshrl.u32 %v4528, 16
      %v4618 = vshll.u32 %v4528, 16
      %v4620 = vrot.slane %v4618, 1
      %v4621 = vor.u32 %v4616, %v4620
      %v4623 = vshll.u32 %v4544, 16
      %v4625 = vrot.slane %v4623, 1
      %v4626 = vsel %vm815, %v4621, %v4625
      %v4628 = vshrl.u32 %v4529, 16
      %v4630 = vshll.u32 %v4529, 16
      %v4632 = vrot.slane %v4630, 1
      %v4633 = vor.u32 %v4628, %v4632
      %v4635 = vshll.u32 %v4545, 16
      %v4637 = vrot.slane %v4635, 1
      %v4638 = vsel %vm815, %v4633, %v4637
      %v4640 = vshrl.u32 %v4530, 16
      %v4642 = vshll.u32 %v4530, 16
      %v4644 = vrot.slane %v4642, 1
      %v4645 = vor.u32 %v4640, %v4644
      %v4647 = vshll.u32 %v4546, 16
      %v4649 = vrot.slane %v4647, 1
      %v4650 = vsel %vm815, %v4645, %v4649
      %v4652 = vshrl.u32 %v4531, 16
      %v4654 = vshll.u32 %v4531, 16
      %v4656 = vrot.slane %v4654, 1
      %v4657 = vor.u32 %v4652, %v4656
      %v4659 = vshll.u32 %v4547, 16
      %v4661 = vrot.slane %v4659, 1
      %v4662 = vsel %vm815, %v4657, %v4661
      %v4664 = vshrl.u32 %v4532, 16
      %v4666 = vshll.u32 %v4532, 16
      %v4668 = vrot.slane %v4666, 1
      %v4669 = vor.u32 %v4664, %v4668
      %v4671 = vshll.u32 %v4548, 16
      %v4673 = vrot.slane %v4671, 1
      %v4674 = vsel %vm815, %v4669, %v4673
      %v4676 = vshrl.u32 %v4533, 16
      %v4678 = vshll.u32 %v4533, 16
      %v4680 = vrot.slane %v4678, 1
      %v4681 = vor.u32 %v4676, %v4680
      %v4683 = vshll.u32 %v4549, 16
      %v4685 = vrot.slane %v4683, 1
      %v4686 = vsel %vm815, %v4681, %v4685
      %v4688 = vshrl.u32 %v4534, 16
      %v4690 = vshll.u32 %v4534, 16
      %v4692 = vrot.slane %v4690, 1
      %v4693 = vor.u32 %v4688, %v4692
      %v4695 = vshll.u32 %v4550, 16
      %v4697 = vrot.slane %v4695, 1
      %v4698 = vsel %vm815, %v4693, %v4697
      %v4700 = vshrl.u32 %v4535, 16
      %v4702 = vshll.u32 %v4535, 16
      %v4704 = vrot.slane %v4702, 1
      %v4705 = vor.u32 %v4700, %v4704
      %v4707 = vshll.u32 %v4551, 16
      %v4709 = vrot.slane %v4707, 1
      %v4710 = vsel %vm815, %v4705, %v4709
      %v4712 = vshrl.u32 %v4536, 16
      %v4714 = vshll.u32 %v4536, 16
      %v4716 = vrot.slane %v4714, 1
      %v4717 = vor.u32 %v4712, %v4716
      %v4719 = vshll.u32 %v4552, 16
      %v4721 = vrot.slane %v4719, 1
      %v4722 = vsel %vm815, %v4717, %v4721
      %v4724 = vshrl.u32 %v4537, 16
      %v4726 = vshll.u32 %v4537, 16
      %v4728 = vrot.slane %v4726, 1
      %v4729 = vor.u32 %v4724, %v4728
      %v4731 = vshll.u32 %v4553, 16
      %v4733 = vrot.slane %v4731, 1
      %v4734 = vsel %vm815, %v4729, %v4733
      %v4765 = vrot.slane %v4523, 1
      %v4766 = vrot.slane %v4539, 1
      %v4767 = vsel %vm1040, %v4765, %v4766
      %v4768 = vrot.slane %v4524, 1
      %v4769 = vrot.slane %v4540, 1
      %v4770 = vsel %vm1040, %v4768, %v4769
      %v4771 = vrot.slane %v4525, 1
      %v4772 = vrot.slane %v4541, 1
      %v4773 = vsel %vm1040, %v4771, %v4772
      %v4774 = vrot.slane %v4526, 1
      %v4775 = vrot.slane %v4542, 1
      %v4776 = vsel %vm1040, %v4774, %v4775
      %v4777 = vrot.slane %v4527, 1
      %v4778 = vrot.slane %v4543, 1
      %v4779 = vsel %vm1040, %v4777, %v4778
      %v4780 = vrot.slane %v4528, 1
      %v4781 = vrot.slane %v4544, 1
      %v4782 = vsel %vm1040, %v4780, %v4781
      %v4783 = vrot.slane %v4529, 1
      %v4784 = vrot.slane %v4545, 1
      %v4785 = vsel %vm1040, %v4783, %v4784
      %v4786 = vrot.slane %v4530, 1
      %v4787 = vrot.slane %v4546, 1
      %v4788 = vsel %vm1040, %v4786, %v4787
      %v4789 = vrot.slane %v4531, 1
      %v4790 = vrot.slane %v4547, 1
      %v4791 = vsel %vm1040, %v4789, %v4790
      %v4792 = vrot.slane %v4532, 1
      %v4793 = vrot.slane %v4548, 1
      %v4794 = vsel %vm1040, %v4792, %v4793
      %v4795 = vrot.slane %v4533, 1
      %v4796 = vrot.slane %v4549, 1
      %v4797 = vsel %vm1040, %v4795, %v4796
      %v4798 = vrot.slane %v4534, 1
      %v4799 = vrot.slane %v4550, 1
      %v4800 = vsel %vm1040, %v4798, %v4799
      %v4801 = vrot.slane %v4535, 1
      %v4802 = vrot.slane %v4551, 1
      %v4803 = vsel %vm1040, %v4801, %v4802
      %v4804 = vrot.slane %v4536, 1
      %v4805 = vrot.slane %v4552, 1
      %v4806 = vsel %vm1040, %v4804, %v4805
      %v4807 = vrot.slane %v4537, 1
      %v4808 = vrot.slane %v4553, 1
      %v4809 = vsel %vm1040, %v4807, %v4808
      %v4811 = vshrl.u32 %v4538, 16
      %v4813 = vshll.u32 %v4538, 16
      %v4815 = vrot.slane %v4813, 1
      %v4816 = vor.u32 %v4811, %v4815
      %v4818 = vshll.u32 %v4554, 16
      %v4820 = vrot.slane %v4818, 1
      %v4821 = vsel %vm815, %v4816, %v4820
      %v4824 = vrot.slane %v4538, 1
      %v4825 = vrot.slane %v4554, 1
      %v4826 = vsel %vm1040, %v4824, %v4825
      %4827 = vrot.lane.b32.xlu0 %v4566, 8
      %v4828 = vpop.permute.xlu0 %4827
      %4829 = vrot.lane.b32.xlu0 %v4578, 8
      %v4830 = vpop.permute.xlu0 %4829
      %4831 = vrot.lane.b32.xlu0 %v4590, 8
      %v4832 = vpop.permute.xlu0 %4831
      %4833 = vrot.lane.b32.xlu0 %v4602, 8
      %v4834 = vpop.permute.xlu0 %4833
      %4835 = vrot.lane.b32.xlu0 %v4614, 8
      %v4836 = vpop.permute.xlu0 %4835
      %4837 = vrot.lane.b32.xlu0 %v4626, 8
      %v4838 = vpop.permute.xlu0 %4837
      %4839 = vrot.lane.b32.xlu0 %v4638, 8
      %v4840 = vpop.permute.xlu0 %4839
      %4841 = vrot.lane.b32.xlu0 %v4650, 8
      %v4842 = vpop.permute.xlu0 %4841
      %4843 = vrot.lane.b32.xlu0 %v4662, 8
      %v4844 = vpop.permute.xlu0 %4843
      %4845 = vrot.lane.b32.xlu0 %v4674, 8
      %v4846 = vpop.permute.xlu0 %4845
      %4847 = vrot.lane.b32.xlu0 %v4686, 8
      %v4848 = vpop.permute.xlu0 %4847
      %4849 = vrot.lane.b32.xlu0 %v4698, 8
      %v4850 = vpop.permute.xlu0 %4849
      %4851 = vrot.lane.b32.xlu0 %v4710, 8
      %v4852 = vpop.permute.xlu0 %4851
      %4853 = vrot.lane.b32.xlu0 %v4722, 8
      %v4854 = vpop.permute.xlu0 %4853
      %4855 = vrot.lane.b32.xlu0 %v4734, 8
      %v4856 = vpop.permute.xlu0 %4855
      %4857 = vrot.lane.b32.xlu0 %v4767, 16
      %v4858 = vpop.permute.xlu0 %4857
      %4859 = vrot.lane.b32.xlu0 %v4770, 16
      %v4860 = vpop.permute.xlu0 %4859
      %4861 = vrot.lane.b32.xlu0 %v4773, 16
      %v4862 = vpop.permute.xlu0 %4861
      %4863 = vrot.lane.b32.xlu0 %v4776, 16
      %v4864 = vpop.permute.xlu0 %4863
      %4865 = vrot.lane.b32.xlu0 %v4779, 16
      %v4866 = vpop.permute.xlu0 %4865
      %4867 = vrot.lane.b32.xlu0 %v4782, 16
      %v4868 = vpop.permute.xlu0 %4867
      %4869 = vrot.lane.b32.xlu0 %v4785, 16
      %v4870 = vpop.permute.xlu0 %4869
      %4871 = vrot.lane.b32.xlu0 %v4788, 16
      %v4872 = vpop.permute.xlu0 %4871
      %4873 = vrot.lane.b32.xlu0 %v4791, 16
      %v4874 = vpop.permute.xlu0 %4873
      %4875 = vrot.lane.b32.xlu0 %v4794, 16
      %v4876 = vpop.permute.xlu0 %4875
      %4877 = vrot.lane.b32.xlu0 %v4797, 16
      %v4878 = vpop.permute.xlu0 %4877
      %4879 = vrot.lane.b32.xlu0 %v4800, 16
      %v4880 = vpop.permute.xlu0 %4879
      %4881 = vrot.lane.b32.xlu0 %v4803, 16
      %v4882 = vpop.permute.xlu0 %4881
      %4883 = vrot.lane.b32.xlu0 %v4806, 16
      %v4884 = vpop.permute.xlu0 %4883
      %4885 = vrot.lane.b32.xlu0 %v4809, 16
      %v4886 = vpop.permute.xlu0 %4885
      %4887 = vrot.lane.b32.xlu0 %v4523, 24
      %v4888 = vpop.permute.xlu0 %4887
      %4889 = vrot.lane.b32.xlu0 %v4524, 24
      %v4890 = vpop.permute.xlu0 %4889
      %4891 = vrot.lane.b32.xlu0 %v4525, 24
      %v4892 = vpop.permute.xlu0 %4891
      %4893 = vrot.lane.b32.xlu0 %v4526, 24
      %v4894 = vpop.permute.xlu0 %4893
      %4895 = vrot.lane.b32.xlu0 %v4527, 24
      %v4896 = vpop.permute.xlu0 %4895
      %4897 = vrot.lane.b32.xlu0 %v4528, 24
      %v4898 = vpop.permute.xlu0 %4897
      %4899 = vrot.lane.b32.xlu0 %v4529, 24
      %v4900 = vpop.permute.xlu0 %4899
      %4901 = vrot.lane.b32.xlu0 %v4530, 24
      %v4902 = vpop.permute.xlu0 %4901
      %4903 = vrot.lane.b32.xlu0 %v4531, 24
      %v4904 = vpop.permute.xlu0 %4903
      %4905 = vrot.lane.b32.xlu0 %v4532, 24
      %v4906 = vpop.permute.xlu0 %4905
      %4907 = vrot.lane.b32.xlu0 %v4533, 24
      %v4908 = vpop.permute.xlu0 %4907
      %4909 = vrot.lane.b32.xlu0 %v4534, 24
      %v4910 = vpop.permute.xlu0 %4909
      %4911 = vrot.lane.b32.xlu0 %v4535, 24
      %v4912 = vpop.permute.xlu0 %4911
      %4913 = vrot.lane.b32.xlu0 %v4536, 24
      %v4914 = vpop.permute.xlu0 %4913
      %4915 = vrot.lane.b32.xlu0 %v4537, 24
      %v4916 = vpop.permute.xlu0 %4915
      %4917 = vrot.lane.b32.xlu0 %v4538, 24
      %v4918 = vpop.permute.xlu0 %4917
      %4919 = vrot.lane.b32.xlu0 %v4566, 32
      %v4920 = vpop.permute.xlu0 %4919
      %4921 = vrot.lane.b32.xlu0 %v4578, 32
      %v4922 = vpop.permute.xlu0 %4921
      %4923 = vrot.lane.b32.xlu0 %v4590, 32
      %v4924 = vpop.permute.xlu0 %4923
      %4925 = vrot.lane.b32.xlu0 %v4602, 32
      %v4926 = vpop.permute.xlu0 %4925
      %4927 = vrot.lane.b32.xlu0 %v4614, 32
      %v4928 = vpop.permute.xlu0 %4927
      %4929 = vrot.lane.b32.xlu0 %v4626, 32
      %v4930 = vpop.permute.xlu0 %4929
      %4931 = vrot.lane.b32.xlu0 %v4638, 32
      %v4932 = vpop.permute.xlu0 %4931
      %4933 = vrot.lane.b32.xlu0 %v4650, 32
      %v4934 = vpop.permute.xlu0 %4933
      %4935 = vrot.lane.b32.xlu0 %v4662, 32
      %v4936 = vpop.permute.xlu0 %4935
      %4937 = vrot.lane.b32.xlu0 %v4674, 32
      %v4938 = vpop.permute.xlu0 %4937
      %4939 = vrot.lane.b32.xlu0 %v4686, 32
      %v4940 = vpop.permute.xlu0 %4939
      %4941 = vrot.lane.b32.xlu0 %v4698, 32
      %v4942 = vpop.permute.xlu0 %4941
      %4943 = vrot.lane.b32.xlu0 %v4710, 32
      %v4944 = vpop.permute.xlu0 %4943
      %4945 = vrot.lane.b32.xlu0 %v4722, 32
      %v4946 = vpop.permute.xlu0 %4945
      %4947 = vrot.lane.b32.xlu0 %v4734, 32
      %v4948 = vpop.permute.xlu0 %4947
      %4949 = vrot.lane.b32.xlu0 %v4821, 32
      %v4950 = vpop.permute.xlu0 %4949
      %4951 = vrot.lane.b32.xlu0 %v4767, 40
      %v4952 = vpop.permute.xlu0 %4951
      %4953 = vrot.lane.b32.xlu0 %v4770, 40
      %v4954 = vpop.permute.xlu0 %4953
      %4955 = vrot.lane.b32.xlu0 %v4773, 40
      %v4956 = vpop.permute.xlu0 %4955
      %4957 = vrot.lane.b32.xlu0 %v4776, 40
      %v4958 = vpop.permute.xlu0 %4957
      %4959 = vrot.lane.b32.xlu0 %v4779, 40
      %v4960 = vpop.permute.xlu0 %4959
      %4961 = vrot.lane.b32.xlu0 %v4782, 40
      %v4962 = vpop.permute.xlu0 %4961
      %4963 = vrot.lane.b32.xlu0 %v4785, 40
      %v4964 = vpop.permute.xlu0 %4963
      %4965 = vrot.lane.b32.xlu0 %v4788, 40
      %v4966 = vpop.permute.xlu0 %4965
      %4967 = vrot.lane.b32.xlu0 %v4791, 40
      %v4968 = vpop.permute.xlu0 %4967
      %4969 = vrot.lane.b32.xlu0 %v4794, 40
      %v4970 = vpop.permute.xlu0 %4969
      %4971 = vrot.lane.b32.xlu0 %v4797, 40
      %v4972 = vpop.permute.xlu0 %4971
      %4973 = vrot.lane.b32.xlu0 %v4800, 40
      %v4974 = vpop.permute.xlu0 %4973
      %4975 = vrot.lane.b32.xlu0 %v4803, 40
      %v4976 = vpop.permute.xlu0 %4975
      %4977 = vrot.lane.b32.xlu0 %v4806, 40
      %v4978 = vpop.permute.xlu0 %4977
      %4979 = vrot.lane.b32.xlu0 %v4809, 40
      %v4980 = vpop.permute.xlu0 %4979
      %4981 = vrot.lane.b32.xlu0 %v4826, 40
      %v4982 = vpop.permute.xlu0 %4981
      %4983 = vrot.lane.b32.xlu0 %v4524, 48
      %v4984 = vpop.permute.xlu0 %4983
      %4985 = vrot.lane.b32.xlu0 %v4525, 48
      %v4986 = vpop.permute.xlu0 %4985
      %4987 = vrot.lane.b32.xlu0 %v4526, 48
      %v4988 = vpop.permute.xlu0 %4987
      %4989 = vrot.lane.b32.xlu0 %v4527, 48
      %v4990 = vpop.permute.xlu0 %4989
      %4991 = vrot.lane.b32.xlu0 %v4528, 48
      %v4992 = vpop.permute.xlu0 %4991
      %4993 = vrot.lane.b32.xlu0 %v4529, 48
      %v4994 = vpop.permute.xlu0 %4993
      %4995 = vrot.lane.b32.xlu0 %v4530, 48
      %v4996 = vpop.permute.xlu0 %4995
      %4997 = vrot.lane.b32.xlu0 %v4531, 48
      %v4998 = vpop.permute.xlu0 %4997
      %4999 = vrot.lane.b32.xlu0 %v4532, 48
      %v5000 = vpop.permute.xlu0 %4999
      %5001 = vrot.lane.b32.xlu0 %v4533, 48
      %v5002 = vpop.permute.xlu0 %5001
      %5003 = vrot.lane.b32.xlu0 %v4534, 48
      %v5004 = vpop.permute.xlu0 %5003
      %5005 = vrot.lane.b32.xlu0 %v4535, 48
      %v5006 = vpop.permute.xlu0 %5005
      %5007 = vrot.lane.b32.xlu0 %v4536, 48
      %v5008 = vpop.permute.xlu0 %5007
      %5009 = vrot.lane.b32.xlu0 %v4537, 48
      %v5010 = vpop.permute.xlu0 %5009
      %5011 = vrot.lane.b32.xlu0 %v4538, 48
      %v5012 = vpop.permute.xlu0 %5011
      %5013 = vrot.lane.b32.xlu0 %v4578, 56
      %v5014 = vpop.permute.xlu0 %5013
      %5015 = vrot.lane.b32.xlu0 %v4590, 56
      %v5016 = vpop.permute.xlu0 %5015
      %5017 = vrot.lane.b32.xlu0 %v4602, 56
      %v5018 = vpop.permute.xlu0 %5017
      %5019 = vrot.lane.b32.xlu0 %v4614, 56
      %v5020 = vpop.permute.xlu0 %5019
      %5021 = vrot.lane.b32.xlu0 %v4626, 56
      %v5022 = vpop.permute.xlu0 %5021
      %5023 = vrot.lane.b32.xlu0 %v4638, 56
      %v5024 = vpop.permute.xlu0 %5023
      %5025 = vrot.lane.b32.xlu0 %v4650, 56
      %v5026 = vpop.permute.xlu0 %5025
      %5027 = vrot.lane.b32.xlu0 %v4662, 56
      %v5028 = vpop.permute.xlu0 %5027
      %5029 = vrot.lane.b32.xlu0 %v4674, 56
      %v5030 = vpop.permute.xlu0 %5029
      %5031 = vrot.lane.b32.xlu0 %v4686, 56
      %v5032 = vpop.permute.xlu0 %5031
      %5033 = vrot.lane.b32.xlu0 %v4698, 56
      %v5034 = vpop.permute.xlu0 %5033
      %5035 = vrot.lane.b32.xlu0 %v4710, 56
      %v5036 = vpop.permute.xlu0 %5035
      %5037 = vrot.lane.b32.xlu0 %v4722, 56
      %v5038 = vpop.permute.xlu0 %5037
      %5039 = vrot.lane.b32.xlu0 %v4734, 56
      %v5040 = vpop.permute.xlu0 %5039
      %5041 = vrot.lane.b32.xlu0 %v4821, 56
      %v5042 = vpop.permute.xlu0 %5041
      %5043 = vrot.lane.b32.xlu0 %v4770, 64
      %v5044 = vpop.permute.xlu0 %5043
      %5045 = vrot.lane.b32.xlu0 %v4773, 64
      %v5046 = vpop.permute.xlu0 %5045
      %5047 = vrot.lane.b32.xlu0 %v4776, 64
      %v5048 = vpop.permute.xlu0 %5047
      %5049 = vrot.lane.b32.xlu0 %v4779, 64
      %v5050 = vpop.permute.xlu0 %5049
      %5051 = vrot.lane.b32.xlu0 %v4782, 64
      %v5052 = vpop.permute.xlu0 %5051
      %5053 = vrot.lane.b32.xlu0 %v4785, 64
      %v5054 = vpop.permute.xlu0 %5053
      %5055 = vrot.lane.b32.xlu0 %v4788, 64
      %v5056 = vpop.permute.xlu0 %5055
      %5057 = vrot.lane.b32.xlu0 %v4791, 64
      %v5058 = vpop.permute.xlu0 %5057
      %5059 = vrot.lane.b32.xlu0 %v4794, 64
      %v5060 = vpop.permute.xlu0 %5059
      %5061 = vrot.lane.b32.xlu0 %v4797, 64
      %v5062 = vpop.permute.xlu0 %5061
      %5063 = vrot.lane.b32.xlu0 %v4800, 64
      %v5064 = vpop.permute.xlu0 %5063
      %5065 = vrot.lane.b32.xlu0 %v4803, 64
      %v5066 = vpop.permute.xlu0 %5065
      %5067 = vrot.lane.b32.xlu0 %v4806, 64
      %v5068 = vpop.permute.xlu0 %5067
      %5069 = vrot.lane.b32.xlu0 %v4809, 64
      %v5070 = vpop.permute.xlu0 %5069
      %5071 = vrot.lane.b32.xlu0 %v4826, 64
      %v5072 = vpop.permute.xlu0 %5071
      %v5074 = vsel %vm1395, %v4523, %v4828
      %v5076 = vsel %vm1395, %v4524, %v4830
      %v5078 = vsel %vm1395, %v4525, %v4832
      %v5080 = vsel %vm1395, %v4526, %v4834
      %v5082 = vsel %vm1395, %v4527, %v4836
      %v5084 = vsel %vm1395, %v4528, %v4838
      %v5086 = vsel %vm1395, %v4529, %v4840
      %v5088 = vsel %vm1395, %v4530, %v4842
      %v5090 = vsel %vm1395, %v4531, %v4844
      %v5092 = vsel %vm1395, %v4532, %v4846
      %v5094 = vsel %vm1395, %v4533, %v4848
      %v5096 = vsel %vm1395, %v4534, %v4850
      %v5098 = vsel %vm1395, %v4535, %v4852
      %v5100 = vsel %vm1395, %v4536, %v4854
      %v5102 = vsel %vm1395, %v4537, %v4856
      %v5104 = vsel %vm1461, %v5074, %v4858
      %v5106 = vsel %vm1461, %v5076, %v4860
      %v5108 = vsel %vm1461, %v5078, %v4862
      %v5110 = vsel %vm1461, %v5080, %v4864
      %v5112 = vsel %vm1461, %v5082, %v4866
      %v5114 = vsel %vm1461, %v5084, %v4868
      %v5116 = vsel %vm1461, %v5086, %v4870
      %v5118 = vsel %vm1461, %v5088, %v4872
      %v5120 = vsel %vm1461, %v5090, %v4874
      %v5122 = vsel %vm1461, %v5092, %v4876
      %v5124 = vsel %vm1461, %v5094, %v4878
      %v5126 = vsel %vm1461, %v5096, %v4880
      %v5128 = vsel %vm1461, %v5098, %v4882
      %v5130 = vsel %vm1461, %v5100, %v4884
      %v5132 = vsel %vm1461, %v5102, %v4886
      %v5134 = vsel %vm1527, %v3170, %v4888
      %v5136 = vsel %vm1527, %v5104, %v4890
      %v5138 = vsel %vm1527, %v5106, %v4892
      %v5140 = vsel %vm1527, %v5108, %v4894
      %v5142 = vsel %vm1527, %v5110, %v4896
      %v5144 = vsel %vm1527, %v5112, %v4898
      %v5146 = vsel %vm1527, %v5114, %v4900
      %v5148 = vsel %vm1527, %v5116, %v4902
      %v5150 = vsel %vm1527, %v5118, %v4904
      %v5152 = vsel %vm1527, %v5120, %v4906
      %v5154 = vsel %vm1527, %v5122, %v4908
      %v5156 = vsel %vm1527, %v5124, %v4910
      %v5158 = vsel %vm1527, %v5126, %v4912
      %v5160 = vsel %vm1527, %v5128, %v4914
      %v5162 = vsel %vm1527, %v5130, %v4916
      %v5164 = vsel %vm1527, %v5132, %v4918
      %v5166 = vsel %vm1593, %v5134, %v4920
      %v5168 = vsel %vm1593, %v5136, %v4922
      %v5170 = vsel %vm1593, %v5138, %v4924
      %v5172 = vsel %vm1593, %v5140, %v4926
      %v5174 = vsel %vm1593, %v5142, %v4928
      %v5176 = vsel %vm1593, %v5144, %v4930
      %v5178 = vsel %vm1593, %v5146, %v4932
      %v5180 = vsel %vm1593, %v5148, %v4934
      %v5182 = vsel %vm1593, %v5150, %v4936
      %v5184 = vsel %vm1593, %v5152, %v4938
      %v5186 = vsel %vm1593, %v5154, %v4940
      %v5188 = vsel %vm1593, %v5156, %v4942
      %v5190 = vsel %vm1593, %v5158, %v4944
      %v5192 = vsel %vm1593, %v5160, %v4946
      %v5194 = vsel %vm1593, %v5162, %v4948
      %v5196 = vsel %vm1593, %v5164, %v4950
      %v5198 = vsel %vm3265, %v5166, %v4952
      %v5200 = vsel %vm3265, %v5168, %v4954
      %v5202 = vsel %vm3265, %v5170, %v4956
      %v5204 = vsel %vm3265, %v5172, %v4958
      %v5206 = vsel %vm3265, %v5174, %v4960
      %v5208 = vsel %vm3265, %v5176, %v4962
      %v5210 = vsel %vm3265, %v5178, %v4964
      %v5212 = vsel %vm3265, %v5180, %v4966
      %v5214 = vsel %vm3265, %v5182, %v4968
      %v5216 = vsel %vm3265, %v5184, %v4970
      %v5218 = vsel %vm3265, %v5186, %v4972
      %v5220 = vsel %vm3265, %v5188, %v4974
      %v5222 = vsel %vm3265, %v5190, %v4976
      %v5224 = vsel %vm3265, %v5192, %v4978
      %v5226 = vsel %vm3265, %v5194, %v4980
      %v5228 = vsel %vm3265, %v5196, %v4982
      %v5230 = vsel %vm3298, %v5198, %v4984
      %v5232 = vsel %vm3298, %v5200, %v4986
      %v5234 = vsel %vm3298, %v5202, %v4988
      %v5236 = vsel %vm3298, %v5204, %v4990
      %v5238 = vsel %vm3298, %v5206, %v4992
      %v5240 = vsel %vm3298, %v5208, %v4994
      %v5242 = vsel %vm3298, %v5210, %v4996
      %v5244 = vsel %vm3298, %v5212, %v4998
      %v5246 = vsel %vm3298, %v5214, %v5000
      %v5248 = vsel %vm3298, %v5216, %v5002
      %v5250 = vsel %vm3298, %v5218, %v5004
      %v5252 = vsel %vm3298, %v5220, %v5006
      %v5254 = vsel %vm3298, %v5222, %v5008
      %v5256 = vsel %vm3298, %v5224, %v5010
      %v5258 = vsel %vm3298, %v5226, %v5012
      %v5259 = vsel %vm3298, %v5228, %v3072
      %v5261 = vsel %vm3331, %v5230, %v5014
      %v5263 = vsel %vm3331, %v5232, %v5016
      %v5265 = vsel %vm3331, %v5234, %v5018
      %v5267 = vsel %vm3331, %v5236, %v5020
      %v5269 = vsel %vm3331, %v5238, %v5022
      %v5271 = vsel %vm3331, %v5240, %v5024
      %v5273 = vsel %vm3331, %v5242, %v5026
      %v5275 = vsel %vm3331, %v5244, %v5028
      %v5277 = vsel %vm3331, %v5246, %v5030
      %v5279 = vsel %vm3331, %v5248, %v5032
      %v5281 = vsel %vm3331, %v5250, %v5034
      %v5283 = vsel %vm3331, %v5252, %v5036
      %v5285 = vsel %vm3331, %v5254, %v5038
      %v5287 = vsel %vm3331, %v5256, %v5040
      %v5289 = vsel %vm3331, %v5258, %v5042
      %v5290 = vsel %vm3331, %v5259, %v3104
      %v5292 = vsel %vm3364, %v5261, %v5044
      %v5294 = vsel %vm3364, %v5263, %v5046
      %v5296 = vsel %vm3364, %v5265, %v5048
      %v5298 = vsel %vm3364, %v5267, %v5050
      %v5300 = vsel %vm3364, %v5269, %v5052
      %v5302 = vsel %vm3364, %v5271, %v5054
      %v5304 = vsel %vm3364, %v5273, %v5056
      %v5306 = vsel %vm3364, %v5275, %v5058
      %v5308 = vsel %vm3364, %v5277, %v5060
      %v5310 = vsel %vm3364, %v5279, %v5062
      %v5312 = vsel %vm3364, %v5281, %v5064
      %v5314 = vsel %vm3364, %v5283, %v5066
      %v5316 = vsel %vm3364, %v5285, %v5068
      %v5318 = vsel %vm3364, %v5287, %v5070
      %v5320 = vsel %vm3364, %v5289, %v5072
      %v5321 = vsel %vm3364, %v5290, %v3136
      %v5323 = vlaneseq
      %v5324 = vshrl.u32 %v5323, 7
      %v5325 = vsub.s32 0, %v5324
      %v5326 = vrot.slane %v4378, %v5325
      %v5337 = vunpack.c.l.b16 %v4369
      %v5338 = vunpack.c.l.b16 %v4370
      %v5339 = vunpack.c.l.b16 %v4371
      %v5340 = vunpack.c.l.b16 %v4372
      %v5341 = vunpack.c.l.b16 %v4373
      %v5342 = vunpack.c.l.b16 %v4374
      %v5343 = vunpack.c.l.b16 %v4375
      %v5344 = vunpack.c.l.b16 %v4376
      %v5345 = vunpack.c.l.b16 %v4377
      %v5346 = vpack.c.b16 %v5338, %v5337
      %v5347 = vpack.c.b16 %v5340, %v5339
      %v5348 = vpack.c.b16 %v5342, %v5341
      %v5349 = vpack.c.b16 %v5344, %v5343
      %v5350 = vpack.c.b16 %v5345, %v5345
      %v5355 = vsel %vm3430, %v5292, 0
      %v5357 = vsel %vm3430, %v5294, 0
      %v5359 = vsel %vm3430, %v5296, 0
      %v5361 = vsel %vm3430, %v5298, 0
      %v5363 = vsel %vm3430, %v5300, 0
      %v5365 = vsel %vm3430, %v5302, 0
      %v5367 = vsel %vm3430, %v5304, 0
      %v5369 = vsel %vm3430, %v5306, 0
      %v5371 = vsel %vm3430, %v5308, 0
      %v5373 = vsel %vm3430, %v5310, 0
      %v5375 = vsel %vm3430, %v5312, 0
      %v5377 = vsel %vm3430, %v5314, 0
      %v5379 = vsel %vm3430, %v5316, 0
      %v5381 = vsel %vm3430, %v5318, 0
      %v5383 = vsel %vm3430, %v5320, 0
      %v5385 = vsel %vm3430, %v5321, 0
      %v5388 = vsel %vm2007, %v5350, 0
      %5390 = vmatprep.subr.bf16.mxu0 0
      %5391 = vmatpush1.bf16.msra.mxu0 %v5346
      %5392 = vmatprep.subr.bf16.mxu0 0
      %5393 = vmatpush1.bf16.msra.mxu0 %v5347
      %5394 = vmatprep.subr.bf16.mxu0 0
      %5395 = vmatpush1.bf16.msra.mxu0 %v5348
      %5396 = vmatprep.subr.bf16.mxu0 0
      %5397 = vmatpush1.bf16.msra.mxu0 %v5349
      %5398 = vmatprep.subr.bf16.mxu0 0
      %5399 = vmatpush1.bf16.msra.mxu0 %v5388
      %5400 = vmatprep.subr.bf16.mxu0 0
      %5401 = vmatpush1.bf16.msra.mxu0 0
      %5402 = vmatprep.subr.bf16.mxu0 0
      %5403 = vmatpush1.bf16.msra.mxu0 0
      %5404 = vmatprep.subr.bf16.mxu0 0
      %5405 = vmatpush1.bf16.msra.mxu0 0
      %5406 = vmatprep.subr.bf16.mxu0 0
      %5407 = vmatpush1.bf16.msra.mxu0 0
      %5408 = vmatprep.subr.bf16.mxu0 0
      %5409 = vmatpush1.bf16.msra.mxu0 0
      %5410 = vmatprep.subr.bf16.mxu0 0
      %5411 = vmatpush1.bf16.msra.mxu0 0
      %5412 = vmatprep.subr.bf16.mxu0 0
      %5413 = vmatpush1.bf16.msra.mxu0 0
      %5414 = vmatprep.subr.bf16.mxu0 0
      %5415 = vmatpush1.bf16.msra.mxu0 0
      %5416 = vmatprep.subr.bf16.mxu0 0
      %5417 = vmatpush1.bf16.msra.mxu0 0
      %5418 = vmatprep.subr.bf16.mxu0 0
      %5419 = vmatpush1.bf16.msra.mxu0 0
      %5420 = vmatprep.subr.bf16.mxu0 0
      %5421 = vmatpush1.bf16.msra.mxu0 0
      %5422 = vmatprep.mubr.bf16.mxu0 0
      %5423 = vmatmul.mubr.bf16.gmra.mrb[0].mxu0 %v5355
      %v5424 = vpop.f32.mrb[0].mxu0
      %v5425 = vadd.f32 %v5326, %v5424
      %v5426 = vpop.f32.mrb[0].mxu0
      %v5427 = vpop.f32.mrb[0].mxu0
      %v5428 = vadd.f32 %v5326, %v5427
      %v5429 = vpop.f32.mrb[0].mxu0
      %5430 = vmatprep.mubr.bf16.mxu0 0
      %5431 = vmatmul.mubr.bf16.gmra.mrb[0].mxu0 %v5357
      %v5432 = vpop.f32.mrb[0].mxu0
      %v5433 = vadd.f32 %v5326, %v5432
      %v5434 = vpop.f32.mrb[0].mxu0
      %v5435 = vpop.f32.mrb[0].mxu0
      %v5436 = vadd.f32 %v5326, %v5435
      %v5437 = vpop.f32.mrb[0].mxu0
      %5438 = vmatprep.mubr.bf16.mxu0 0
      %5439 = vmatmul.mubr.bf16.gmra.mrb[0].mxu0 %v5359
      %v5440 = vpop.f32.mrb[0].mxu0
      %v5441 = vadd.f32 %v5326, %v5440
      %v5442 = vpop.f32.mrb[0].mxu0
      %v5443 = vpop.f32.mrb[0].mxu0
      %v5444 = vadd.f32 %v5326, %v5443
      %v5445 = vpop.f32.mrb[0].mxu0
      %5446 = vmatprep.mubr.bf16.mxu0 0
      %5447 = vmatmul.mubr.bf16.gmra.mrb[0].mxu0 %v5361
      %v5448 = vpop.f32.mrb[0].mxu0
      %v5449 = vadd.f32 %v5326, %v5448
      %v5450 = vpop.f32.mrb[0].mxu0
      %v5451 = vpop.f32.mrb[0].mxu0
      %v5452 = vadd.f32 %v5326, %v5451
      %v5453 = vpop.f32.mrb[0].mxu0
      %5454 = vmatprep.mubr.bf16.mxu0 0
      %5455 = vmatmul.mubr.bf16.gmra.mrb[0].mxu0 %v5363
      %v5456 = vpop.f32.mrb[0].mxu0
      %v5457 = vadd.f32 %v5326, %v5456
      %v5458 = vpop.f32.mrb[0].mxu0
      %v5459 = vpop.f32.mrb[0].mxu0
      %v5460 = vadd.f32 %v5326, %v5459
      %v5461 = vpop.f32.mrb[0].mxu0
      %5462 = vmatprep.mubr.bf16.mxu0 0
      %5463 = vmatmul.mubr.bf16.gmra.mrb[0].mxu0 %v5365
      %v5464 = vpop.f32.mrb[0].mxu0
      %v5465 = vadd.f32 %v5326, %v5464
      %v5466 = vpop.f32.mrb[0].mxu0
      %v5467 = vpop.f32.mrb[0].mxu0
      %v5468 = vadd.f32 %v5326, %v5467
      %v5469 = vpop.f32.mrb[0].mxu0
      %5470 = vmatprep.mubr.bf16.mxu0 0
      %5471 = vmatmul.mubr.bf16.gmra.mrb[0].mxu0 %v5367
      %v5472 = vpop.f32.mrb[0].mxu0
      %v5473 = vadd.f32 %v5326, %v5472
      %v5474 = vpop.f32.mrb[0].mxu0
      %v5475 = vpop.f32.mrb[0].mxu0
      %v5476 = vadd.f32 %v5326, %v5475
      %v5477 = vpop.f32.mrb[0].mxu0
      %5478 = vmatprep.mubr.bf16.mxu0 0
      %5479 = vmatmul.mubr.bf16.gmra.mrb[0].mxu0 %v5369
      %v5480 = vpop.f32.mrb[0].mxu0
      %v5481 = vadd.f32 %v5326, %v5480
      %v5482 = vpop.f32.mrb[0].mxu0
      %v5483 = vpop.f32.mrb[0].mxu0
      %v5484 = vadd.f32 %v5326, %v5483
      %v5485 = vpop.f32.mrb[0].mxu0
      %5486 = vmatprep.mubr.bf16.mxu0 0
      %5487 = vmatmul.mubr.bf16.gmra.mrb[0].mxu0 %v5371
      %v5488 = vpop.f32.mrb[0].mxu0
      %v5489 = vadd.f32 %v5326, %v5488
      %v5490 = vpop.f32.mrb[0].mxu0
      %v5491 = vpop.f32.mrb[0].mxu0
      %v5492 = vadd.f32 %v5326, %v5491
      %v5493 = vpop.f32.mrb[0].mxu0
      %5494 = vmatprep.mubr.bf16.mxu0 0
      %5495 = vmatmul.mubr.bf16.gmra.mrb[0].mxu0 %v5373
      %v5496 = vpop.f32.mrb[0].mxu0
      %v5497 = vadd.f32 %v5326, %v5496
      %v5498 = vpop.f32.mrb[0].mxu0
      %v5499 = vpop.f32.mrb[0].mxu0
      %v5500 = vadd.f32 %v5326, %v5499
      %v5501 = vpop.f32.mrb[0].mxu0
      %5502 = vmatprep.mubr.bf16.mxu0 0
      %5503 = vmatmul.mubr.bf16.gmra.mrb[0].mxu0 %v5375
      %v5504 = vpop.f32.mrb[0].mxu0
      %v5505 = vadd.f32 %v5326, %v5504
      %v5506 = vpop.f32.mrb[0].mxu0
      %v5507 = vpop.f32.mrb[0].mxu0
      %v5508 = vadd.f32 %v5326, %v5507
      %v5509 = vpop.f32.mrb[0].mxu0
      %5510 = vmatprep.mubr.bf16.mxu0 0
      %5511 = vmatmul.mubr.bf16.gmra.mrb[0].mxu0 %v5377
      %v5512 = vpop.f32.mrb[0].mxu0
      %v5513 = vadd.f32 %v5326, %v5512
      %v5514 = vpop.f32.mrb[0].mxu0
      %v5515 = vpop.f32.mrb[0].mxu0
      %v5516 = vadd.f32 %v5326, %v5515
      %v5517 = vpop.f32.mrb[0].mxu0
      %5518 = vmatprep.mubr.bf16.mxu0 0
      %5519 = vmatmul.mubr.bf16.gmra.mrb[0].mxu0 %v5379
      %v5520 = vpop.f32.mrb[0].mxu0
      %v5521 = vadd.f32 %v5326, %v5520
      %v5522 = vpop.f32.mrb[0].mxu0
      %v5523 = vpop.f32.mrb[0].mxu0
      %v5524 = vadd.f32 %v5326, %v5523
      %v5525 = vpop.f32.mrb[0].mxu0
      %5526 = vmatprep.mubr.bf16.mxu0 0
      %5527 = vmatmul.mubr.bf16.gmra.mrb[0].mxu0 %v5381
      %v5528 = vpop.f32.mrb[0].mxu0
      %v5529 = vadd.f32 %v5326, %v5528
      %v5530 = vpop.f32.mrb[0].mxu0
      %v5531 = vpop.f32.mrb[0].mxu0
      %v5532 = vadd.f32 %v5326, %v5531
      %v5533 = vpop.f32.mrb[0].mxu0
      %5534 = vmatprep.mubr.bf16.mxu0 0
      %5535 = vmatmul.mubr.bf16.gmra.mrb[0].mxu0 %v5383
      %v5536 = vpop.f32.mrb[0].mxu0
      %v5537 = vadd.f32 %v5326, %v5536
      %v5538 = vpop.f32.mrb[0].mxu0
      %v5539 = vpop.f32.mrb[0].mxu0
      %v5540 = vadd.f32 %v5326, %v5539
      %v5541 = vpop.f32.mrb[0].mxu0
      %5542 = vmatprep.mubr.bf16.mxu0 0
      %5543 = vmatmul.mubr.bf16.gmra.mrb[0].mxu0 %v5385
      %v5544 = vpop.f32.mrb[0].mxu0
      %v5545 = vadd.f32 %v5326, %v5544
      %v5546 = vpop.f32.mrb[0].mxu0
      %v5547 = vpop.f32.mrb[0].mxu0
      %v5548 = vadd.f32 %v5326, %v5547
      %v5549 = vpop.f32.mrb[0].mxu0
      %5550 = vdwg.mxu0
      %vm5551 = vcmp.gt.f32.partialorder %v5425, 0.0
      %vm5552 = vcmp.gt.f32.partialorder %v5428, 0.0
      %vm5553 = vcmp.gt.f32.partialorder %v5433, 0.0
      %vm5554 = vcmp.gt.f32.partialorder %v5436, 0.0
      %vm5555 = vcmp.gt.f32.partialorder %v5441, 0.0
      %vm5556 = vcmp.gt.f32.partialorder %v5444, 0.0
      %vm5557 = vcmp.gt.f32.partialorder %v5449, 0.0
      %vm5558 = vcmp.gt.f32.partialorder %v5452, 0.0
      %vm5559 = vcmp.gt.f32.partialorder %v5457, 0.0
      %vm5560 = vcmp.gt.f32.partialorder %v5460, 0.0
      %vm5561 = vcmp.gt.f32.partialorder %v5465, 0.0
      %vm5562 = vcmp.gt.f32.partialorder %v5468, 0.0
      %vm5563 = vcmp.gt.f32.partialorder %v5473, 0.0
      %vm5564 = vcmp.gt.f32.partialorder %v5476, 0.0
      %vm5565 = vcmp.gt.f32.partialorder %v5481, 0.0
      %vm5566 = vcmp.gt.f32.partialorder %v5484, 0.0
      %vm5567 = vcmp.gt.f32.partialorder %v5489, 0.0
      %vm5568 = vcmp.gt.f32.partialorder %v5492, 0.0
      %vm5569 = vcmp.gt.f32.partialorder %v5497, 0.0
      %vm5570 = vcmp.gt.f32.partialorder %v5500, 0.0
      %vm5571 = vcmp.gt.f32.partialorder %v5505, 0.0
      %vm5572 = vcmp.gt.f32.partialorder %v5508, 0.0
      %vm5573 = vcmp.gt.f32.partialorder %v5513, 0.0
      %vm5574 = vcmp.gt.f32.partialorder %v5516, 0.0
      %vm5575 = vcmp.gt.f32.partialorder %v5521, 0.0
      %vm5576 = vcmp.gt.f32.partialorder %v5524, 0.0
      %vm5577 = vcmp.gt.f32.partialorder %v5529, 0.0
      %vm5578 = vcmp.gt.f32.partialorder %v5532, 0.0
      %vm5579 = vcmp.gt.f32.partialorder %v5537, 0.0
      %vm5580 = vcmp.gt.f32.partialorder %v5540, 0.0
      %vm5581 = vcmp.gt.f32.partialorder %v5545, 0.0
      %vm5582 = vcmp.gt.f32.partialorder %v5548, 0.0
      %v5583 = vmul.f32 %v5425, 0.01
      %v5584 = vmul.f32 %v5428, 0.01
      %v5585 = vmul.f32 %v5433, 0.01
      %v5586 = vmul.f32 %v5436, 0.01
      %v5587 = vmul.f32 %v5441, 0.01
      %v5588 = vmul.f32 %v5444, 0.01
      %v5589 = vmul.f32 %v5449, 0.01
      %v5590 = vmul.f32 %v5452, 0.01
      %v5591 = vmul.f32 %v5457, 0.01
      %v5592 = vmul.f32 %v5460, 0.01
      %v5593 = vmul.f32 %v5465, 0.01
      %v5594 = vmul.f32 %v5468, 0.01
      %v5595 = vmul.f32 %v5473, 0.01
      %v5596 = vmul.f32 %v5476, 0.01
      %v5597 = vmul.f32 %v5481, 0.01
      %v5598 = vmul.f32 %v5484, 0.01
      %v5599 = vmul.f32 %v5489, 0.01
      %v5600 = vmul.f32 %v5492, 0.01
      %v5601 = vmul.f32 %v5497, 0.01
      %v5602 = vmul.f32 %v5500, 0.01
      %v5603 = vmul.f32 %v5505, 0.01
      %v5604 = vmul.f32 %v5508, 0.01
      %v5605 = vmul.f32 %v5513, 0.01
      %v5606 = vmul.f32 %v5516, 0.01
      %v5607 = vmul.f32 %v5521, 0.01
      %v5608 = vmul.f32 %v5524, 0.01
      %v5609 = vmul.f32 %v5529, 0.01
      %v5610 = vmul.f32 %v5532, 0.01
      %v5611 = vmul.f32 %v5537, 0.01
      %v5612 = vmul.f32 %v5540, 0.01
      %v5613 = vmul.f32 %v5545, 0.01
      %v5614 = vmul.f32 %v5548, 0.01
      %v5615 = vsel %vm5551, %v5425, %v5583
      %v5616 = vsel %vm5552, %v5428, %v5584
      %v5617 = vsel %vm5553, %v5433, %v5585
      %v5618 = vsel %vm5554, %v5436, %v5586
      %v5619 = vsel %vm5555, %v5441, %v5587
      %v5620 = vsel %vm5556, %v5444, %v5588
      %v5621 = vsel %vm5557, %v5449, %v5589
      %v5622 = vsel %vm5558, %v5452, %v5590
      %v5623 = vsel %vm5559, %v5457, %v5591
      %v5624 = vsel %vm5560, %v5460, %v5592
      %v5625 = vsel %vm5561, %v5465, %v5593
      %v5626 = vsel %vm5562, %v5468, %v5594
      %v5627 = vsel %vm5563, %v5473, %v5595
      %v5628 = vsel %vm5564, %v5476, %v5596
      %v5629 = vsel %vm5565, %v5481, %v5597
      %v5630 = vsel %vm5566, %v5484, %v5598
      %v5631 = vsel %vm5567, %v5489, %v5599
      %v5632 = vsel %vm5568, %v5492, %v5600
      %v5633 = vsel %vm5569, %v5497, %v5601
      %v5634 = vsel %vm5570, %v5500, %v5602
      %v5635 = vsel %vm5571, %v5505, %v5603
      %v5636 = vsel %vm5572, %v5508, %v5604
      %v5637 = vsel %vm5573, %v5513, %v5605
      %v5638 = vsel %vm5574, %v5516, %v5606
      %v5639 = vsel %vm5575, %v5521, %v5607
      %v5640 = vsel %vm5576, %v5524, %v5608
      %v5641 = vsel %vm5577, %v5529, %v5609
      %v5642 = vsel %vm5578, %v5532, %v5610
      %v5643 = vsel %vm5579, %v5537, %v5611
      %v5644 = vsel %vm5580, %v5540, %v5612
      %v5645 = vsel %vm5581, %v5545, %v5613
      %v5646 = vsel %vm5582, %v5548, %v5614
      %v5647 = vcombine.low %v5615, %v5619
      %v5648 = vcombine.high %v5615, %v5619
      %v5650 = vunpack.c.l.s4 1983009808
      %v5651 = vunpack.c.0.s8 %v5650
      %v5652 = vlaneseq
      %v5653 = vshrl.u32 %v5652, 7
      %v5654 = vsub.s32 %v5651, %v5653
      %v5655 = vrot.slane %v5647, %v5654
      %v5657 = vunpack.c.l.s4 1983009808
      %v5658 = vunpack.c.0.s8 %v5657
      %v5659 = vlaneseq
      %v5660 = vshrl.u32 %v5659, 7
      %v5661 = vsub.s32 %v5658, %v5660
      %v5662 = vrot.slane %v5648, %v5661
      %v5663 = vcombine.low %v5617, %v5621
      %v5664 = vcombine.high %v5617, %v5621
      %v5666 = vunpack.c.l.s4 1983009808
      %v5667 = vunpack.c.0.s8 %v5666
      %v5668 = vlaneseq
      %v5669 = vshrl.u32 %v5668, 7
      %v5670 = vsub.s32 %v5667, %v5669
      %v5671 = vrot.slane %v5663, %v5670
      %v5673 = vunpack.c.l.s4 1983009808
      %v5674 = vunpack.c.0.s8 %v5673
      %v5675 = vlaneseq
      %v5676 = vshrl.u32 %v5675, 7
      %v5677 = vsub.s32 %v5674, %v5676
      %v5678 = vrot.slane %v5664, %v5677
      %v5679 = vcombine.low %v5623, %v5627
      %v5680 = vcombine.high %v5623, %v5627
      %v5682 = vunpack.c.l.s4 1983009808
      %v5683 = vunpack.c.0.s8 %v5682
      %v5684 = vlaneseq
      %v5685 = vshrl.u32 %v5684, 7
      %v5686 = vsub.s32 %v5683, %v5685
      %v5687 = vrot.slane %v5679, %v5686
      %v5689 = vunpack.c.l.s4 1983009808
      %v5690 = vunpack.c.0.s8 %v5689
      %v5691 = vlaneseq
      %v5692 = vshrl.u32 %v5691, 7
      %v5693 = vsub.s32 %v5690, %v5692
      %v5694 = vrot.slane %v5680, %v5693
      %v5695 = vcombine.low %v5625, %v5629
      %v5696 = vcombine.high %v5625, %v5629
      %v5698 = vunpack.c.l.s4 1983009808
      %v5699 = vunpack.c.0.s8 %v5698
      %v5700 = vlaneseq
      %v5701 = vshrl.u32 %v5700, 7
      %v5702 = vsub.s32 %v5699, %v5701
      %v5703 = vrot.slane %v5695, %v5702
      %v5705 = vunpack.c.l.s4 1983009808
      %v5706 = vunpack.c.0.s8 %v5705
      %v5707 = vlaneseq
      %v5708 = vshrl.u32 %v5707, 7
      %v5709 = vsub.s32 %v5706, %v5708
      %v5710 = vrot.slane %v5696, %v5709
      %v5711 = vcombine.low %v5655, %v5671
      %v5712 = vcombine.high %v5655, %v5671
      %v5714 = vunpack.c.l.s4 1934713408
      %v5715 = vunpack.c.0.s8 %v5714
      %v5716 = vlaneseq
      %v5717 = vshrl.u32 %v5716, 7
      %v5718 = vsub.s32 %v5715, %v5717
      %v5719 = vrot.slane %v5711, %v5718
      %v5721 = vunpack.c.l.s4 1934713408
      %v5722 = vunpack.c.0.s8 %v5721
      %v5723 = vlaneseq
      %v5724 = vshrl.u32 %v5723, 7
      %v5725 = vsub.s32 %v5722, %v5724
      %v5726 = vrot.slane %v5712, %v5725
      %v5727 = vcombine.low %v5662, %v5678
      %v5728 = vcombine.high %v5662, %v5678
      %v5730 = vunpack.c.l.s4 1934713408
      %v5731 = vunpack.c.0.s8 %v5730
      %v5732 = vlaneseq
      %v5733 = vshrl.u32 %v5732, 7
      %v5734 = vsub.s32 %v5731, %v5733
      %v5735 = vrot.slane %v5727, %v5734
      %v5737 = vunpack.c.l.s4 1934713408
      %v5738 = vunpack.c.0.s8 %v5737
      %v5739 = vlaneseq
      %v5740 = vshrl.u32 %v5739, 7
      %v5741 = vsub.s32 %v5738, %v5740
      %v5742 = vrot.slane %v5728, %v5741
      %v5743 = vcombine.low %v5687, %v5703
      %v5744 = vcombine.high %v5687, %v5703
      %v5746 = vunpack.c.l.s4 1934713408
      %v5747 = vunpack.c.0.s8 %v5746
      %v5748 = vlaneseq
      %v5749 = vshrl.u32 %v5748, 7
      %v5750 = vsub.s32 %v5747, %v5749
      %v5751 = vrot.slane %v5743, %v5750
      %v5753 = vunpack.c.l.s4 1934713408
      %v5754 = vunpack.c.0.s8 %v5753
      %v5755 = vlaneseq
      %v5756 = vshrl.u32 %v5755, 7
      %v5757 = vsub.s32 %v5754, %v5756
      %v5758 = vrot.slane %v5744, %v5757
      %v5759 = vcombine.low %v5694, %v5710
      %v5760 = vcombine.high %v5694, %v5710
      %v5762 = vunpack.c.l.s4 1934713408
      %v5763 = vunpack.c.0.s8 %v5762
      %v5764 = vlaneseq
      %v5765 = vshrl.u32 %v5764, 7
      %v5766 = vsub.s32 %v5763, %v5765
      %v5767 = vrot.slane %v5759, %v5766
      %v5769 = vunpack.c.l.s4 1934713408
      %v5770 = vunpack.c.0.s8 %v5769
      %v5771 = vlaneseq
      %v5772 = vshrl.u32 %v5771, 7
      %v5773 = vsub.s32 %v5770, %v5772
      %v5774 = vrot.slane %v5760, %v5773
      %v5775 = vcombine.low %v5719, %v5751
      %v5776 = vcombine.high %v5719, %v5751
      %v5777 = vcombine.low %v5726, %v5758
      %v5778 = vcombine.high %v5726, %v5758
      %v5779 = vcombine.low %v5735, %v5767
      %v5780 = vcombine.high %v5735, %v5767
      %v5781 = vcombine.low %v5742, %v5774
      %v5782 = vcombine.high %v5742, %v5774
      %v5783 = vcombine.low %v5631, %v5635
      %v5784 = vcombine.high %v5631, %v5635
      %v5786 = vunpack.c.l.s4 1983009808
      %v5787 = vunpack.c.0.s8 %v5786
      %v5788 = vlaneseq
      %v5789 = vshrl.u32 %v5788, 7
      %v5790 = vsub.s32 %v5787, %v5789
      %v5791 = vrot.slane %v5783, %v5790
      %v5793 = vunpack.c.l.s4 1983009808
      %v5794 = vunpack.c.0.s8 %v5793
      %v5795 = vlaneseq
      %v5796 = vshrl.u32 %v5795, 7
      %v5797 = vsub.s32 %v5794, %v5796
      %v5798 = vrot.slane %v5784, %v5797
      %v5799 = vcombine.low %v5633, %v5637
      %v5800 = vcombine.high %v5633, %v5637
      %v5802 = vunpack.c.l.s4 1983009808
      %v5803 = vunpack.c.0.s8 %v5802
      %v5804 = vlaneseq
      %v5805 = vshrl.u32 %v5804, 7
      %v5806 = vsub.s32 %v5803, %v5805
      %v5807 = vrot.slane %v5799, %v5806
      %v5809 = vunpack.c.l.s4 1983009808
      %v5810 = vunpack.c.0.s8 %v5809
      %v5811 = vlaneseq
      %v5812 = vshrl.u32 %v5811, 7
      %v5813 = vsub.s32 %v5810, %v5812
      %v5814 = vrot.slane %v5800, %v5813
      %v5815 = vcombine.low %v5639, %v5643
      %v5816 = vcombine.high %v5639, %v5643
      %v5818 = vunpack.c.l.s4 1983009808
      %v5819 = vunpack.c.0.s8 %v5818
      %v5820 = vlaneseq
      %v5821 = vshrl.u32 %v5820, 7
      %v5822 = vsub.s32 %v5819, %v5821
      %v5823 = vrot.slane %v5815, %v5822
      %v5825 = vunpack.c.l.s4 1983009808
      %v5826 = vunpack.c.0.s8 %v5825
      %v5827 = vlaneseq
      %v5828 = vshrl.u32 %v5827, 7
      %v5829 = vsub.s32 %v5826, %v5828
      %v5830 = vrot.slane %v5816, %v5829
      %v5831 = vcombine.low %v5641, %v5645
      %v5832 = vcombine.high %v5641, %v5645
      %v5834 = vunpack.c.l.s4 1983009808
      %v5835 = vunpack.c.0.s8 %v5834
      %v5836 = vlaneseq
      %v5837 = vshrl.u32 %v5836, 7
      %v5838 = vsub.s32 %v5835, %v5837
      %v5839 = vrot.slane %v5831, %v5838
      %v5841 = vunpack.c.l.s4 1983009808
      %v5842 = vunpack.c.0.s8 %v5841
      %v5843 = vlaneseq
      %v5844 = vshrl.u32 %v5843, 7
      %v5845 = vsub.s32 %v5842, %v5844
      %v5846 = vrot.slane %v5832, %v5845
      %v5847 = vcombine.low %v5791, %v5807
      %v5848 = vcombine.high %v5791, %v5807
      %v5850 = vunpack.c.l.s4 1934713408
      %v5851 = vunpack.c.0.s8 %v5850
      %v5852 = vlaneseq
      %v5853 = vshrl.u32 %v5852, 7
      %v5854 = vsub.s32 %v5851, %v5853
      %v5855 = vrot.slane %v5847, %v5854
      %v5857 = vunpack.c.l.s4 1934713408
      %v5858 = vunpack.c.0.s8 %v5857
      %v5859 = vlaneseq
      %v5860 = vshrl.u32 %v5859, 7
      %v5861 = vsub.s32 %v5858, %v5860
      %v5862 = vrot.slane %v5848, %v5861
      %v5863 = vcombine.low %v5798, %v5814
      %v5864 = vcombine.high %v5798, %v5814
      %v5866 = vunpack.c.l.s4 1934713408
      %v5867 = vunpack.c.0.s8 %v5866
      %v5868 = vlaneseq
      %v5869 = vshrl.u32 %v5868, 7
      %v5870 = vsub.s32 %v5867, %v5869
      %v5871 = vrot.slane %v5863, %v5870
      %v5873 = vunpack.c.l.s4 1934713408
      %v5874 = vunpack.c.0.s8 %v5873
      %v5875 = vlaneseq
      %v5876 = vshrl.u32 %v5875, 7
      %v5877 = vsub.s32 %v5874, %v5876
      %v5878 = vrot.slane %v5864, %v5877
      %v5879 = vcombine.low %v5823, %v5839
      %v5880 = vcombine.high %v5823, %v5839
      %v5882 = vunpack.c.l.s4 1934713408
      %v5883 = vunpack.c.0.s8 %v5882
      %v5884 = vlaneseq
      %v5885 = vshrl.u32 %v5884, 7
      %v5886 = vsub.s32 %v5883, %v5885
      %v5887 = vrot.slane %v5879, %v5886
      %v5889 = vunpack.c.l.s4 1934713408
      %v5890 = vunpack.c.0.s8 %v5889
      %v5891 = vlaneseq
      %v5892 = vshrl.u32 %v5891, 7
      %v5893 = vsub.s32 %v5890, %v5892
      %v5894 = vrot.slane %v5880, %v5893
      %v5895 = vcombine.low %v5830, %v5846
      %v5896 = vcombine.high %v5830, %v5846
      %v5898 = vunpack.c.l.s4 1934713408
      %v5899 = vunpack.c.0.s8 %v5898
      %v5900 = vlaneseq
      %v5901 = vshrl.u32 %v5900, 7
      %v5902 = vsub.s32 %v5899, %v5901
      %v5903 = vrot.slane %v5895, %v5902
      %v5905 = vunpack.c.l.s4 1934713408
      %v5906 = vunpack.c.0.s8 %v5905
      %v5907 = vlaneseq
      %v5908 = vshrl.u32 %v5907, 7
      %v5909 = vsub.s32 %v5906, %v5908
      %v5910 = vrot.slane %v5896, %v5909
      %v5911 = vcombine.low %v5855, %v5887
      %v5912 = vcombine.high %v5855, %v5887
      %v5913 = vcombine.low %v5862, %v5894
      %v5914 = vcombine.high %v5862, %v5894
      %v5915 = vcombine.low %v5871, %v5903
      %v5916 = vcombine.high %v5871, %v5903
      %v5917 = vcombine.low %v5878, %v5910
      %v5918 = vcombine.high %v5878, %v5910
      %v5919 = vcombine.low %v5616, %v5620
      %v5920 = vcombine.high %v5616, %v5620
      %v5922 = vunpack.c.l.s4 1983009808
      %v5923 = vunpack.c.0.s8 %v5922
      %v5924 = vlaneseq
      %v5925 = vshrl.u32 %v5924, 7
      %v5926 = vsub.s32 %v5923, %v5925
      %v5927 = vrot.slane %v5919, %v5926
      %v5929 = vunpack.c.l.s4 1983009808
      %v5930 = vunpack.c.0.s8 %v5929
      %v5931 = vlaneseq
      %v5932 = vshrl.u32 %v5931, 7
      %v5933 = vsub.s32 %v5930, %v5932
      %v5934 = vrot.slane %v5920, %v5933
      %v5935 = vcombine.low %v5618, %v5622
      %v5936 = vcombine.high %v5618, %v5622
      %v5938 = vunpack.c.l.s4 1983009808
      %v5939 = vunpack.c.0.s8 %v5938
      %v5940 = vlaneseq
      %v5941 = vshrl.u32 %v5940, 7
      %v5942 = vsub.s32 %v5939, %v5941
      %v5943 = vrot.slane %v5935, %v5942
      %v5945 = vunpack.c.l.s4 1983009808
      %v5946 = vunpack.c.0.s8 %v5945
      %v5947 = vlaneseq
      %v5948 = vshrl.u32 %v5947, 7
      %v5949 = vsub.s32 %v5946, %v5948
      %v5950 = vrot.slane %v5936, %v5949
      %v5951 = vcombine.low %v5624, %v5628
      %v5952 = vcombine.high %v5624, %v5628
      %v5954 = vunpack.c.l.s4 1983009808
      %v5955 = vunpack.c.0.s8 %v5954
      %v5956 = vlaneseq
      %v5957 = vshrl.u32 %v5956, 7
      %v5958 = vsub.s32 %v5955, %v5957
      %v5959 = vrot.slane %v5951, %v5958
      %v5961 = vunpack.c.l.s4 1983009808
      %v5962 = vunpack.c.0.s8 %v5961
      %v5963 = vlaneseq
      %v5964 = vshrl.u32 %v5963, 7
      %v5965 = vsub.s32 %v5962, %v5964
      %v5966 = vrot.slane %v5952, %v5965
      %v5967 = vcombine.low %v5626, %v5630
      %v5968 = vcombine.high %v5626, %v5630
      %v5970 = vunpack.c.l.s4 1983009808
      %v5971 = vunpack.c.0.s8 %v5970
      %v5972 = vlaneseq
      %v5973 = vshrl.u32 %v5972, 7
      %v5974 = vsub.s32 %v5971, %v5973
      %v5975 = vrot.slane %v5967, %v5974
      %v5977 = vunpack.c.l.s4 1983009808
      %v5978 = vunpack.c.0.s8 %v5977
      %v5979 = vlaneseq
      %v5980 = vshrl.u32 %v5979, 7
      %v5981 = vsub.s32 %v5978, %v5980
      %v5982 = vrot.slane %v5968, %v5981
      %v5983 = vcombine.low %v5927, %v5943
      %v5984 = vcombine.high %v5927, %v5943
      %v5986 = vunpack.c.l.s4 1934713408
      %v5987 = vunpack.c.0.s8 %v5986
      %v5988 = vlaneseq
      %v5989 = vshrl.u32 %v5988, 7
      %v5990 = vsub.s32 %v5987, %v5989
      %v5991 = vrot.slane %v5983, %v5990
      %v5993 = vunpack.c.l.s4 1934713408
      %v5994 = vunpack.c.0.s8 %v5993
      %v5995 = vlaneseq
      %v5996 = vshrl.u32 %v5995, 7
      %v5997 = vsub.s32 %v5994, %v5996
      %v5998 = vrot.slane %v5984, %v5997
      %v5999 = vcombine.low %v5934, %v5950
      %v6000 = vcombine.high %v5934, %v5950
      %v6002 = vunpack.c.l.s4 1934713408
      %v6003 = vunpack.c.0.s8 %v6002
      %v6004 = vlaneseq
      %v6005 = vshrl.u32 %v6004, 7
      %v6006 = vsub.s32 %v6003, %v6005
      %v6007 = vrot.slane %v5999, %v6006
      %v6009 = vunpack.c.l.s4 1934713408
      %v6010 = vunpack.c.0.s8 %v6009
      %v6011 = vlaneseq
      %v6012 = vshrl.u32 %v6011, 7
      %v6013 = vsub.s32 %v6010, %v6012
      %v6014 = vrot.slane %v6000, %v6013
      %v6015 = vcombine.low %v5959, %v5975
      %v6016 = vcombine.high %v5959, %v5975
      %v6018 = vunpack.c.l.s4 1934713408
      %v6019 = vunpack.c.0.s8 %v6018
      %v6020 = vlaneseq
      %v6021 = vshrl.u32 %v6020, 7
      %v6022 = vsub.s32 %v6019, %v6021
      %v6023 = vrot.slane %v6015, %v6022
      %v6025 = vunpack.c.l.s4 1934713408
      %v6026 = vunpack.c.0.s8 %v6025
      %v6027 = vlaneseq
      %v6028 = vshrl.u32 %v6027, 7
      %v6029 = vsub.s32 %v6026, %v6028
      %v6030 = vrot.slane %v6016, %v6029
      %v6031 = vcombine.low %v5966, %v5982
      %v6032 = vcombine.high %v5966, %v5982
      %v6034 = vunpack.c.l.s4 1934713408
      %v6035 = vunpack.c.0.s8 %v6034
      %v6036 = vlaneseq
      %v6037 = vshrl.u32 %v6036, 7
      %v6038 = vsub.s32 %v6035, %v6037
      %v6039 = vrot.slane %v6031, %v6038
      %v6041 = vunpack.c.l.s4 1934713408
      %v6042 = vunpack.c.0.s8 %v6041
      %v6043 = vlaneseq
      %v6044 = vshrl.u32 %v6043, 7
      %v6045 = vsub.s32 %v6042, %v6044
      %v6046 = vrot.slane %v6032, %v6045
      %v6047 = vcombine.low %v5991, %v6023
      %v6048 = vcombine.high %v5991, %v6023
      %v6049 = vcombine.low %v5998, %v6030
      %v6050 = vcombine.high %v5998, %v6030
      %v6051 = vcombine.low %v6007, %v6039
      %v6052 = vcombine.high %v6007, %v6039
      %v6053 = vcombine.low %v6014, %v6046
      %v6054 = vcombine.high %v6014, %v6046
      %v6055 = vcombine.low %v5632, %v5636
      %v6056 = vcombine.high %v5632, %v5636
      %v6058 = vunpack.c.l.s4 1983009808
      %v6059 = vunpack.c.0.s8 %v6058
      %v6060 = vlaneseq
      %v6061 = vshrl.u32 %v6060, 7
      %v6062 = vsub.s32 %v6059, %v6061
      %v6063 = vrot.slane %v6055, %v6062
      %v6065 = vunpack.c.l.s4 1983009808
      %v6066 = vunpack.c.0.s8 %v6065
      %v6067 = vlaneseq
      %v6068 = vshrl.u32 %v6067, 7
      %v6069 = vsub.s32 %v6066, %v6068
      %v6070 = vrot.slane %v6056, %v6069
      %v6071 = vcombine.low %v5634, %v5638
      %v6072 = vcombine.high %v5634, %v5638
      %v6074 = vunpack.c.l.s4 1983009808
      %v6075 = vunpack.c.0.s8 %v6074
      %v6076 = vlaneseq
      %v6077 = vshrl.u32 %v6076, 7
      %v6078 = vsub.s32 %v6075, %v6077
      %v6079 = vrot.slane %v6071, %v6078
      %v6081 = vunpack.c.l.s4 1983009808
      %v6082 = vunpack.c.0.s8 %v6081
      %v6083 = vlaneseq
      %v6084 = vshrl.u32 %v6083, 7
      %v6085 = vsub.s32 %v6082, %v6084
      %v6086 = vrot.slane %v6072, %v6085
      %v6087 = vcombine.low %v5640, %v5644
      %v6088 = vcombine.high %v5640, %v5644
      %v6090 = vunpack.c.l.s4 1983009808
      %v6091 = vunpack.c.0.s8 %v6090
      %v6092 = vlaneseq
      %v6093 = vshrl.u32 %v6092, 7
      %v6094 = vsub.s32 %v6091, %v6093
      %v6095 = vrot.slane %v6087, %v6094
      %v6097 = vunpack.c.l.s4 1983009808
      %v6098 = vunpack.c.0.s8 %v6097
      %v6099 = vlaneseq
      %v6100 = vshrl.u32 %v6099, 7
      %v6101 = vsub.s32 %v6098, %v6100
      %v6102 = vrot.slane %v6088, %v6101
      %v6103 = vcombine.low %v5642, %v5646
      %v6104 = vcombine.high %v5642, %v5646
      %v6106 = vunpack.c.l.s4 1983009808
      %v6107 = vunpack.c.0.s8 %v6106
      %v6108 = vlaneseq
      %v6109 = vshrl.u32 %v6108, 7
      %v6110 = vsub.s32 %v6107, %v6109
      %v6111 = vrot.slane %v6103, %v6110
      %v6113 = vunpack.c.l.s4 1983009808
      %v6114 = vunpack.c.0.s8 %v6113
      %v6115 = vlaneseq
      %v6116 = vshrl.u32 %v6115, 7
      %v6117 = vsub.s32 %v6114, %v6116
      %v6118 = vrot.slane %v6104, %v6117
      %v6119 = vcombine.low %v6063, %v6079
      %v6120 = vcombine.high %v6063, %v6079
      %v6122 = vunpack.c.l.s4 1934713408
      %v6123 = vunpack.c.0.s8 %v6122
      %v6124 = vlaneseq
      %v6125 = vshrl.u32 %v6124, 7
      %v6126 = vsub.s32 %v6123, %v6125
      %v6127 = vrot.slane %v6119, %v6126
      %v6129 = vunpack.c.l.s4 1934713408
      %v6130 = vunpack.c.0.s8 %v6129
      %v6131 = vlaneseq
      %v6132 = vshrl.u32 %v6131, 7
      %v6133 = vsub.s32 %v6130, %v6132
      %v6134 = vrot.slane %v6120, %v6133
      %v6135 = vcombine.low %v6070, %v6086
      %v6136 = vcombine.high %v6070, %v6086
      %v6138 = vunpack.c.l.s4 1934713408
      %v6139 = vunpack.c.0.s8 %v6138
      %v6140 = vlaneseq
      %v6141 = vshrl.u32 %v6140, 7
      %v6142 = vsub.s32 %v6139, %v6141
      %v6143 = vrot.slane %v6135, %v6142
      %v6145 = vunpack.c.l.s4 1934713408
      %v6146 = vunpack.c.0.s8 %v6145
      %v6147 = vlaneseq
      %v6148 = vshrl.u32 %v6147, 7
      %v6149 = vsub.s32 %v6146, %v6148
      %v6150 = vrot.slane %v6136, %v6149
      %v6151 = vcombine.low %v6095, %v6111
      %v6152 = vcombine.high %v6095, %v6111
      %v6154 = vunpack.c.l.s4 1934713408
      %v6155 = vunpack.c.0.s8 %v6154
      %v6156 = vlaneseq
      %v6157 = vshrl.u32 %v6156, 7
      %v6158 = vsub.s32 %v6155, %v6157
      %v6159 = vrot.slane %v6151, %v6158
      %v6161 = vunpack.c.l.s4 1934713408
      %v6162 = vunpack.c.0.s8 %v6161
      %v6163 = vlaneseq
      %v6164 = vshrl.u32 %v6163, 7
      %v6165 = vsub.s32 %v6162, %v6164
      %v6166 = vrot.slane %v6152, %v6165
      %v6167 = vcombine.low %v6102, %v6118
      %v6168 = vcombine.high %v6102, %v6118
      %v6170 = vunpack.c.l.s4 1934713408
      %v6171 = vunpack.c.0.s8 %v6170
      %v6172 = vlaneseq
      %v6173 = vshrl.u32 %v6172, 7
      %v6174 = vsub.s32 %v6171, %v6173
      %v6175 = vrot.slane %v6167, %v6174
      %v6177 = vunpack.c.l.s4 1934713408
      %v6178 = vunpack.c.0.s8 %v6177
      %v6179 = vlaneseq
      %v6180 = vshrl.u32 %v6179, 7
      %v6181 = vsub.s32 %v6178, %v6180
      %v6182 = vrot.slane %v6168, %v6181
      %v6183 = vcombine.low %v6127, %v6159
      %v6184 = vcombine.high %v6127, %v6159
      %v6185 = vcombine.low %v6134, %v6166
      %v6186 = vcombine.high %v6134, %v6166
      %v6187 = vcombine.low %v6143, %v6175
      %v6188 = vcombine.high %v6143, %v6175
      %v6189 = vcombine.low %v6150, %v6182
      %v6190 = vcombine.high %v6150, %v6182
      %6193 = vrot.lane.b32.xlu0 %v5776, 8
      %v6194 = vpop.permute.xlu0 %6193
      %6195 = vrot.lane.b32.xlu0 %v5912, 8
      %v6196 = vpop.permute.xlu0 %6195
      %6201 = vrot.lane.b32.xlu0 %v5777, 16
      %v6202 = vpop.permute.xlu0 %6201
      %6203 = vrot.lane.b32.xlu0 %v5913, 16
      %v6204 = vpop.permute.xlu0 %6203
      %6209 = vrot.lane.b32.xlu0 %v5778, 24
      %v6210 = vpop.permute.xlu0 %6209
      %6211 = vrot.lane.b32.xlu0 %v5914, 24
      %v6212 = vpop.permute.xlu0 %6211
      %6217 = vrot.lane.b32.xlu0 %v5779, 32
      %v6218 = vpop.permute.xlu0 %6217
      %6219 = vrot.lane.b32.xlu0 %v5915, 32
      %v6220 = vpop.permute.xlu0 %6219
      %6225 = vrot.lane.b32.xlu0 %v5780, 40
      %v6226 = vpop.permute.xlu0 %6225
      %6227 = vrot.lane.b32.xlu0 %v5916, 40
      %v6228 = vpop.permute.xlu0 %6227
      %6233 = vrot.lane.b32.xlu0 %v5781, 48
      %v6234 = vpop.permute.xlu0 %6233
      %6235 = vrot.lane.b32.xlu0 %v5917, 48
      %v6236 = vpop.permute.xlu0 %6235
      %6241 = vrot.lane.b32.xlu0 %v5782, 56
      %v6242 = vpop.permute.xlu0 %6241
      %6243 = vrot.lane.b32.xlu0 %v5918, 56
      %v6244 = vpop.permute.xlu0 %6243
      %6249 = vrot.lane.b32.xlu0 %v6047, 64
      %v6250 = vpop.permute.xlu0 %6249
      %6251 = vrot.lane.b32.xlu0 %v6183, 64
      %v6252 = vpop.permute.xlu0 %6251
      %6257 = vrot.lane.b32.xlu0 %v6048, 72
      %v6258 = vpop.permute.xlu0 %6257
      %6259 = vrot.lane.b32.xlu0 %v6184, 72
      %v6260 = vpop.permute.xlu0 %6259
      %6265 = vrot.lane.b32.xlu0 %v6049, 80
      %v6266 = vpop.permute.xlu0 %6265
      %6267 = vrot.lane.b32.xlu0 %v6185, 80
      %v6268 = vpop.permute.xlu0 %6267
      %6273 = vrot.lane.b32.xlu0 %v6050, 88
      %v6274 = vpop.permute.xlu0 %6273
      %6275 = vrot.lane.b32.xlu0 %v6186, 88
      %v6276 = vpop.permute.xlu0 %6275
      %6281 = vrot.lane.b32.xlu0 %v6051, 96
      %v6282 = vpop.permute.xlu0 %6281
      %6283 = vrot.lane.b32.xlu0 %v6187, 96
      %v6284 = vpop.permute.xlu0 %6283
      %6289 = vrot.lane.b32.xlu0 %v6052, 104
      %v6290 = vpop.permute.xlu0 %6289
      %6291 = vrot.lane.b32.xlu0 %v6188, 104
      %v6292 = vpop.permute.xlu0 %6291
      %6297 = vrot.lane.b32.xlu0 %v6053, 112
      %v6298 = vpop.permute.xlu0 %6297
      %6299 = vrot.lane.b32.xlu0 %v6189, 112
      %v6300 = vpop.permute.xlu0 %6299
      %6305 = vrot.lane.b32.xlu0 %v6054, 120
      %v6306 = vpop.permute.xlu0 %6305
      %6307 = vrot.lane.b32.xlu0 %v6190, 120
      %v6308 = vpop.permute.xlu0 %6307
      %v6311 = vsel %vm1395, %v5775, %v6194
      %v6312 = vsel %vm1395, %v5911, %v6196
      %v6313 = vsel %vm1461, %v6311, %v6202
      %v6314 = vsel %vm1461, %v6312, %v6204
      %v6315 = vsel %vm1527, %v6313, %v6210
      %v6316 = vsel %vm1527, %v6314, %v6212
      %v6317 = vsel %vm1593, %v6315, %v6218
      %v6318 = vsel %vm1593, %v6316, %v6220
      %v6319 = vsel %vm3265, %v6317, %v6226
      %v6320 = vsel %vm3265, %v6318, %v6228
      %v6321 = vsel %vm3298, %v6319, %v6234
      %v6322 = vsel %vm3298, %v6320, %v6236
      %v6323 = vsel %vm3331, %v6321, %v6242
      %v6324 = vsel %vm3331, %v6322, %v6244
      %v6325 = vsel %vm3364, %v6323, %v6250
      %v6326 = vsel %vm3364, %v6324, %v6252
      %v6327 = vsel %vm3430, %v6325, %v6258
      %v6328 = vsel %vm3430, %v6326, %v6260
      %vm6329 = vcmask 654336
      %v6330 = vsel %vm6329, %v6327, %v6266
      %v6331 = vsel %vm6329, %v6328, %v6268
      %vm6332 = vcmask 719872
      %v6333 = vsel %vm6332, %v6330, %v6274
      %v6334 = vsel %vm6332, %v6331, %v6276
      %vm6335 = vcmask 785408
      %v6336 = vsel %vm6335, %v6333, %v6282
      %v6337 = vsel %vm6335, %v6334, %v6284
      %vm6338 = vcmask 850944
      %v6339 = vsel %vm6338, %v6336, %v6290
      %v6340 = vsel %vm6338, %v6337, %v6292
      %vm6341 = vcmask 916480
      %v6342 = vsel %vm6341, %v6339, %v6298
      %v6343 = vsel %vm6341, %v6340, %v6300
      %vm6344 = vcmask 982016
      %v6345 = vsel %vm6344, %v6342, %v6306
      %v6346 = vsel %vm6344, %v6343, %v6308
      %6347 = vst [vmem:[%s501] sm:$0xff] %v6345
      %6348 = vst [vmem:[%s501 + $0x8] sm:$0xff] %v6346
      %v6349 = vsel %vm1395, %v5615, 0.0
      %v6350 = vsel %vm1395, %v5616, 0.0
      %v6351 = vadd.f32 %v6349, %v6350
      %v6352 = vsel %vm1395, %v5617, 0.0
      %v6353 = vadd.f32 %v6351, %v6352
      %v6354 = vsel %vm1395, %v5618, 0.0
      %v6355 = vadd.f32 %v6353, %v6354
      %v6356 = vsel %vm1395, %v5619, 0.0
      %v6357 = vadd.f32 %v6355, %v6356
      %v6358 = vsel %vm1395, %v5620, 0.0
      %v6359 = vadd.f32 %v6357, %v6358
      %v6360 = vsel %vm1395, %v5621, 0.0
      %v6361 = vadd.f32 %v6359, %v6360
      %v6362 = vsel %vm1395, %v5622, 0.0
      %v6363 = vadd.f32 %v6361, %v6362
      %v6364 = vsel %vm1395, %v5623, 0.0
      %v6365 = vadd.f32 %v6363, %v6364
      %v6366 = vsel %vm1395, %v5624, 0.0
      %v6367 = vadd.f32 %v6365, %v6366
      %v6368 = vsel %vm1395, %v5625, 0.0
      %v6369 = vadd.f32 %v6367, %v6368
      %v6370 = vsel %vm1395, %v5626, 0.0
      %v6371 = vadd.f32 %v6369, %v6370
      %v6372 = vsel %vm1395, %v5627, 0.0
      %v6373 = vadd.f32 %v6371, %v6372
      %v6374 = vsel %vm1395, %v5628, 0.0
      %v6375 = vadd.f32 %v6373, %v6374
      %v6376 = vsel %vm1395, %v5629, 0.0
      %v6377 = vadd.f32 %v6375, %v6376
      %v6378 = vsel %vm1395, %v5630, 0.0
      %v6379 = vadd.f32 %v6377, %v6378
      %v6380 = vsel %vm1395, %v5631, 0.0
      %v6381 = vadd.f32 %v6379, %v6380
      %v6382 = vsel %vm1395, %v5632, 0.0
      %v6383 = vadd.f32 %v6381, %v6382
      %v6384 = vsel %vm1395, %v5633, 0.0
      %v6385 = vadd.f32 %v6383, %v6384
      %v6386 = vsel %vm1395, %v5634, 0.0
      %v6387 = vadd.f32 %v6385, %v6386
      %v6388 = vsel %vm1395, %v5635, 0.0
      %v6389 = vadd.f32 %v6387, %v6388
      %v6390 = vsel %vm1395, %v5636, 0.0
      %v6391 = vadd.f32 %v6389, %v6390
      %v6392 = vsel %vm1395, %v5637, 0.0
      %v6393 = vadd.f32 %v6391, %v6392
      %v6394 = vsel %vm1395, %v5638, 0.0
      %v6395 = vadd.f32 %v6393, %v6394
      %v6396 = vsel %vm1395, %v5639, 0.0
      %v6397 = vadd.f32 %v6395, %v6396
      %v6398 = vsel %vm1395, %v5640, 0.0
      %v6399 = vadd.f32 %v6397, %v6398
      %v6400 = vsel %vm1395, %v5641, 0.0
      %v6401 = vadd.f32 %v6399, %v6400
      %v6402 = vsel %vm1395, %v5642, 0.0
      %v6403 = vadd.f32 %v6401, %v6402
      %v6404 = vsel %vm1395, %v5643, 0.0
      %v6405 = vadd.f32 %v6403, %v6404
      %v6406 = vsel %vm1395, %v5644, 0.0
      %v6407 = vadd.f32 %v6405, %v6406
      %v6408 = vsel %vm1395, %v5645, 0.0
      %v6409 = vadd.f32 %v6407, %v6408
      %v6410 = vsel %vm1395, %v5646, 0.0
      %v6411 = vadd.f32 %v6409, %v6410
      %v6412 = vrot.slane %v6411, 4
      %v6413 = vadd.f32 %v6411, %v6412
      %v6414 = vrot.slane %v6413, 2
      %v6415 = vadd.f32 %v6413, %v6414
      %v6416 = vrot.slane %v6415, 1
      %v6417 = vadd.f32 %v6415, %v6416
      %vm6418 = vcmask 57344
      %6419 = vst.msk [vmem:[%s505] sm:$0x1] %vm6418, %v6417
      %v6420 = vmul.f32 %v5615, %v5615
      %v6421 = vmul.f32 %v5616, %v5616
      %v6422 = vmul.f32 %v5617, %v5617
      %v6423 = vmul.f32 %v5618, %v5618
      %v6424 = vmul.f32 %v5619, %v5619
      %v6425 = vmul.f32 %v5620, %v5620
      %v6426 = vmul.f32 %v5621, %v5621
      %v6427 = vmul.f32 %v5622, %v5622
      %v6428 = vmul.f32 %v5623, %v5623
      %v6429 = vmul.f32 %v5624, %v5624
      %v6430 = vmul.f32 %v5625, %v5625
      %v6431 = vmul.f32 %v5626, %v5626
      %v6432 = vmul.f32 %v5627, %v5627
      %v6433 = vmul.f32 %v5628, %v5628
      %v6434 = vmul.f32 %v5629, %v5629
      %v6435 = vmul.f32 %v5630, %v5630
      %v6436 = vmul.f32 %v5631, %v5631
      %v6437 = vmul.f32 %v5632, %v5632
      %v6438 = vmul.f32 %v5633, %v5633
      %v6439 = vmul.f32 %v5634, %v5634
      %v6440 = vmul.f32 %v5635, %v5635
      %v6441 = vmul.f32 %v5636, %v5636
      %v6442 = vmul.f32 %v5637, %v5637
      %v6443 = vmul.f32 %v5638, %v5638
      %v6444 = vmul.f32 %v5639, %v5639
      %v6445 = vmul.f32 %v5640, %v5640
      %v6446 = vmul.f32 %v5641, %v5641
      %v6447 = vmul.f32 %v5642, %v5642
      %v6448 = vmul.f32 %v5643, %v5643
      %v6449 = vmul.f32 %v5644, %v5644
      %v6450 = vmul.f32 %v5645, %v5645
      %v6451 = vmul.f32 %v5646, %v5646
      %v6452 = vsel %vm1395, %v6420, 0.0
      %v6453 = vsel %vm1395, %v6421, 0.0
      %v6454 = vadd.f32 %v6452, %v6453
      %v6455 = vsel %vm1395, %v6422, 0.0
      %v6456 = vadd.f32 %v6454, %v6455
      %v6457 = vsel %vm1395, %v6423, 0.0
      %v6458 = vadd.f32 %v6456, %v6457
      %v6459 = vsel %vm1395, %v6424, 0.0
      %v6460 = vadd.f32 %v6458, %v6459
      %v6461 = vsel %vm1395, %v6425, 0.0
      %v6462 = vadd.f32 %v6460, %v6461
      %v6463 = vsel %vm1395, %v6426, 0.0
      %v6464 = vadd.f32 %v6462, %v6463
      %v6465 = vsel %vm1395, %v6427, 0.0
      %v6466 = vadd.f32 %v6464, %v6465
      %v6467 = vsel %vm1395, %v6428, 0.0
      %v6468 = vadd.f32 %v6466, %v6467
      %v6469 = vsel %vm1395, %v6429, 0.0
      %v6470 = vadd.f32 %v6468, %v6469
      %v6471 = vsel %vm1395, %v6430, 0.0
      %v6472 = vadd.f32 %v6470, %v6471
      %v6473 = vsel %vm1395, %v6431, 0.0
      %v6474 = vadd.f32 %v6472, %v6473
      %v6475 = vsel %vm1395, %v6432, 0.0
      %v6476 = vadd.f32 %v6474, %v6475
      %v6477 = vsel %vm1395, %v6433, 0.0
      %v6478 = vadd.f32 %v6476, %v6477
      %v6479 = vsel %vm1395, %v6434, 0.0
      %v6480 = vadd.f32 %v6478, %v6479
      %v6481 = vsel %vm1395, %v6435, 0.0
      %v6482 = vadd.f32 %v6480, %v6481
      %v6483 = vsel %vm1395, %v6436, 0.0
      %v6484 = vadd.f32 %v6482, %v6483
      %v6485 = vsel %vm1395, %v6437, 0.0
      %v6486 = vadd.f32 %v6484, %v6485
      %v6487 = vsel %vm1395, %v6438, 0.0
      %v6488 = vadd.f32 %v6486, %v6487
      %v6489 = vsel %vm1395, %v6439, 0.0
      %v6490 = vadd.f32 %v6488, %v6489
      %v6491 = vsel %vm1395, %v6440, 0.0
      %v6492 = vadd.f32 %v6490, %v6491
      %v6493 = vsel %vm1395, %v6441, 0.0
      %v6494 = vadd.f32 %v6492, %v6493
      %v6495 = vsel %vm1395, %v6442, 0.0
      %v6496 = vadd.f32 %v6494, %v6495
      %v6497 = vsel %vm1395, %v6443, 0.0
      %v6498 = vadd.f32 %v6496, %v6497
      %v6499 = vsel %vm1395, %v6444, 0.0
      %v6500 = vadd.f32 %v6498, %v6499
      %v6501 = vsel %vm1395, %v6445, 0.0
      %v6502 = vadd.f32 %v6500, %v6501
      %v6503 = vsel %vm1395, %v6446, 0.0
      %v6504 = vadd.f32 %v6502, %v6503
      %v6505 = vsel %vm1395, %v6447, 0.0
      %v6506 = vadd.f32 %v6504, %v6505
      %v6507 = vsel %vm1395, %v6448, 0.0
      %v6508 = vadd.f32 %v6506, %v6507
      %v6509 = vsel %vm1395, %v6449, 0.0
      %v6510 = vadd.f32 %v6508, %v6509
      %v6511 = vsel %vm1395, %v6450, 0.0
      %v6512 = vadd.f32 %v6510, %v6511
      %v6513 = vsel %vm1395, %v6451, 0.0
      %v6514 = vadd.f32 %v6512, %v6513
      %v6515 = vrot.slane %v6514, 4
      %v6516 = vadd.f32 %v6514, %v6515
      %v6517 = vrot.slane %v6516, 2
      %v6518 = vadd.f32 %v6516, %v6517
      %v6519 = vrot.slane %v6518, 1
      %v6520 = vadd.f32 %v6518, %v6519
      %6521 = vst.msk [vmem:[%s505 + $0x1] sm:$0x1] %vm6418, %v6520
      %p6522 = scmp.lt.s32.totalorder %s27, 1
      %s6523 = scalar_select %p6522, %s27, 1
      %s6524 = smul.addr %s6523, 2
      %s6525 = smul.addr %s6524, 8
      %s6526 = scalar_lea.vmem %s14, %s6525
      %p6527 = scmp.lt.s32.totalorder %s27, 1
      %s6528 = scalar_select %p6527, %s27, 1
      %s6529 = smul.addr %s6528, 2
      %s6530 = scalar_lea.vmem %s15, %s6529
      // Predicated region
      $region77: #{dense_down_block.1} parent=75 // pred_check
        %p6531 = pneg %p344
      $region78: #{dense_down_block.1} parent=75 // pred_check_branch
        %6533 = sbr.rel (%p6531) target = $region80
      $region79: #{dense_down_block.1} parent=75 // pred_region
        _
      $region80: #{dense_down_block.1} parent=75 // pred_fallthru
        _
      // Predicated region
      $region81: #{dense_down_block.1} parent=75 // pred_check
        %p6534 = pneg %p370
      $region82: #{dense_down_block.1} parent=75 // pred_check_branch
        %6536 = sbr.rel (%p6534) target = $region84
      $region83: #{dense_down_block.1} parent=75 // pred_region
        _
      $region84: #{dense_down_block.1} parent=75 // pred_fallthru
        _
    $region76: #{dense_down_block.1} parent=5 // pred_fallthru
      _
    %p6537 = scmp.le.s32.totalorder 2, %s22
    // Predicated region
    $region85: #{dense_down_block.1} parent=5 // pred_check
      %p6538 = pneg %p6537
    $region86: #{dense_down_block.1} parent=5 // pred_check_branch
      %6540 = sbr.rel (%p6538) target = $region88
    $region87: #{dense_down_block.1} parent=5 // pred_region
      %s6541 = ssub.s32 %s22, 2
      // Predicated region
      $region89: #{dense_down_block.1} parent=87 // pred_check
        %p6542 = pneg %p350
      $region90: #{dense_down_block.1} parent=87 // pred_check_branch
        %6544 = sbr.rel (%p6542) target = $region92
      $region91: #{dense_down_block.1} parent=87 // pred_region
        %p6545 = scmp.lt.s32.totalorder %s28, 1
        %s6546 = scalar_select %p6545, %s28, 1
        %s6547 = smul.addr %s6546, 2
        %s6548 = smul.addr %s6547, 8
        %s6549 = scalar_lea.vmem %s14, %s6548
      $region92: #{dense_down_block.1} parent=87 // pred_fallthru
        _
      // Predicated region
      $region93: #{dense_down_block.1} parent=87 // pred_check
        %p6550 = pneg %p376
      $region94: #{dense_down_block.1} parent=87 // pred_check_branch
        %6552 = sbr.rel (%p6550) target = $region96
      $region95: #{dense_down_block.1} parent=87 // pred_region
        %p6553 = scmp.lt.s32.totalorder %s28, 1
        %s6554 = scalar_select %p6553, %s28, 1
        %s6555 = smul.addr %s6554, 2
        %s6556 = scalar_lea.vmem %s15, %s6555
      $region96: #{dense_down_block.1} parent=87 // pred_fallthru
        _
    $region88: #{dense_down_block.1} parent=5 // pred_fallthru
      _
  $region6: #{dense_down_block.1} parent=0 // loop_footer
    %s26 = sadd.s32 1, %s22
  $region7: #{dense_down_block.1} parent=0 // loop_footer_branch
    %21 = sbr.rel target = $region3
  $region8: #{dense_down_block.1} parent=0 // loop_exit
    _

</llo_original>
